<compile_context>
chip_gen: v6e
topology: v6e:2x2x1
jax: 0.10.0
libtpu: 0.0.40
codegen_flags: <defaults>
</compile_context>

<pallas_src>
import functools

import jax
import jax.numpy as jnp
from jax.experimental import pallas as pl
from jax.experimental.pallas import tpu as pltpu


def _round_up(x, m):
    return ((x + m - 1) // m) * m


def _pad_cols(a, total):
    """Zero-pad the last dim of `a` up to `total` columns."""
    pad = total - a.shape[-1]
    if pad == 0:
        return a
    return jnp.pad(a, [(0, 0)] * (a.ndim - 1) + [(0, pad)])


# ----------------------------- Pallas kernels -----------------------------

def _proj_kernel(x_ref, w_ref, b_ref, o_ref):
    """o = x @ w + b.  w is pre-cast bf16; accumulate in f32."""
    y = jnp.dot(x_ref[...].astype(jnp.bfloat16), w_ref[...],
                preferred_element_type=jnp.float32) + b_ref[...]
    o_ref[...] = y.astype(o_ref.dtype)


def _ln_linear_kernel(x_ref, ln_g_ref, ln_b_ref, w_ref, b_ref, o_ref):
    """o = LayerNorm(x) @ w + b  (LN fused as matmul prologue, bf16 operands)."""
    x = x_ref[...].astype(jnp.float32)
    mu = jnp.mean(x, axis=-1, keepdims=True)
    xc = x - mu
    var = jnp.mean(xc * xc, axis=-1, keepdims=True)
    xn = xc * jax.lax.rsqrt(var + 1e-5) * ln_g_ref[...] + ln_b_ref[...]
    y = jnp.dot(xn.astype(jnp.bfloat16), w_ref[...],
                preferred_element_type=jnp.float32) + b_ref[...]
    o_ref[...] = y.astype(o_ref.dtype)


def _sen2enc_kernel(last_ref, ln_g_ref, ln_b_ref, wo_ref, bo_ref,
                    wgf_ref, bgf_ref, o_ref, gif_ref):
    """Fuses: sen.LN + sen.linear + enc.linear + tanh  (folded weight Wo/bo),
    and also emits gru_F's input projection giF = o @ W_ihF + b_ihF."""
    x = last_ref[...].astype(jnp.float32)
    mu = jnp.mean(x, axis=-1, keepdims=True)
    xc = x - mu
    var = jnp.mean(xc * xc, axis=-1, keepdims=True)
    xn = xc * jax.lax.rsqrt(var + 1e-5) * ln_g_ref[...] + ln_b_ref[...]
    o = jnp.tanh(jnp.dot(xn.astype(jnp.bfloat16), wo_ref[...],
                         preferred_element_type=jnp.float32) + bo_ref[...])
    o_ref[...] = o.astype(o_ref.dtype)
    gif = jnp.dot(o.astype(jnp.bfloat16), wgf_ref[...],
                  preferred_element_type=jnp.float32) + bgf_ref[...]
    gif_ref[...] = gif.astype(gif_ref.dtype)


def _enc_mix_proj_kernel(g_ref, o_ref, ln_g_ref, ln_b_ref,
                         pg_ref, po_ref, pb_ref, out_ref):
    """Fuses: LN_F(g) ; dropout(identity) ; concat(g_ln, o) ; linear_new ;
    AND the second bi-GRU's input projection (weights folded at trace time):
        out = LN_F(g) @ Pg + o @ Po + pb      with  Pg = Ag @ Wih2, etc."""
    g = g_ref[...].astype(jnp.float32)
    mu = jnp.mean(g, axis=-1, keepdims=True)
    gc = g - mu
    var = jnp.mean(gc * gc, axis=-1, keepdims=True)
    g_ln = gc * jax.lax.rsqrt(var + 1e-5) * ln_g_ref[...] + ln_b_ref[...]
    y = (jnp.dot(g_ln.astype(jnp.bfloat16), pg_ref[...],
                 preferred_element_type=jnp.float32)
         + jnp.dot(o_ref[...].astype(jnp.bfloat16), po_ref[...],
                   preferred_element_type=jnp.float32)
         + pb_ref[...])
    out_ref[...] = y.astype(out_ref.dtype)


def _gru_cell(gi_t, gh, h_prev, H):
    """PyTorch GRU cell with (r, z, n) gate ordering; all f32 elementwise."""
    r = jax.nn.sigmoid(gi_t[:, 0:H] + gh[:, 0:H])
    z = jax.nn.sigmoid(gi_t[:, H:2 * H] + gh[:, H:2 * H])
    n = jnp.tanh(gi_t[:, 2 * H:3 * H] + r * gh[:, 2 * H:3 * H])
    return (1.0 - z) * n + z * h_prev


def _bigru_last_kernel(gi_ref, whh_ref, bhh_ref, last_ref, *, hidden):
    """Bidirectional GRU, but only output[-1] (position T-1) is produced.

    gi_ref : [T, N, 2*Gp]  precomputed x @ W_ih + b_ih, per-direction column
                           blocks zero-padded to Gp (lane-tile aligned).
    whh_ref: [2, H, Gp] bf16, bhh_ref: [2, 1, Gp] f32.
    last_ref: [N, 2H]  == concat(h_fwd(T-1), h_bwd at position T-1).

    Backward hidden at position T-1 is a single GRU step from h=0
    (h @ W_hh == 0), so no backward recurrence / matmul is needed.
    """
    T, N = gi_ref.shape[0], gi_ref.shape[1]
    H = hidden
    Gp = whh_ref.shape[2]
    whh_f = whh_ref[0]            # [H, Gp] bf16, hoisted out of the loop
    bhh_f = bhh_ref[0]            # [1, Gp]

    def step(i, h_f):
        gi_t = gi_ref[i][:, 0:Gp]
        gh = jnp.dot(h_f.astype(jnp.bfloat16), whh_f,
                     preferred_element_type=jnp.float32) + bhh_f
        return _gru_cell(gi_t, gh, h_f, H)

    h_f = jax.lax.fori_loop(0, T, step, jnp.zeros((N, H), jnp.float32),
                            unroll=True)

    gi_b = gi_ref[T - 1][:, Gp:2 * Gp]
    bhh_b = bhh_ref[1]            # gh_b == 0 @ W_hh + b_hh == b_hh
    r = jax.nn.sigmoid(gi_b[:, 0:H] + bhh_b[:, 0:H])
    z = jax.nn.sigmoid(gi_b[:, H:2 * H] + bhh_b[:, H:2 * H])
    n = jnp.tanh(gi_b[:, 2 * H:3 * H] + r * bhh_b[:, 2 * H:3 * H])
    h_b = (1.0 - z) * n

    last_ref[...] = jnp.concatenate([h_f, h_b], axis=-1).astype(last_ref.dtype)


def _gru_seq_kernel(gi_ref, whh_ref, bhh_ref, y_ref, *, ndir, hidden):
    """GRU recurrence with full per-position output (PyTorch output layout).

    Both directions run interleaved inside ONE invocation (per-step matmuls of
    the two independent chains hide each other's MXU latency on 1-TC chips).
    gi_ref : [T, N, ndir*Gp],  whh_ref: [ndir, H, Gp] bf16, bhh_ref: [ndir,1,Gp]
    y_ref  : [T, N, ndir*H]    y[t] = [h_fwd(t), h_bwd(t)]  (torch convention)
    """
    T, N = gi_ref.shape[0], gi_ref.shape[1]
    H = hidden
    Gp = whh_ref.shape[2]
    whh_f = whh_ref[0]
    bhh_f = bhh_ref[0]
    if ndir == 2:
        whh_b = whh_ref[1]
        bhh_b = bhh_ref[1]

    def step(i, carry):
        h_f, h_b = carry
        gi_f = gi_ref[i][:, 0:Gp]
        gh_f = jnp.dot(h_f.astype(jnp.bfloat16), whh_f,
                       preferred_element_type=jnp.float32) + bhh_f
        h_f_new = _gru_cell(gi_f, gh_f, h_f, H)
        y_ref[i, :, 0:H] = h_f_new.astype(y_ref.dtype)
        if ndir == 2:
            tb = T - 1 - i
            gi_b = gi_ref[tb][:, Gp:2 * Gp]
            gh_b = jnp.dot(h_b.astype(jnp.bfloat16), whh_b,
                           preferred_element_type=jnp.float32) + bhh_b
            h_b_new = _gru_cell(gi_b, gh_b, h_b, H)
            y_ref[tb, :, H:2 * H] = h_b_new.astype(y_ref.dtype)
        else:
            h_b_new = h_b
        return (h_f_new, h_b_new)

    h0 = jnp.zeros((N, H), jnp.float32)
    jax.lax.fori_loop(0, T, step, (h0, h0), unroll=True)
    # TODO(synk): with H=32 the per-step [N,32] stores are masked (sub-128-lane);
    # a per-gate/packed lane-dense layout would remove them but is not needed
    # at these shapes.


# ----------------------------- Pallas wrappers -----------------------------

def matmul_bias(x2d, w_t, b, *, row_block=512):
    """x2d: [N, K]; w_t: [K, Do] (already x@W layout); b: [Do].
    Row-tiled ("parallel" grid) when N is large; single block otherwise."""
    N, K = x2d.shape
    Do = w_t.shape[1]
    wb = w_t.astype(jnp.bfloat16)
    b2 = b.reshape(1, Do).astype(jnp.float32)
    if N > row_block and N % row_block == 0:
        return pl.pallas_call(
            _proj_kernel,
            out_shape=jax.ShapeDtypeStruct((N, Do), jnp.float32),
            grid=(N // row_block,),
            in_specs=[pl.BlockSpec((row_block, K), lambda i: (i, 0)),
                      pl.BlockSpec((K, Do), lambda i: (0, 0)),
                      pl.BlockSpec((1, Do), lambda i: (0, 0))],
            out_specs=pl.BlockSpec((row_block, Do), lambda i: (i, 0)),
            compiler_params=pltpu.CompilerParams(
                dimension_semantics=("parallel",),
                vmem_limit_bytes=32 * 1024 * 1024),
        )(x2d, wb, b2)
    # TODO(synk): ragged N (not a multiple of row_block) falls back to one block.
    return pl.pallas_call(
        _proj_kernel,
        out_shape=jax.ShapeDtypeStruct((N, Do), jnp.float32),
    )(x2d, wb, b2)


def gru_input_proj(x, dir_params, Gp):
    """Hoisted input projection for all timesteps & directions in one matmul.
    x: [T, N, I] -> gi: [T, N, D*Gp] (natural layout, NO transpose/relayout)."""
    T, N, I = x.shape
    D = len(dir_params)
    w = jnp.concatenate([_pad_cols(p["w_ih"].T, Gp) for p in dir_params], axis=1)
    b = jnp.concatenate([_pad_cols(p["b_ih"], Gp) for p in dir_params], axis=0)
    gi = matmul_bias(x.reshape(T * N, I), w, b)
    return gi.reshape(T, N, D * Gp)


def gru_hidden_params(dir_params, Gp):
    whh = jnp.stack([_pad_cols(p["w_hh"].T, Gp) for p in dir_params], axis=0)
    bhh = jnp.stack([_pad_cols(p["b_hh"], Gp).reshape(1, Gp) for p in dir_params],
                    axis=0)
    return whh.astype(jnp.bfloat16), bhh.astype(jnp.float32)


def gru_last(gi, whh, bhh, H):
    T, N, _ = gi.shape
    return pl.pallas_call(
        functools.partial(_bigru_last_kernel, hidden=H),
        out_shape=jax.ShapeDtypeStruct((N, 2 * H), jnp.float32),
    )(gi, whh, bhh)


def gru_seq(gi, whh, bhh, H, ndir):
    T, N, _ = gi.shape
    return pl.pallas_call(
        functools.partial(_gru_seq_kernel, ndir=ndir, hidden=H),
        out_shape=jax.ShapeDtypeStruct((T, N, ndir * H), jnp.float32),
    )(gi, whh, bhh)


# ----------------------------- parameters -----------------------------

def _init_gru_dir(key, in_dim, hid, scale=0.1):
    ks = jax.random.split(key, 4)
    # TODO(synk): torch uses init.orthogonal_ on l0 GRU weights; deterministic
    # gaussian init is used here (forward semantics do not depend on init).
    return dict(
        w_ih=jax.random.normal(ks[0], (3 * hid, in_dim), jnp.float32) * scale,
        w_hh=jax.random.normal(ks[1], (3 * hid, hid), jnp.float32) * scale,
        b_ih=jax.random.normal(ks[2], (3 * hid,), jnp.float32) * scale,
        b_hh=jax.random.normal(ks[3], (3 * hid,), jnp.float32) * scale,
    )


def _init_bigru(key, in_dim, hid):
    kf, kb = jax.random.split(key)
    return (_init_gru_dir(kf, in_dim, hid), _init_gru_dir(kb, in_dim, hid))


def _init_linear(key, din, dout, scale=0.1):
    kw, kb = jax.random.split(key)
    return (jax.random.normal(kw, (dout, din), jnp.float32) * scale,
            jax.random.normal(kb, (dout,), jnp.float32) * scale)


def _init_ln(dim):
    return (jnp.ones((dim,), jnp.float32), jnp.zeros((dim,), jnp.float32))


def init_params(key, num_embeddings, embedding_dim, hidden_size, output_size):
    ks = jax.random.split(key, 8)
    H = hidden_size
    return dict(
        embedding=jax.random.normal(ks[0], (num_embeddings, embedding_dim),
                                    jnp.float32),
        # SentenceEncoder
        sen_gru=_init_bigru(ks[1], embedding_dim, H),
        sen_ln=_init_ln(2 * H),
        sen_lin=_init_linear(ks[2], 2 * H, H),
        # Encoder
        enc_lin=_init_linear(ks[3], H, H),
        enc_gru_F=_init_gru_dir(ks[4], H, H),
        enc_ln_F=_init_ln(H),
        enc_lin_new=_init_linear(ks[5], 2 * H, H),
        enc_gru=_init_bigru(ks[6], H, H),
        enc_ln=_init_ln(2 * H),
        # Final classifier
        final_lin=_init_linear(ks[7], 2 * H, output_size),
    )


# ----------------------------- forward pass -----------------------------

def sequence_taggle_forward(params, tokens):
    """tokens: [num_sentences, sent_len, batch] int32 (time-major per sentence).
    Returns (logits [S, B, output_size], hidden [2, B, hidden]).
    Dropout layers are eval-mode (identity)."""
    S, L, B = tokens.shape
    H = params["sen_lin"][0].shape[0]            # static (weight shape), jit-safe
    E = params["embedding"].shape[1]
    O = params["final_lin"][0].shape[0]
    Gp = _round_up(3 * H, 128)

    # --- SentenceEncoder: all S sentences batched into ONE bi-GRU call ---
    # Transpose the (cheap) int tokens, not the embedded floats.
    tok = tokens.transpose(1, 0, 2).reshape(L * S * B)
    emb = jnp.take(params["embedding"], tok, axis=0).reshape(L, S * B, E)
    gi = gru_input_proj(emb, params["sen_gru"], Gp)          # [L, S*B, 2*Gp]
    whh_s, bhh_s = gru_hidden_params(params["sen_gru"], Gp)
    # Only output[-1] is consumed downstream (torch: cell = cell[-1]); for the
    # backward direction that is its hidden after processing just x[L-1].
    last = gru_last(gi, whh_s, bhh_s, H)                      # [S*B, 2H]

    # --- sen.LN + sen.linear folded with enc.linear(+tanh); also emits gru_F's
    #     input projection in the same kernel ---
    w_sen, b_sen = params["sen_lin"]            # [H, 2H], [H]
    w_enc, b_enc = params["enc_lin"]            # [H, H],  [H]
    Wo = w_sen.T @ w_enc.T                      # [2H, H]
    bo = b_sen @ w_enc.T + b_enc                # [H]
    wF = _pad_cols(params["enc_gru_F"]["w_ih"].T, Gp)         # [H, Gp]
    bF = _pad_cols(params["enc_gru_F"]["b_ih"], Gp)           # [Gp]
    gamma_s, beta_s = params["sen_ln"]
    o, giF = pl.pallas_call(
        _sen2enc_kernel,
        out_shape=(jax.ShapeDtypeStruct((S * B, H), jnp.float32),
                   jax.ShapeDtypeStruct((S * B, Gp), jnp.float32)),
    )(last, gamma_s.reshape(1, 2 * H), beta_s.reshape(1, 2 * H),
      Wo.astype(jnp.bfloat16), bo.reshape(1, H),
      wF.astype(jnp.bfloat16), bF.reshape(1, Gp))

    # --- Encoder: unidirectional gru_F recurrence over sentences ---
    whh_F, bhh_F = gru_hidden_params((params["enc_gru_F"],), Gp)
    g = gru_seq(giF.reshape(S, B, Gp), whh_F, bhh_F, H, ndir=1)    # [S, B, H]

    # --- LN_F + dropout(id) + concat + linear_new folded into the bi-GRU's
    #     input projection (weights folded at trace time) ---
    w_new, b_new = params["enc_lin_new"]        # [H, 2H], [H]
    Ag = w_new[:, :H].T                         # applies to LN_F(g)
    Ao = w_new[:, H:].T                         # applies to o
    Wih2 = jnp.concatenate([_pad_cols(p["w_ih"].T, Gp) for p in params["enc_gru"]],
                           axis=1)              # [H, 2*Gp]
    bih2 = jnp.concatenate([_pad_cols(p["b_ih"], Gp) for p in params["enc_gru"]],
                           axis=0)              # [2*Gp]
    Pg = Ag @ Wih2
    Po = Ao @ Wih2
    pb = b_new @ Wih2 + bih2
    gammaF, betaF = params["enc_ln_F"]
    gi2 = pl.pallas_call(
        _enc_mix_proj_kernel,
        out_shape=jax.ShapeDtypeStruct((S * B, 2 * Gp), jnp.float32),
    )(g.reshape(S * B, H), o, gammaF.reshape(1, H), betaF.reshape(1, H),
      Pg.astype(jnp.bfloat16), Po.astype(jnp.bfloat16), pb.reshape(1, 2 * Gp))

    # --- Encoder bidirectional GRU ---
    whh2, bhh2 = gru_hidden_params(params["enc_gru"], Gp)
    y2 = gru_seq(gi2.reshape(S, B, 2 * Gp), whh2, bhh2, H, ndir=2)  # [S, B, 2H]
    hidden = jnp.stack([y2[S - 1, :, :H], y2[0, :, H:]], axis=0)    # [2, B, H]

    # --- enc.LN + dropout(id) + final linear, padded to a lane-dense 128 slab ---
    w_fin, b_fin = params["final_lin"]          # [O, 2H], [O]
    Op = _round_up(O, 128)
    Wf = _pad_cols(w_fin.T, Op)                 # [2H, Op]
    bf = _pad_cols(b_fin, Op)                   # [Op]
    gamma_e, beta_e = params["enc_ln"]
    logits_pad = pl.pallas_call(
        _ln_linear_kernel,
        out_shape=jax.ShapeDtypeStruct((S * B, Op), jnp.float32),
    )(y2.reshape(S * B, 2 * H), gamma_e.reshape(1, 2 * H), beta_e.reshape(1, 2 * H),
      Wf.astype(jnp.bfloat16), bf.reshape(1, Op))
    logits = logits_pad[:, :O].reshape(S, B, O)
    return logits, hidden


# ----------------------------- demo -----------------------------

if __name__ == "__main__":
    num_embeddings = 50
    embedding_dim = 32
    hidden_size = 32
    output_size = 5
    num_sentences = 3
    sent_len = 8
    batch = 4

    key = jax.random.PRNGKey(0)
    k_param, k_tok = jax.random.split(key)
    params = init_params(k_param, num_embeddings, embedding_dim, hidden_size,
                         output_size)
    tokens = jax.random.randint(k_tok, (num_sentences, sent_len, batch),
                                0, num_embeddings, dtype=jnp.int32)

    fwd = jax.jit(sequence_taggle_forward)
    logits, hidden = fwd(params, tokens)
    jax.block_until_ready((logits, hidden))

    assert logits.shape == (num_sentences, batch, output_size), logits.shape
    assert hidden.shape == (2, batch, hidden_size), hidden.shape
    assert bool(jnp.all(jnp.isfinite(logits))) and bool(jnp.all(jnp.isfinite(hidden)))
    print("KERNEL_OK")
</pallas_src>

<mosaic_0001>
module attributes {stable_mosaic.version = 11 : i64} {
  func.func @_proj_kernel(%arg0: memref<96x32xf32, #tpu.memory_space<vmem>>, %arg1: memref<32x256xbf16, #tpu.memory_space<vmem>>, %arg2: memref<1x256xf32, #tpu.memory_space<vmem>>, %arg3: memref<96x256xf32, #tpu.memory_space<vmem>>) attributes {dimension_semantics = [], scalar_prefetch = 0 : i64, scratch_operands = 0 : i64, tpu.core_type = #tpu.core_type<tc>} {
    %c0 = arith.constant 0 : index
    %c0_0 = arith.constant 0 : index
    %0 = vector.load %arg0[%c0, %c0_0] : memref<96x32xf32, #tpu.memory_space<vmem>>, vector<96x32xf32>
    %1 = arith.truncf %0 : vector<96x32xf32> to vector<96x32xbf16>
    %c0_1 = arith.constant 0 : index
    %c0_2 = arith.constant 0 : index
    %2 = vector.load %arg1[%c0_1, %c0_2] : memref<32x256xbf16, #tpu.memory_space<vmem>>, vector<32x256xbf16>
    %cst = arith.constant dense<0.000000e+00> : vector<96x256xf32>
    %3 = tpu.matmul %1, %2, %cst {dimension_numbers = #tpu.dot_dimension_numbers<[1], [0], [0], [1], [0, 0, 1, 1], [], []>} : vector<96x32xbf16>, vector<32x256xbf16>, vector<96x256xf32> -> vector<96x256xf32>
    %c0_3 = arith.constant 0 : index
    %c0_4 = arith.constant 0 : index
    %4 = vector.load %arg2[%c0_3, %c0_4] : memref<1x256xf32, #tpu.memory_space<vmem>>, vector<1x256xf32>
    %5 = vector.broadcast %4 : vector<1x256xf32> to vector<96x256xf32>
    %6 = arith.addf %3, %5 : vector<96x256xf32>
    %c0_5 = arith.constant 0 : index
    %c0_6 = arith.constant 0 : index
    %7 = vector.load %arg3[%c0_5, %c0_6] : memref<96x256xf32, #tpu.memory_space<vmem>>, vector<96x256xf32>
    tpu.vector_store %arg3[%c0_5, %c0_6], %6 {strides = array<i32>} : memref<96x256xf32, #tpu.memory_space<vmem>>, vector<96x256xf32>,
    return
  }
}

module attributes {stable_mosaic.version = 11 : i64} {
  func.func @_bigru_last_kernel(%arg0: memref<8x12x256xf32, #tpu.memory_space<vmem>>, %arg1: memref<2x32x128xbf16, #tpu.memory_space<vmem>>, %arg2: memref<2x1x128xf32, #tpu.memory_space<vmem>>, %arg3: memref<12x64xf32, #tpu.memory_space<vmem>>) attributes {dimension_semantics = [], scalar_prefetch = 0 : i64, scratch_operands = 0 : i64, tpu.core_type = #tpu.core_type<tc>} {
    %c0 = arith.constant 0 : index
    %c0_0 = arith.constant 0 : index
    %c0_1 = arith.constant 0 : index
    %0 = vector.load %arg1[%c0, %c0_0, %c0_1] : memref<2x32x128xbf16, #tpu.memory_space<vmem>>, vector<1x32x128xbf16>
    %1 = vector.shape_cast %0 : vector<1x32x128xbf16> to vector<32x128xbf16>
    %c0_2 = arith.constant 0 : index
    %c0_3 = arith.constant 0 : index
    %c0_4 = arith.constant 0 : index
    %2 = vector.load %arg2[%c0_2, %c0_3, %c0_4] : memref<2x1x128xf32, #tpu.memory_space<vmem>>, vector<1x1x128xf32>
    %3 = vector.shape_cast %2 : vector<1x1x128xf32> to vector<1x128xf32>
    %cst = arith.constant 0.000000e+00 : f32
    %4 = vector.broadcast %cst : f32 to vector<12x32xf32>
    %c0_i32 = arith.constant 0 : i32
    %5 = arith.index_cast %c0_i32 : i32 to index
    %c0_5 = arith.constant 0 : index
    %c0_6 = arith.constant 0 : index
    %6 = vector.load %arg0[%5, %c0_5, %c0_6] : memref<8x12x256xf32, #tpu.memory_space<vmem>>, vector<1x12x256xf32>
    %7 = vector.shape_cast %6 : vector<1x12x256xf32> to vector<12x256xf32>
    %8 = vector.extract_strided_slice %7 {offsets = [0, 0], sizes = [12, 128], strides = [1, 1]} : vector<12x256xf32> to vector<12x128xf32>
    %9 = arith.truncf %4 : vector<12x32xf32> to vector<12x32xbf16>
    %cst_7 = arith.constant dense<0.000000e+00> : vector<12x128xf32>
    %10 = tpu.matmul %9, %1, %cst_7 {dimension_numbers = #tpu.dot_dimension_numbers<[1], [0], [0], [1], [0, 0, 1, 1], [], []>} : vector<12x32xbf16>, vector<32x128xbf16>, vector<12x128xf32> -> vector<12x128xf32>
    %11 = vector.broadcast %3 : vector<1x128xf32> to vector<12x128xf32>
    %12 = arith.addf %10, %11 : vector<12x128xf32>
    %13 = vector.extract_strided_slice %8 {offsets = [0, 0], sizes = [12, 32], strides = [1, 1]} : vector<12x128xf32> to vector<12x32xf32>
    %14 = vector.extract_strided_slice %12 {offsets = [0, 0], sizes = [12, 32], strides = [1, 1]} : vector<12x128xf32> to vector<12x32xf32>
    %15 = arith.addf %13, %14 : vector<12x32xf32>
    %16 = arith.negf %15 : vector<12x32xf32>
    %17 = math.exp %16 : vector<12x32xf32>
    %cst_8 = arith.constant 1.000000e+00 : f32
    %18 = vector.broadcast %cst_8 : f32 to vector<12x32xf32>
    %19 = arith.addf %18, %17 : vector<12x32xf32>
    %20 = arith.divf %18, %19 : vector<12x32xf32>
    %21 = vector.extract_strided_slice %8 {offsets = [0, 32], sizes = [12, 32], strides = [1, 1]} : vector<12x128xf32> to vector<12x32xf32>
    %22 = vector.extract_strided_slice %12 {offsets = [0, 32], sizes = [12, 32], strides = [1, 1]} : vector<12x128xf32> to vector<12x32xf32>
    %23 = arith.addf %21, %22 : vector<12x32xf32>
    %24 = arith.negf %23 : vector<12x32xf32>
    %25 = math.exp %24 : vector<12x32xf32>
    %cst_9 = arith.constant 1.000000e+00 : f32
    %26 = vector.broadcast %cst_9 : f32 to vector<12x32xf32>
    %27 = arith.addf %26, %25 : vector<12x32xf32>
    %28 = arith.divf %26, %27 : vector<12x32xf32>
    %29 = vector.extract_strided_slice %8 {offsets = [0, 64], sizes = [12, 32], strides = [1, 1]} : vector<12x128xf32> to vector<12x32xf32>
    %30 = vector.extract_strided_slice %12 {offsets = [0, 64], sizes = [12, 32], strides = [1, 1]} : vector<12x128xf32> to vector<12x32xf32>
    %31 = arith.mulf %20, %30 : vector<12x32xf32>
    %32 = arith.addf %29, %31 : vector<12x32xf32>
    %33 = math.tanh %32 : vector<12x32xf32>
    %cst_10 = arith.constant 1.000000e+00 : f32
    %34 = vector.broadcast %cst_10 : f32 to vector<12x32xf32>
    %35 = arith.subf %34, %28 : vector<12x32xf32>
    %36 = arith.mulf %35, %33 : vector<12x32xf32>
    %37 = arith.mulf %28, %4 : vector<12x32xf32>
    %38 = arith.addf %36, %37 : vector<12x32xf32>
    %c1_i32 = arith.constant 1 : i32
    %39 = arith.index_cast %c1_i32 : i32 to index
    %c0_11 = arith.constant 0 : index
    %c0_12 = arith.constant 0 : index
    %40 = vector.load %arg0[%39, %c0_11, %c0_12] : memref<8x12x256xf32, #tpu.memory_space<vmem>>, vector<1x12x256xf32>
    %41 = vector.shape_cast %40 : vector<1x12x256xf32> to vector<12x256xf32>
    %42 = vector.extract_strided_slice %41 {offsets = [0, 0], sizes = [12, 128], strides = [1, 1]} : vector<12x256xf32> to vector<12x128xf32>
    %43 = arith.truncf %38 : vector<12x32xf32> to vector<12x32xbf16>
    %cst_13 = arith.constant dense<0.000000e+00> : vector<12x128xf32>
    %44 = tpu.matmul %43, %1, %cst_13 {dimension_numbers = #tpu.dot_dimension_numbers<[1], [0], [0], [1], [0, 0, 1, 1], [], []>} : vector<12x32xbf16>, vector<32x128xbf16>, vector<12x128xf32> -> vector<12x128xf32>
    %45 = vector.broadcast %3 : vector<1x128xf32> to vector<12x128xf32>
    %46 = arith.addf %44, %45 : vector<12x128xf32>
    %47 = vector.extract_strided_slice %42 {offsets = [0, 0], sizes = [12, 32], strides = [1, 1]} : vector<12x128xf32> to vector<12x32xf32>
    %48 = vector.extract_strided_slice %46 {offsets = [0, 0], sizes = [12, 32], strides = [1, 1]} : vector<12x128xf32> to vector<12x32xf32>
    %49 = arith.addf %47, %48 : vector<12x32xf32>
    %50 = arith.negf %49 : vector<12x32xf32>
    %51 = math.exp %50 : vector<12x32xf32>
    %cst_14 = arith.constant 1.000000e+00 : f32
    %52 = vector.broadcast %cst_14 : f32 to vector<12x32xf32>
    %53 = arith.addf %52, %51 : vector<12x32xf32>
    %54 = arith.divf %52, %53 : vector<12x32xf32>
    %55 = vector.extract_strided_slice %42 {offsets = [0, 32], sizes = [12, 32], strides = [1, 1]} : vector<12x128xf32> to vector<12x32xf32>
    %56 = vector.extract_strided_slice %46 {offsets = [0, 32], sizes = [12, 32], strides = [1, 1]} : vector<12x128xf32> to vector<12x32xf32>
    %57 = arith.addf %55, %56 : vector<12x32xf32>
    %58 = arith.negf %57 : vector<12x32xf32>
    %59 = math.exp %58 : vector<12x32xf32>
    %cst_15 = arith.constant 1.000000e+00 : f32
    %60 = vector.broadcast %cst_15 : f32 to vector<12x32xf32>
    %61 = arith.addf %60, %59 : vector<12x32xf32>
    %62 = arith.divf %60, %61 : vector<12x32xf32>
    %63 = vector.extract_strided_slice %42 {offsets = [0, 64], sizes = [12, 32], strides = [1, 1]} : vector<12x128xf32> to vector<12x32xf32>
    %64 = vector.extract_strided_slice %46 {offsets = [0, 64], sizes = [12, 32], strides = [1, 1]} : vector<12x128xf32> to vector<12x32xf32>
    %65 = arith.mulf %54, %64 : vector<12x32xf32>
    %66 = arith.addf %63, %65 : vector<12x32xf32>
    %67 = math.tanh %66 : vector<12x32xf32>
    %cst_16 = arith.constant 1.000000e+00 : f32
    %68 = vector.broadcast %cst_16 : f32 to vector<12x32xf32>
    %69 = arith.subf %68, %62 : vector<12x32xf32>
    %70 = arith.mulf %69, %67 : vector<12x32xf32>
    %71 = arith.mulf %62, %38 : vector<12x32xf32>
    %72 = arith.addf %70, %71 : vector<12x32xf32>
    %c2_i32 = arith.constant 2 : i32
    %73 = arith.index_cast %c2_i32 : i32 to index
    %c0_17 = arith.constant 0 : index
    %c0_18 = arith.constant 0 : index
    %74 = vector.load %arg0[%73, %c0_17, %c0_18] : memref<8x12x256xf32, #tpu.memory_space<vmem>>, vector<1x12x256xf32>
    %75 = vector.shape_cast %74 : vector<1x12x256xf32> to vector<12x256xf32>
    %76 = vector.extract_strided_slice %75 {offsets = [0, 0], sizes = [12, 128], strides = [1, 1]} : vector<12x256xf32> to vector<12x128xf32>
    %77 = arith.truncf %72 : vector<12x32xf32> to vector<12x32xbf16>
    %cst_19 = arith.constant dense<0.000000e+00> : vector<12x128xf32>
    %78 = tpu.matmul %77, %1, %cst_19 {dimension_numbers = #tpu.dot_dimension_numbers<[1], [0], [0], [1], [0, 0, 1, 1], [], []>} : vector<12x32xbf16>, vector<32x128xbf16>, vector<12x128xf32> -> vector<12x128xf32>
    %79 = vector.broadcast %3 : vector<1x128xf32> to vector<12x128xf32>
    %80 = arith.addf %78, %79 : vector<12x128xf32>
    %81 = vector.extract_strided_slice %76 {offsets = [0, 0], sizes = [12, 32], strides = [1, 1]} : vector<12x128xf32> to vector<12x32xf32>
    %82 = vector.extract_strided_slice %80 {offsets = [0, 0], sizes = [12, 32], strides = [1, 1]} : vector<12x128xf32> to vector<12x32xf32>
    %83 = arith.addf %81, %82 : vector<12x32xf32>
    %84 = arith.negf %83 : vector<12x32xf32>
    %85 = math.exp %84 : vector<12x32xf32>
    %cst_20 = arith.constant 1.000000e+00 : f32
    %86 = vector.broadcast %cst_20 : f32 to vector<12x32xf32>
    %87 = arith.addf %86, %85 : vector<12x32xf32>
    %88 = arith.divf %86, %87 : vector<12x32xf32>
    %89 = vector.extract_strided_slice %76 {offsets = [0, 32], sizes = [12, 32], strides = [1, 1]} : vector<12x128xf32> to vector<12x32xf32>
    %90 = vector.extract_strided_slice %80 {offsets = [0, 32], sizes = [12, 32], strides = [1, 1]} : vector<12x128xf32> to vector<12x32xf32>
    %91 = arith.addf %89, %90 : vector<12x32xf32>
    %92 = arith.negf %91 : vector<12x32xf32>
    %93 = math.exp %92 : vector<12x32xf32>
    %cst_21 = arith.constant 1.000000e+00 : f32
    %94 = vector.broadcast %cst_21 : f32 to vector<12x32xf32>
    %95 = arith.addf %94, %93 : vector<12x32xf32>
    %96 = arith.divf %94, %95 : vector<12x32xf32>
    %97 = vector.extract_strided_slice %76 {offsets = [0, 64], sizes = [12, 32], strides = [1, 1]} : vector<12x128xf32> to vector<12x32xf32>
    %98 = vector.extract_strided_slice %80 {offsets = [0, 64], sizes = [12, 32], strides = [1, 1]} : vector<12x128xf32> to vector<12x32xf32>
    %99 = arith.mulf %88, %98 : vector<12x32xf32>
    %100 = arith.addf %97, %99 : vector<12x32xf32>
    %101 = math.tanh %100 : vector<12x32xf32>
    %cst_22 = arith.constant 1.000000e+00 : f32
    %102 = vector.broadcast %cst_22 : f32 to vector<12x32xf32>
    %103 = arith.subf %102, %96 : vector<12x32xf32>
    %104 = arith.mulf %103, %101 : vector<12x32xf32>
    %105 = arith.mulf %96, %72 : vector<12x32xf32>
    %106 = arith.addf %104, %105 : vector<12x32xf32>
    %c3_i32 = arith.constant 3 : i32
    %107 = arith.index_cast %c3_i32 : i32 to index
    %c0_23 = arith.constant 0 : index
    %c0_24 = arith.constant 0 : index
    %108 = vector.load %arg0[%107, %c0_23, %c0_24] : memref<8x12x256xf32, #tpu.memory_space<vmem>>, vector<1x12x256xf32>
    %109 = vector.shape_cast %108 : vector<1x12x256xf32> to vector<12x256xf32>
    %110 = vector.extract_strided_slice %109 {offsets = [0, 0], sizes = [12, 128], strides = [1, 1]} : vector<12x256xf32> to vector<12x128xf32>
    %111 = arith.truncf %106 : vector<12x32xf32> to vector<12x32xbf16>
    %cst_25 = arith.constant dense<0.000000e+00> : vector<12x128xf32>
    %112 = tpu.matmul %111, %1, %cst_25 {dimension_numbers = #tpu.dot_dimension_numbers<[1], [0], [0], [1], [0, 0, 1, 1], [], []>} : vector<12x32xbf16>, vector<32x128xbf16>, vector<12x128xf32> -> vector<12x128xf32>
    %113 = vector.broadcast %3 : vector<1x128xf32> to vector<12x128xf32>
    %114 = arith.addf %112, %113 : vector<12x128xf32>
    %115 = vector.extract_strided_slice %110 {offsets = [0, 0], sizes = [12, 32], strides = [1, 1]} : vector<12x128xf32> to vector<12x32xf32>
    %116 = vector.extract_strided_slice %114 {offsets = [0, 0], sizes = [12, 32], strides = [1, 1]} : vector<12x128xf32> to vector<12x32xf32>
    %117 = arith.addf %115, %116 : vector<12x32xf32>
    %118 = arith.negf %117 : vector<12x32xf32>
    %119 = math.exp %118 : vector<12x32xf32>
    %cst_26 = arith.constant 1.000000e+00 : f32
    %120 = vector.broadcast %cst_26 : f32 to vector<12x32xf32>
    %121 = arith.addf %120, %119 : vector<12x32xf32>
    %122 = arith.divf %120, %121 : vector<12x32xf32>
    %123 = vector.extract_strided_slice %110 {offsets = [0, 32], sizes = [12, 32], strides = [1, 1]} : vector<12x128xf32> to vector<12x32xf32>
    %124 = vector.extract_strided_slice %114 {offsets = [0, 32], sizes = [12, 32], strides = [1, 1]} : vector<12x128xf32> to vector<12x32xf32>
    %125 = arith.addf %123, %124 : vector<12x32xf32>
    %126 = arith.negf %125 : vector<12x32xf32>
    %127 = math.exp %126 : vector<12x32xf32>
    %cst_27 = arith.constant 1.000000e+00 : f32
    %128 = vector.broadcast %cst_27 : f32 to vector<12x32xf32>
    %129 = arith.addf %128, %127 : vector<12x32xf32>
    %130 = arith.divf %128, %129 : vector<12x32xf32>
    %131 = vector.extract_strided_slice %110 {offsets = [0, 64], sizes = [12, 32], strides = [1, 1]} : vector<12x128xf32> to vector<12x32xf32>
    %132 = vector.extract_strided_slice %114 {offsets = [0, 64], sizes = [12, 32], strides = [1, 1]} : vector<12x128xf32> to vector<12x32xf32>
    %133 = arith.mulf %122, %132 : vector<12x32xf32>
    %134 = arith.addf %131, %133 : vector<12x32xf32>
    %135 = math.tanh %134 : vector<12x32xf32>
    %cst_28 = arith.constant 1.000000e+00 : f32
    %136 = vector.broadcast %cst_28 : f32 to vector<12x32xf32>
    %137 = arith.subf %136, %130 : vector<12x32xf32>
    %138 = arith.mulf %137, %135 : vector<12x32xf32>
    %139 = arith.mulf %130, %106 : vector<12x32xf32>
    %140 = arith.addf %138, %139 : vector<12x32xf32>
    %c4_i32 = arith.constant 4 : i32
    %141 = arith.index_cast %c4_i32 : i32 to index
    %c0_29 = arith.constant 0 : index
    %c0_30 = arith.constant 0 : index
    %142 = vector.load %arg0[%141, %c0_29, %c0_30] : memref<8x12x256xf32, #tpu.memory_space<vmem>>, vector<1x12x256xf32>
    %143 = vector.shape_cast %142 : vector<1x12x256xf32> to vector<12x256xf32>
    %144 = vector.extract_strided_slice %143 {offsets = [0, 0], sizes = [12, 128], strides = [1, 1]} : vector<12x256xf32> to vector<12x128xf32>
    %145 = arith.truncf %140 : vector<12x32xf32> to vector<12x32xbf16>
    %cst_31 = arith.constant dense<0.000000e+00> : vector<12x128xf32>
    %146 = tpu.matmul %145, %1, %cst_31 {dimension_numbers = #tpu.dot_dimension_numbers<[1], [0], [0], [1], [0, 0, 1, 1], [], []>} : vector<12x32xbf16>, vector<32x128xbf16>, vector<12x128xf32> -> vector<12x128xf32>
    %147 = vector.broadcast %3 : vector<1x128xf32> to vector<12x128xf32>
    %148 = arith.addf %146, %147 : vector<12x128xf32>
    %149 = vector.extract_strided_slice %144 {offsets = [0, 0], sizes = [12, 32], strides = [1, 1]} : vector<12x128xf32> to vector<12x32xf32>
    %150 = vector.extract_strided_slice %148 {offsets = [0, 0], sizes = [12, 32], strides = [1, 1]} : vector<12x128xf32> to vector<12x32xf32>
    %151 = arith.addf %149, %150 : vector<12x32xf32>
    %152 = arith.negf %151 : vector<12x32xf32>
    %153 = math.exp %152 : vector<12x32xf32>
    %cst_32 = arith.constant 1.000000e+00 : f32
    %154 = vector.broadcast %cst_32 : f32 to vector<12x32xf32>
    %155 = arith.addf %154, %153 : vector<12x32xf32>
    %156 = arith.divf %154, %155 : vector<12x32xf32>
    %157 = vector.extract_strided_slice %144 {offsets = [0, 32], sizes = [12, 32], strides = [1, 1]} : vector<12x128xf32> to vector<12x32xf32>
    %158 = vector.extract_strided_slice %148 {offsets = [0, 32], sizes = [12, 32], strides = [1, 1]} : vector<12x128xf32> to vector<12x32xf32>
    %159 = arith.addf %157, %158 : vector<12x32xf32>
    %160 = arith.negf %159 : vector<12x32xf32>
    %161 = math.exp %160 : vector<12x32xf32>
    %cst_33 = arith.constant 1.000000e+00 : f32
    %162 = vector.broadcast %cst_33 : f32 to vector<12x32xf32>
    %163 = arith.addf %162, %161 : vector<12x32xf32>
    %164 = arith.divf %162, %163 : vector<12x32xf32>
    %165 = vector.extract_strided_slice %144 {offsets = [0, 64], sizes = [12, 32], strides = [1, 1]} : vector<12x128xf32> to vector<12x32xf32>
    %166 = vector.extract_strided_slice %148 {offsets = [0, 64], sizes = [12, 32], strides = [1, 1]} : vector<12x128xf32> to vector<12x32xf32>
    %167 = arith.mulf %156, %166 : vector<12x32xf32>
    %168 = arith.addf %165, %167 : vector<12x32xf32>
    %169 = math.tanh %168 : vector<12x32xf32>
    %cst_34 = arith.constant 1.000000e+00 : f32
    %170 = vector.broadcast %cst_34 : f32 to vector<12x32xf32>
    %171 = arith.subf %170, %164 : vector<12x32xf32>
    %172 = arith.mulf %171, %169 : vector<12x32xf32>
    %173 = arith.mulf %164, %140 : vector<12x32xf32>
    %174 = arith.addf %172, %173 : vector<12x32xf32>
    %c5_i32 = arith.constant 5 : i32
    %175 = arith.index_cast %c5_i32 : i32 to index
    %c0_35 = arith.constant 0 : index
    %c0_36 = arith.constant 0 : index
    %176 = vector.load %arg0[%175, %c0_35, %c0_36] : memref<8x12x256xf32, #tpu.memory_space<vmem>>, vector<1x12x256xf32>
    %177 = vector.shape_cast %176 : vector<1x12x256xf32> to vector<12x256xf32>
    %178 = vector.extract_strided_slice %177 {offsets = [0, 0], sizes = [12, 128], strides = [1, 1]} : vector<12x256xf32> to vector<12x128xf32>
    %179 = arith.truncf %174 : vector<12x32xf32> to vector<12x32xbf16>
    %cst_37 = arith.constant dense<0.000000e+00> : vector<12x128xf32>
    %180 = tpu.matmul %179, %1, %cst_37 {dimension_numbers = #tpu.dot_dimension_numbers<[1], [0], [0], [1], [0, 0, 1, 1], [], []>} : vector<12x32xbf16>, vector<32x128xbf16>, vector<12x128xf32> -> vector<12x128xf32>
    %181 = vector.broadcast %3 : vector<1x128xf32> to vector<12x128xf32>
    %182 = arith.addf %180, %181 : vector<12x128xf32>
    %183 = vector.extract_strided_slice %178 {offsets = [0, 0], sizes = [12, 32], strides = [1, 1]} : vector<12x128xf32> to vector<12x32xf32>
    %184 = vector.extract_strided_slice %182 {offsets = [0, 0], sizes = [12, 32], strides = [1, 1]} : vector<12x128xf32> to vector<12x32xf32>
    %185 = arith.addf %183, %184 : vector<12x32xf32>
    %186 = arith.negf %185 : vector<12x32xf32>
    %187 = math.exp %186 : vector<12x32xf32>
    %cst_38 = arith.constant 1.000000e+00 : f32
    %188 = vector.broadcast %cst_38 : f32 to vector<12x32xf32>
    %189 = arith.addf %188, %187 : vector<12x32xf32>
    %190 = arith.divf %188, %189 : vector<12x32xf32>
    %191 = vector.extract_strided_slice %178 {offsets = [0, 32], sizes = [12, 32], strides = [1, 1]} : vector<12x128xf32> to vector<12x32xf32>
    %192 = vector.extract_strided_slice %182 {offsets = [0, 32], sizes = [12, 32], strides = [1, 1]} : vector<12x128xf32> to vector<12x32xf32>
    %193 = arith.addf %191, %192 : vector<12x32xf32>
    %194 = arith.negf %193 : vector<12x32xf32>
    %195 = math.exp %194 : vector<12x32xf32>
    %cst_39 = arith.constant 1.000000e+00 : f32
    %196 = vector.broadcast %cst_39 : f32 to vector<12x32xf32>
    %197 = arith.addf %196, %195 : vector<12x32xf32>
    %198 = arith.divf %196, %197 : vector<12x32xf32>
    %199 = vector.extract_strided_slice %178 {offsets = [0, 64], sizes = [12, 32], strides = [1, 1]} : vector<12x128xf32> to vector<12x32xf32>
    %200 = vector.extract_strided_slice %182 {offsets = [0, 64], sizes = [12, 32], strides = [1, 1]} : vector<12x128xf32> to vector<12x32xf32>
    %201 = arith.mulf %190, %200 : vector<12x32xf32>
    %202 = arith.addf %199, %201 : vector<12x32xf32>
    %203 = math.tanh %202 : vector<12x32xf32>
    %cst_40 = arith.constant 1.000000e+00 : f32
    %204 = vector.broadcast %cst_40 : f32 to vector<12x32xf32>
    %205 = arith.subf %204, %198 : vector<12x32xf32>
    %206 = arith.mulf %205, %203 : vector<12x32xf32>
    %207 = arith.mulf %198, %174 : vector<12x32xf32>
    %208 = arith.addf %206, %207 : vector<12x32xf32>
    %c6_i32 = arith.constant 6 : i32
    %209 = arith.index_cast %c6_i32 : i32 to index
    %c0_41 = arith.constant 0 : index
    %c0_42 = arith.constant 0 : index
    %210 = vector.load %arg0[%209, %c0_41, %c0_42] : memref<8x12x256xf32, #tpu.memory_space<vmem>>, vector<1x12x256xf32>
    %211 = vector.shape_cast %210 : vector<1x12x256xf32> to vector<12x256xf32>
    %212 = vector.extract_strided_slice %211 {offsets = [0, 0], sizes = [12, 128], strides = [1, 1]} : vector<12x256xf32> to vector<12x128xf32>
    %213 = arith.truncf %208 : vector<12x32xf32> to vector<12x32xbf16>
    %cst_43 = arith.constant dense<0.000000e+00> : vector<12x128xf32>
    %214 = tpu.matmul %213, %1, %cst_43 {dimension_numbers = #tpu.dot_dimension_numbers<[1], [0], [0], [1], [0, 0, 1, 1], [], []>} : vector<12x32xbf16>, vector<32x128xbf16>, vector<12x128xf32> -> vector<12x128xf32>
    %215 = vector.broadcast %3 : vector<1x128xf32> to vector<12x128xf32>
    %216 = arith.addf %214, %215 : vector<12x128xf32>
    %217 = vector.extract_strided_slice %212 {offsets = [0, 0], sizes = [12, 32], strides = [1, 1]} : vector<12x128xf32> to vector<12x32xf32>
    %218 = vector.extract_strided_slice %216 {offsets = [0, 0], sizes = [12, 32], strides = [1, 1]} : vector<12x128xf32> to vector<12x32xf32>
    %219 = arith.addf %217, %218 : vector<12x32xf32>
    %220 = arith.negf %219 : vector<12x32xf32>
    %221 = math.exp %220 : vector<12x32xf32>
    %cst_44 = arith.constant 1.000000e+00 : f32
    %222 = vector.broadcast %cst_44 : f32 to vector<12x32xf32>
    %223 = arith.addf %222, %221 : vector<12x32xf32>
    %224 = arith.divf %222, %223 : vector<12x32xf32>
    %225 = vector.extract_strided_slice %212 {offsets = [0, 32], sizes = [12, 32], strides = [1, 1]} : vector<12x128xf32> to vector<12x32xf32>
    %226 = vector.extract_strided_slice %216 {offsets = [0, 32], sizes = [12, 32], strides = [1, 1]} : vector<12x128xf32> to vector<12x32xf32>
    %227 = arith.addf %225, %226 : vector<12x32xf32>
    %228 = arith.negf %227 : vector<12x32xf32>
    %229 = math.exp %228 : vector<12x32xf32>
    %cst_45 = arith.constant 1.000000e+00 : f32
    %230 = vector.broadcast %cst_45 : f32 to vector<12x32xf32>
    %231 = arith.addf %230, %229 : vector<12x32xf32>
    %232 = arith.divf %230, %231 : vector<12x32xf32>
    %233 = vector.extract_strided_slice %212 {offsets = [0, 64], sizes = [12, 32], strides = [1, 1]} : vector<12x128xf32> to vector<12x32xf32>
    %234 = vector.extract_strided_slice %216 {offsets = [0, 64], sizes = [12, 32], strides = [1, 1]} : vector<12x128xf32> to vector<12x32xf32>
    %235 = arith.mulf %224, %234 : vector<12x32xf32>
    %236 = arith.addf %233, %235 : vector<12x32xf32>
    %237 = math.tanh %236 : vector<12x32xf32>
    %cst_46 = arith.constant 1.000000e+00 : f32
    %238 = vector.broadcast %cst_46 : f32 to vector<12x32xf32>
    %239 = arith.subf %238, %232 : vector<12x32xf32>
    %240 = arith.mulf %239, %237 : vector<12x32xf32>
    %241 = arith.mulf %232, %208 : vector<12x32xf32>
    %242 = arith.addf %240, %241 : vector<12x32xf32>
    %c7_i32 = arith.constant 7 : i32
    %243 = arith.index_cast %c7_i32 : i32 to index
    %c0_47 = arith.constant 0 : index
    %c0_48 = arith.constant 0 : index
    %244 = vector.load %arg0[%243, %c0_47, %c0_48] : memref<8x12x256xf32, #tpu.memory_space<vmem>>, vector<1x12x256xf32>
    %245 = vector.shape_cast %244 : vector<1x12x256xf32> to vector<12x256xf32>
    %246 = vector.extract_strided_slice %245 {offsets = [0, 0], sizes = [12, 128], strides = [1, 1]} : vector<12x256xf32> to vector<12x128xf32>
    %247 = arith.truncf %242 : vector<12x32xf32> to vector<12x32xbf16>
    %cst_49 = arith.constant dense<0.000000e+00> : vector<12x128xf32>
    %248 = tpu.matmul %247, %1, %cst_49 {dimension_numbers = #tpu.dot_dimension_numbers<[1], [0], [0], [1], [0, 0, 1, 1], [], []>} : vector<12x32xbf16>, vector<32x128xbf16>, vector<12x128xf32> -> vector<12x128xf32>
    %249 = vector.broadcast %3 : vector<1x128xf32> to vector<12x128xf32>
    %250 = arith.addf %248, %249 : vector<12x128xf32>
    %251 = vector.extract_strided_slice %246 {offsets = [0, 0], sizes = [12, 32], strides = [1, 1]} : vector<12x128xf32> to vector<12x32xf32>
    %252 = vector.extract_strided_slice %250 {offsets = [0, 0], sizes = [12, 32], strides = [1, 1]} : vector<12x128xf32> to vector<12x32xf32>
    %253 = arith.addf %251, %252 : vector<12x32xf32>
    %254 = arith.negf %253 : vector<12x32xf32>
    %255 = math.exp %254 : vector<12x32xf32>
    %cst_50 = arith.constant 1.000000e+00 : f32
    %256 = vector.broadcast %cst_50 : f32 to vector<12x32xf32>
    %257 = arith.addf %256, %255 : vector<12x32xf32>
    %258 = arith.divf %256, %257 : vector<12x32xf32>
    %259 = vector.extract_strided_slice %246 {offsets = [0, 32], sizes = [12, 32], strides = [1, 1]} : vector<12x128xf32> to vector<12x32xf32>
    %260 = vector.extract_strided_slice %250 {offsets = [0, 32], sizes = [12, 32], strides = [1, 1]} : vector<12x128xf32> to vector<12x32xf32>
    %261 = arith.addf %259, %260 : vector<12x32xf32>
    %262 = arith.negf %261 : vector<12x32xf32>
    %263 = math.exp %262 : vector<12x32xf32>
    %cst_51 = arith.constant 1.000000e+00 : f32
    %264 = vector.broadcast %cst_51 : f32 to vector<12x32xf32>
    %265 = arith.addf %264, %263 : vector<12x32xf32>
    %266 = arith.divf %264, %265 : vector<12x32xf32>
    %267 = vector.extract_strided_slice %246 {offsets = [0, 64], sizes = [12, 32], strides = [1, 1]} : vector<12x128xf32> to vector<12x32xf32>
    %268 = vector.extract_strided_slice %250 {offsets = [0, 64], sizes = [12, 32], strides = [1, 1]} : vector<12x128xf32> to vector<12x32xf32>
    %269 = arith.mulf %258, %268 : vector<12x32xf32>
    %270 = arith.addf %267, %269 : vector<12x32xf32>
    %271 = math.tanh %270 : vector<12x32xf32>
    %cst_52 = arith.constant 1.000000e+00 : f32
    %272 = vector.broadcast %cst_52 : f32 to vector<12x32xf32>
    %273 = arith.subf %272, %266 : vector<12x32xf32>
    %274 = arith.mulf %273, %271 : vector<12x32xf32>
    %275 = arith.mulf %266, %242 : vector<12x32xf32>
    %276 = arith.addf %274, %275 : vector<12x32xf32>
    %c8_i32 = arith.constant 8 : i32
    %c7 = arith.constant 7 : index
    %c0_53 = arith.constant 0 : index
    %c0_54 = arith.constant 0 : index
    %277 = vector.load %arg0[%c7, %c0_53, %c0_54] : memref<8x12x256xf32, #tpu.memory_space<vmem>>, vector<1x12x256xf32>
    %278 = vector.shape_cast %277 : vector<1x12x256xf32> to vector<12x256xf32>
    %279 = vector.extract_strided_slice %278 {offsets = [0, 128], sizes = [12, 128], strides = [1, 1]} : vector<12x256xf32> to vector<12x128xf32>
    %c1 = arith.constant 1 : index
    %c0_55 = arith.constant 0 : index
    %c0_56 = arith.constant 0 : index
    %280 = vector.load %arg2[%c1, %c0_55, %c0_56] : memref<2x1x128xf32, #tpu.memory_space<vmem>>, vector<1x1x128xf32>
    %281 = vector.shape_cast %280 : vector<1x1x128xf32> to vector<1x128xf32>
    %282 = vector.extract_strided_slice %279 {offsets = [0, 0], sizes = [12, 32], strides = [1, 1]} : vector<12x128xf32> to vector<12x32xf32>
    %283 = vector.extract_strided_slice %281 {offsets = [0, 0], sizes = [1, 32], strides = [1, 1]} : vector<1x128xf32> to vector<1x32xf32>
    %284 = vector.broadcast %283 : vector<1x32xf32> to vector<12x32xf32>
    %285 = arith.addf %282, %284 : vector<12x32xf32>
    %286 = arith.negf %285 : vector<12x32xf32>
    %287 = math.exp %286 : vector<12x32xf32>
    %cst_57 = arith.constant 1.000000e+00 : f32
    %288 = vector.broadcast %cst_57 : f32 to vector<12x32xf32>
    %289 = arith.addf %288, %287 : vector<12x32xf32>
    %290 = arith.divf %288, %289 : vector<12x32xf32>
    %291 = vector.extract_strided_slice %279 {offsets = [0, 32], sizes = [12, 32], strides = [1, 1]} : vector<12x128xf32> to vector<12x32xf32>
    %292 = vector.extract_strided_slice %281 {offsets = [0, 32], sizes = [1, 32], strides = [1, 1]} : vector<1x128xf32> to vector<1x32xf32>
    %293 = vector.broadcast %292 : vector<1x32xf32> to vector<12x32xf32>
    %294 = arith.addf %291, %293 : vector<12x32xf32>
    %295 = arith.negf %294 : vector<12x32xf32>
    %296 = math.exp %295 : vector<12x32xf32>
    %cst_58 = arith.constant 1.000000e+00 : f32
    %297 = vector.broadcast %cst_58 : f32 to vector<12x32xf32>
    %298 = arith.addf %297, %296 : vector<12x32xf32>
    %299 = arith.divf %297, %298 : vector<12x32xf32>
    %300 = vector.extract_strided_slice %279 {offsets = [0, 64], sizes = [12, 32], strides = [1, 1]} : vector<12x128xf32> to vector<12x32xf32>
    %301 = vector.extract_strided_slice %281 {offsets = [0, 64], sizes = [1, 32], strides = [1, 1]} : vector<1x128xf32> to vector<1x32xf32>
    %302 = vector.broadcast %301 : vector<1x32xf32> to vector<12x32xf32>
    %303 = arith.mulf %290, %302 : vector<12x32xf32>
    %304 = arith.addf %300, %303 : vector<12x32xf32>
    %305 = math.tanh %304 : vector<12x32xf32>
    %cst_59 = arith.constant 1.000000e+00 : f32
    %306 = vector.broadcast %cst_59 : f32 to vector<12x32xf32>
    %307 = arith.subf %306, %299 : vector<12x32xf32>
    %308 = arith.mulf %307, %305 : vector<12x32xf32>
    %309 = tpu.concatenate %276, %308 in 1 : vector<12x32xf32>, vector<12x32xf32> -> vector<12x64xf32>
    %c0_60 = arith.constant 0 : index
    %c0_61 = arith.constant 0 : index
    %310 = vector.load %arg3[%c0_60, %c0_61] : memref<12x64xf32, #tpu.memory_space<vmem>>, vector<12x64xf32>
    tpu.vector_store %arg3[%c0_60, %c0_61], %309 {strides = array<i32>} : memref<12x64xf32, #tpu.memory_space<vmem>>, vector<12x64xf32>,
    return
  }
}

module attributes {stable_mosaic.version = 11 : i64} {
  func.func @_sen2enc_kernel(%arg0: memref<12x64xf32, #tpu.memory_space<vmem>>, %arg1: memref<1x64xf32, #tpu.memory_space<vmem>>, %arg2: memref<1x64xf32, #tpu.memory_space<vmem>>, %arg3: memref<64x32xbf16, #tpu.memory_space<vmem>>, %arg4: memref<1x32xf32, #tpu.memory_space<vmem>>, %arg5: memref<32x128xbf16, #tpu.memory_space<vmem>>, %arg6: memref<1x128xf32, #tpu.memory_space<vmem>>, %arg7: memref<12x32xf32, #tpu.memory_space<vmem>>, %arg8: memref<12x128xf32, #tpu.memory_space<vmem>>) attributes {dimension_semantics = [], scalar_prefetch = 0 : i64, scratch_operands = 0 : i64, tpu.core_type = #tpu.core_type<tc>} {
    %c0 = arith.constant 0 : index
    %c0_0 = arith.constant 0 : index
    %0 = vector.load %arg0[%c0, %c0_0] : memref<12x64xf32, #tpu.memory_space<vmem>>, vector<12x64xf32>
    %cst = arith.constant dense<0.000000e+00> : vector<12xf32>
    %1 = vector.multi_reduction <add>, %0, %cst [1] : vector<12x64xf32> to vector<12xf32>
    %2 = vector.shape_cast %1 : vector<12xf32> to vector<12x1xf32>
    %cst_1 = arith.constant 6.400000e+01 : f32
    %3 = vector.broadcast %cst_1 : f32 to vector<12x1xf32>
    %4 = arith.divf %2, %3 : vector<12x1xf32>
    %5 = vector.broadcast %4 : vector<12x1xf32> to vector<12x64xf32>
    %6 = arith.subf %0, %5 : vector<12x64xf32>
    %7 = arith.mulf %6, %6 : vector<12x64xf32>
    %cst_2 = arith.constant dense<0.000000e+00> : vector<12xf32>
    %8 = vector.multi_reduction <add>, %7, %cst_2 [1] : vector<12x64xf32> to vector<12xf32>
    %9 = vector.shape_cast %8 : vector<12xf32> to vector<12x1xf32>
    %cst_3 = arith.constant 6.400000e+01 : f32
    %10 = vector.broadcast %cst_3 : f32 to vector<12x1xf32>
    %11 = arith.divf %9, %10 : vector<12x1xf32>
    %cst_4 = arith.constant 9.99999974E-6 : f32
    %12 = vector.broadcast %cst_4 : f32 to vector<12x1xf32>
    %13 = arith.addf %11, %12 : vector<12x1xf32>
    %14 = math.rsqrt %13 : vector<12x1xf32>
    %15 = vector.broadcast %14 : vector<12x1xf32> to vector<12x64xf32>
    %16 = arith.mulf %6, %15 : vector<12x64xf32>
    %c0_5 = arith.constant 0 : index
    %c0_6 = arith.constant 0 : index
    %17 = vector.load %arg1[%c0_5, %c0_6] : memref<1x64xf32, #tpu.memory_space<vmem>>, vector<1x64xf32>
    %18 = vector.broadcast %17 : vector<1x64xf32> to vector<12x64xf32>
    %19 = arith.mulf %16, %18 : vector<12x64xf32>
    %c0_7 = arith.constant 0 : index
    %c0_8 = arith.constant 0 : index
    %20 = vector.load %arg2[%c0_7, %c0_8] : memref<1x64xf32, #tpu.memory_space<vmem>>, vector<1x64xf32>
    %21 = vector.broadcast %20 : vector<1x64xf32> to vector<12x64xf32>
    %22 = arith.addf %19, %21 : vector<12x64xf32>
    %23 = arith.truncf %22 : vector<12x64xf32> to vector<12x64xbf16>
    %c0_9 = arith.constant 0 : index
    %c0_10 = arith.constant 0 : index
    %24 = vector.load %arg3[%c0_9, %c0_10] : memref<64x32xbf16, #tpu.memory_space<vmem>>, vector<64x32xbf16>
    %cst_11 = arith.constant dense<0.000000e+00> : vector<12x32xf32>
    %25 = tpu.matmul %23, %24, %cst_11 {dimension_numbers = #tpu.dot_dimension_numbers<[1], [0], [0], [1], [0, 0, 1, 1], [], []>} : vector<12x64xbf16>, vector<64x32xbf16>, vector<12x32xf32> -> vector<12x32xf32>
    %c0_12 = arith.constant 0 : index
    %c0_13 = arith.constant 0 : index
    %26 = vector.load %arg4[%c0_12, %c0_13] : memref<1x32xf32, #tpu.memory_space<vmem>>, vector<1x32xf32>
    %27 = vector.broadcast %26 : vector<1x32xf32> to vector<12x32xf32>
    %28 = arith.addf %25, %27 : vector<12x32xf32>
    %29 = math.tanh %28 : vector<12x32xf32>
    %c0_14 = arith.constant 0 : index
    %c0_15 = arith.constant 0 : index
    %30 = vector.load %arg7[%c0_14, %c0_15] : memref<12x32xf32, #tpu.memory_space<vmem>>, vector<12x32xf32>
    tpu.vector_store %arg7[%c0_14, %c0_15], %29 {strides = array<i32>} : memref<12x32xf32, #tpu.memory_space<vmem>>, vector<12x32xf32>,
    %31 = arith.truncf %29 : vector<12x32xf32> to vector<12x32xbf16>
    %c0_16 = arith.constant 0 : index
    %c0_17 = arith.constant 0 : index
    %32 = vector.load %arg5[%c0_16, %c0_17] : memref<32x128xbf16, #tpu.memory_space<vmem>>, vector<32x128xbf16>
    %cst_18 = arith.constant dense<0.000000e+00> : vector<12x128xf32>
    %33 = tpu.matmul %31, %32, %cst_18 {dimension_numbers = #tpu.dot_dimension_numbers<[1], [0], [0], [1], [0, 0, 1, 1], [], []>} : vector<12x32xbf16>, vector<32x128xbf16>, vector<12x128xf32> -> vector<12x128xf32>
    %c0_19 = arith.constant 0 : index
    %c0_20 = arith.constant 0 : index
    %34 = vector.load %arg6[%c0_19, %c0_20] : memref<1x128xf32, #tpu.memory_space<vmem>>, vector<1x128xf32>
    %35 = vector.broadcast %34 : vector<1x128xf32> to vector<12x128xf32>
    %36 = arith.addf %33, %35 : vector<12x128xf32>
    %c0_21 = arith.constant 0 : index
    %c0_22 = arith.constant 0 : index
    %37 = vector.load %arg8[%c0_21, %c0_22] : memref<12x128xf32, #tpu.memory_space<vmem>>, vector<12x128xf32>
    tpu.vector_store %arg8[%c0_21, %c0_22], %36 {strides = array<i32>} : memref<12x128xf32, #tpu.memory_space<vmem>>, vector<12x128xf32>,
    return
  }
}

module attributes {stable_mosaic.version = 11 : i64} {
  func.func @_gru_seq_kernel(%arg0: memref<3x4x128xf32, #tpu.memory_space<vmem>>, %arg1: memref<1x32x128xbf16, #tpu.memory_space<vmem>>, %arg2: memref<1x1x128xf32, #tpu.memory_space<vmem>>, %arg3: memref<3x4x32xf32, #tpu.memory_space<vmem>>) attributes {dimension_semantics = [], scalar_prefetch = 0 : i64, scratch_operands = 0 : i64, tpu.core_type = #tpu.core_type<tc>} {
    %c0 = arith.constant 0 : index
    %c0_0 = arith.constant 0 : index
    %c0_1 = arith.constant 0 : index
    %0 = vector.load %arg1[%c0, %c0_0, %c0_1] : memref<1x32x128xbf16, #tpu.memory_space<vmem>>, vector<1x32x128xbf16>
    %1 = vector.shape_cast %0 : vector<1x32x128xbf16> to vector<32x128xbf16>
    %c0_2 = arith.constant 0 : index
    %c0_3 = arith.constant 0 : index
    %c0_4 = arith.constant 0 : index
    %2 = vector.load %arg2[%c0_2, %c0_3, %c0_4] : memref<1x1x128xf32, #tpu.memory_space<vmem>>, vector<1x1x128xf32>
    %3 = vector.shape_cast %2 : vector<1x1x128xf32> to vector<1x128xf32>
    %cst = arith.constant 0.000000e+00 : f32
    %4 = vector.broadcast %cst : f32 to vector<4x32xf32>
    %c0_i32 = arith.constant 0 : i32
    %5 = arith.index_cast %c0_i32 : i32 to index
    %c0_5 = arith.constant 0 : index
    %c0_6 = arith.constant 0 : index
    %6 = vector.load %arg0[%5, %c0_5, %c0_6] : memref<3x4x128xf32, #tpu.memory_space<vmem>>, vector<1x4x128xf32>
    %7 = vector.shape_cast %6 : vector<1x4x128xf32> to vector<4x128xf32>
    %8 = arith.truncf %4 : vector<4x32xf32> to vector<4x32xbf16>
    %cst_7 = arith.constant dense<0.000000e+00> : vector<4x128xf32>
    %9 = tpu.matmul %8, %1, %cst_7 {dimension_numbers = #tpu.dot_dimension_numbers<[1], [0], [0], [1], [0, 0, 1, 1], [], []>} : vector<4x32xbf16>, vector<32x128xbf16>, vector<4x128xf32> -> vector<4x128xf32>
    %10 = vector.broadcast %3 : vector<1x128xf32> to vector<4x128xf32>
    %11 = arith.addf %9, %10 : vector<4x128xf32>
    %12 = vector.extract_strided_slice %7 {offsets = [0, 0], sizes = [4, 32], strides = [1, 1]} : vector<4x128xf32> to vector<4x32xf32>
    %13 = vector.extract_strided_slice %11 {offsets = [0, 0], sizes = [4, 32], strides = [1, 1]} : vector<4x128xf32> to vector<4x32xf32>
    %14 = arith.addf %12, %13 : vector<4x32xf32>
    %15 = arith.negf %14 : vector<4x32xf32>
    %16 = math.exp %15 : vector<4x32xf32>
    %cst_8 = arith.constant 1.000000e+00 : f32
    %17 = vector.broadcast %cst_8 : f32 to vector<4x32xf32>
    %18 = arith.addf %17, %16 : vector<4x32xf32>
    %19 = arith.divf %17, %18 : vector<4x32xf32>
    %20 = vector.extract_strided_slice %7 {offsets = [0, 32], sizes = [4, 32], strides = [1, 1]} : vector<4x128xf32> to vector<4x32xf32>
    %21 = vector.extract_strided_slice %11 {offsets = [0, 32], sizes = [4, 32], strides = [1, 1]} : vector<4x128xf32> to vector<4x32xf32>
    %22 = arith.addf %20, %21 : vector<4x32xf32>
    %23 = arith.negf %22 : vector<4x32xf32>
    %24 = math.exp %23 : vector<4x32xf32>
    %cst_9 = arith.constant 1.000000e+00 : f32
    %25 = vector.broadcast %cst_9 : f32 to vector<4x32xf32>
    %26 = arith.addf %25, %24 : vector<4x32xf32>
    %27 = arith.divf %25, %26 : vector<4x32xf32>
    %28 = vector.extract_strided_slice %7 {offsets = [0, 64], sizes = [4, 32], strides = [1, 1]} : vector<4x128xf32> to vector<4x32xf32>
    %29 = vector.extract_strided_slice %11 {offsets = [0, 64], sizes = [4, 32], strides = [1, 1]} : vector<4x128xf32> to vector<4x32xf32>
    %30 = arith.mulf %19, %29 : vector<4x32xf32>
    %31 = arith.addf %28, %30 : vector<4x32xf32>
    %32 = math.tanh %31 : vector<4x32xf32>
    %cst_10 = arith.constant 1.000000e+00 : f32
    %33 = vector.broadcast %cst_10 : f32 to vector<4x32xf32>
    %34 = arith.subf %33, %27 : vector<4x32xf32>
    %35 = arith.mulf %34, %32 : vector<4x32xf32>
    %36 = arith.mulf %27, %4 : vector<4x32xf32>
    %37 = arith.addf %35, %36 : vector<4x32xf32>
    %38 = arith.index_cast %c0_i32 : i32 to index
    %c0_11 = arith.constant 0 : index
    %c0_12 = arith.constant 0 : index
    %39 = vector.load %arg3[%38, %c0_11, %c0_12] : memref<3x4x32xf32, #tpu.memory_space<vmem>>, vector<1x4x32xf32>
    %40 = vector.shape_cast %39 : vector<1x4x32xf32> to vector<4x32xf32>
    %41 = vector.shape_cast %37 : vector<4x32xf32> to vector<1x4x32xf32>
    tpu.vector_store %arg3[%38, %c0_11, %c0_12], %41 {strides = array<i32>} : memref<3x4x32xf32, #tpu.memory_space<vmem>>, vector<1x4x32xf32>,
    %c1_i32 = arith.constant 1 : i32
    %42 = arith.index_cast %c1_i32 : i32 to index
    %c0_13 = arith.constant 0 : index
    %c0_14 = arith.constant 0 : index
    %43 = vector.load %arg0[%42, %c0_13, %c0_14] : memref<3x4x128xf32, #tpu.memory_space<vmem>>, vector<1x4x128xf32>
    %44 = vector.shape_cast %43 : vector<1x4x128xf32> to vector<4x128xf32>
    %45 = arith.truncf %37 : vector<4x32xf32> to vector<4x32xbf16>
    %cst_15 = arith.constant dense<0.000000e+00> : vector<4x128xf32>
    %46 = tpu.matmul %45, %1, %cst_15 {dimension_numbers = #tpu.dot_dimension_numbers<[1], [0], [0], [1], [0, 0, 1, 1], [], []>} : vector<4x32xbf16>, vector<32x128xbf16>, vector<4x128xf32> -> vector<4x128xf32>
    %47 = vector.broadcast %3 : vector<1x128xf32> to vector<4x128xf32>
    %48 = arith.addf %46, %47 : vector<4x128xf32>
    %49 = vector.extract_strided_slice %44 {offsets = [0, 0], sizes = [4, 32], strides = [1, 1]} : vector<4x128xf32> to vector<4x32xf32>
    %50 = vector.extract_strided_slice %48 {offsets = [0, 0], sizes = [4, 32], strides = [1, 1]} : vector<4x128xf32> to vector<4x32xf32>
    %51 = arith.addf %49, %50 : vector<4x32xf32>
    %52 = arith.negf %51 : vector<4x32xf32>
    %53 = math.exp %52 : vector<4x32xf32>
    %cst_16 = arith.constant 1.000000e+00 : f32
    %54 = vector.broadcast %cst_16 : f32 to vector<4x32xf32>
    %55 = arith.addf %54, %53 : vector<4x32xf32>
    %56 = arith.divf %54, %55 : vector<4x32xf32>
    %57 = vector.extract_strided_slice %44 {offsets = [0, 32], sizes = [4, 32], strides = [1, 1]} : vector<4x128xf32> to vector<4x32xf32>
    %58 = vector.extract_strided_slice %48 {offsets = [0, 32], sizes = [4, 32], strides = [1, 1]} : vector<4x128xf32> to vector<4x32xf32>
    %59 = arith.addf %57, %58 : vector<4x32xf32>
    %60 = arith.negf %59 : vector<4x32xf32>
    %61 = math.exp %60 : vector<4x32xf32>
    %cst_17 = arith.constant 1.000000e+00 : f32
    %62 = vector.broadcast %cst_17 : f32 to vector<4x32xf32>
    %63 = arith.addf %62, %61 : vector<4x32xf32>
    %64 = arith.divf %62, %63 : vector<4x32xf32>
    %65 = vector.extract_strided_slice %44 {offsets = [0, 64], sizes = [4, 32], strides = [1, 1]} : vector<4x128xf32> to vector<4x32xf32>
    %66 = vector.extract_strided_slice %48 {offsets = [0, 64], sizes = [4, 32], strides = [1, 1]} : vector<4x128xf32> to vector<4x32xf32>
    %67 = arith.mulf %56, %66 : vector<4x32xf32>
    %68 = arith.addf %65, %67 : vector<4x32xf32>
    %69 = math.tanh %68 : vector<4x32xf32>
    %cst_18 = arith.constant 1.000000e+00 : f32
    %70 = vector.broadcast %cst_18 : f32 to vector<4x32xf32>
    %71 = arith.subf %70, %64 : vector<4x32xf32>
    %72 = arith.mulf %71, %69 : vector<4x32xf32>
    %73 = arith.mulf %64, %37 : vector<4x32xf32>
    %74 = arith.addf %72, %73 : vector<4x32xf32>
    %75 = arith.index_cast %c1_i32 : i32 to index
    %c0_19 = arith.constant 0 : index
    %c0_20 = arith.constant 0 : index
    %76 = vector.load %arg3[%75, %c0_19, %c0_20] : memref<3x4x32xf32, #tpu.memory_space<vmem>>, vector<1x4x32xf32>
    %77 = vector.shape_cast %76 : vector<1x4x32xf32> to vector<4x32xf32>
    %78 = vector.shape_cast %74 : vector<4x32xf32> to vector<1x4x32xf32>
    tpu.vector_store %arg3[%75, %c0_19, %c0_20], %78 {strides = array<i32>} : memref<3x4x32xf32, #tpu.memory_space<vmem>>, vector<1x4x32xf32>,
    %c2_i32 = arith.constant 2 : i32
    %79 = arith.index_cast %c2_i32 : i32 to index
    %c0_21 = arith.constant 0 : index
    %c0_22 = arith.constant 0 : index
    %80 = vector.load %arg0[%79, %c0_21, %c0_22] : memref<3x4x128xf32, #tpu.memory_space<vmem>>, vector<1x4x128xf32>
    %81 = vector.shape_cast %80 : vector<1x4x128xf32> to vector<4x128xf32>
    %82 = arith.truncf %74 : vector<4x32xf32> to vector<4x32xbf16>
    %cst_23 = arith.constant dense<0.000000e+00> : vector<4x128xf32>
    %83 = tpu.matmul %82, %1, %cst_23 {dimension_numbers = #tpu.dot_dimension_numbers<[1], [0], [0], [1], [0, 0, 1, 1], [], []>} : vector<4x32xbf16>, vector<32x128xbf16>, vector<4x128xf32> -> vector<4x128xf32>
    %84 = vector.broadcast %3 : vector<1x128xf32> to vector<4x128xf32>
    %85 = arith.addf %83, %84 : vector<4x128xf32>
    %86 = vector.extract_strided_slice %81 {offsets = [0, 0], sizes = [4, 32], strides = [1, 1]} : vector<4x128xf32> to vector<4x32xf32>
    %87 = vector.extract_strided_slice %85 {offsets = [0, 0], sizes = [4, 32], strides = [1, 1]} : vector<4x128xf32> to vector<4x32xf32>
    %88 = arith.addf %86, %87 : vector<4x32xf32>
    %89 = arith.negf %88 : vector<4x32xf32>
    %90 = math.exp %89 : vector<4x32xf32>
    %cst_24 = arith.constant 1.000000e+00 : f32
    %91 = vector.broadcast %cst_24 : f32 to vector<4x32xf32>
    %92 = arith.addf %91, %90 : vector<4x32xf32>
    %93 = arith.divf %91, %92 : vector<4x32xf32>
    %94 = vector.extract_strided_slice %81 {offsets = [0, 32], sizes = [4, 32], strides = [1, 1]} : vector<4x128xf32> to vector<4x32xf32>
    %95 = vector.extract_strided_slice %85 {offsets = [0, 32], sizes = [4, 32], strides = [1, 1]} : vector<4x128xf32> to vector<4x32xf32>
    %96 = arith.addf %94, %95 : vector<4x32xf32>
    %97 = arith.negf %96 : vector<4x32xf32>
    %98 = math.exp %97 : vector<4x32xf32>
    %cst_25 = arith.constant 1.000000e+00 : f32
    %99 = vector.broadcast %cst_25 : f32 to vector<4x32xf32>
    %100 = arith.addf %99, %98 : vector<4x32xf32>
    %101 = arith.divf %99, %100 : vector<4x32xf32>
    %102 = vector.extract_strided_slice %81 {offsets = [0, 64], sizes = [4, 32], strides = [1, 1]} : vector<4x128xf32> to vector<4x32xf32>
    %103 = vector.extract_strided_slice %85 {offsets = [0, 64], sizes = [4, 32], strides = [1, 1]} : vector<4x128xf32> to vector<4x32xf32>
    %104 = arith.mulf %93, %103 : vector<4x32xf32>
    %105 = arith.addf %102, %104 : vector<4x32xf32>
    %106 = math.tanh %105 : vector<4x32xf32>
    %cst_26 = arith.constant 1.000000e+00 : f32
    %107 = vector.broadcast %cst_26 : f32 to vector<4x32xf32>
    %108 = arith.subf %107, %101 : vector<4x32xf32>
    %109 = arith.mulf %108, %106 : vector<4x32xf32>
    %110 = arith.mulf %101, %74 : vector<4x32xf32>
    %111 = arith.addf %109, %110 : vector<4x32xf32>
    %112 = arith.index_cast %c2_i32 : i32 to index
    %c0_27 = arith.constant 0 : index
    %c0_28 = arith.constant 0 : index
    %113 = vector.load %arg3[%112, %c0_27, %c0_28] : memref<3x4x32xf32, #tpu.memory_space<vmem>>, vector<1x4x32xf32>
    %114 = vector.shape_cast %113 : vector<1x4x32xf32> to vector<4x32xf32>
    %115 = vector.shape_cast %111 : vector<4x32xf32> to vector<1x4x32xf32>
    tpu.vector_store %arg3[%112, %c0_27, %c0_28], %115 {strides = array<i32>} : memref<3x4x32xf32, #tpu.memory_space<vmem>>, vector<1x4x32xf32>,
    %c3_i32 = arith.constant 3 : i32
    return
  }
}

module attributes {stable_mosaic.version = 11 : i64} {
  func.func @_enc_mix_proj_kernel(%arg0: memref<12x32xf32, #tpu.memory_space<vmem>>, %arg1: memref<12x32xf32, #tpu.memory_space<vmem>>, %arg2: memref<1x32xf32, #tpu.memory_space<vmem>>, %arg3: memref<1x32xf32, #tpu.memory_space<vmem>>, %arg4: memref<32x256xbf16, #tpu.memory_space<vmem>>, %arg5: memref<32x256xbf16, #tpu.memory_space<vmem>>, %arg6: memref<1x256xf32, #tpu.memory_space<vmem>>, %arg7: memref<12x256xf32, #tpu.memory_space<vmem>>) attributes {dimension_semantics = [], scalar_prefetch = 0 : i64, scratch_operands = 0 : i64, tpu.core_type = #tpu.core_type<tc>} {
    %c0 = arith.constant 0 : index
    %c0_0 = arith.constant 0 : index
    %0 = vector.load %arg0[%c0, %c0_0] : memref<12x32xf32, #tpu.memory_space<vmem>>, vector<12x32xf32>
    %cst = arith.constant dense<0.000000e+00> : vector<12xf32>
    %1 = vector.multi_reduction <add>, %0, %cst [1] : vector<12x32xf32> to vector<12xf32>
    %2 = vector.shape_cast %1 : vector<12xf32> to vector<12x1xf32>
    %cst_1 = arith.constant 3.200000e+01 : f32
    %3 = vector.broadcast %cst_1 : f32 to vector<12x1xf32>
    %4 = arith.divf %2, %3 : vector<12x1xf32>
    %5 = vector.broadcast %4 : vector<12x1xf32> to vector<12x32xf32>
    %6 = arith.subf %0, %5 : vector<12x32xf32>
    %7 = arith.mulf %6, %6 : vector<12x32xf32>
    %cst_2 = arith.constant dense<0.000000e+00> : vector<12xf32>
    %8 = vector.multi_reduction <add>, %7, %cst_2 [1] : vector<12x32xf32> to vector<12xf32>
    %9 = vector.shape_cast %8 : vector<12xf32> to vector<12x1xf32>
    %cst_3 = arith.constant 3.200000e+01 : f32
    %10 = vector.broadcast %cst_3 : f32 to vector<12x1xf32>
    %11 = arith.divf %9, %10 : vector<12x1xf32>
    %cst_4 = arith.constant 9.99999974E-6 : f32
    %12 = vector.broadcast %cst_4 : f32 to vector<12x1xf32>
    %13 = arith.addf %11, %12 : vector<12x1xf32>
    %14 = math.rsqrt %13 : vector<12x1xf32>
    %15 = vector.broadcast %14 : vector<12x1xf32> to vector<12x32xf32>
    %16 = arith.mulf %6, %15 : vector<12x32xf32>
    %c0_5 = arith.constant 0 : index
    %c0_6 = arith.constant 0 : index
    %17 = vector.load %arg2[%c0_5, %c0_6] : memref<1x32xf32, #tpu.memory_space<vmem>>, vector<1x32xf32>
    %18 = vector.broadcast %17 : vector<1x32xf32> to vector<12x32xf32>
    %19 = arith.mulf %16, %18 : vector<12x32xf32>
    %c0_7 = arith.constant 0 : index
    %c0_8 = arith.constant 0 : index
    %20 = vector.load %arg3[%c0_7, %c0_8] : memref<1x32xf32, #tpu.memory_space<vmem>>, vector<1x32xf32>
    %21 = vector.broadcast %20 : vector<1x32xf32> to vector<12x32xf32>
    %22 = arith.addf %19, %21 : vector<12x32xf32>
    %23 = arith.truncf %22 : vector<12x32xf32> to vector<12x32xbf16>
    %c0_9 = arith.constant 0 : index
    %c0_10 = arith.constant 0 : index
    %24 = vector.load %arg4[%c0_9, %c0_10] : memref<32x256xbf16, #tpu.memory_space<vmem>>, vector<32x256xbf16>
    %cst_11 = arith.constant dense<0.000000e+00> : vector<12x256xf32>
    %25 = tpu.matmul %23, %24, %cst_11 {dimension_numbers = #tpu.dot_dimension_numbers<[1], [0], [0], [1], [0, 0, 1, 1], [], []>} : vector<12x32xbf16>, vector<32x256xbf16>, vector<12x256xf32> -> vector<12x256xf32>
    %c0_12 = arith.constant 0 : index
    %c0_13 = arith.constant 0 : index
    %26 = vector.load %arg1[%c0_12, %c0_13] : memref<12x32xf32, #tpu.memory_space<vmem>>, vector<12x32xf32>
    %27 = arith.truncf %26 : vector<12x32xf32> to vector<12x32xbf16>
    %c0_14 = arith.constant 0 : index
    %c0_15 = arith.constant 0 : index
    %28 = vector.load %arg5[%c0_14, %c0_15] : memref<32x256xbf16, #tpu.memory_space<vmem>>, vector<32x256xbf16>
    %cst_16 = arith.constant dense<0.000000e+00> : vector<12x256xf32>
    %29 = tpu.matmul %27, %28, %cst_16 {dimension_numbers = #tpu.dot_dimension_numbers<[1], [0], [0], [1], [0, 0, 1, 1], [], []>} : vector<12x32xbf16>, vector<32x256xbf16>, vector<12x256xf32> -> vector<12x256xf32>
    %30 = arith.addf %25, %29 : vector<12x256xf32>
    %c0_17 = arith.constant 0 : index
    %c0_18 = arith.constant 0 : index
    %31 = vector.load %arg6[%c0_17, %c0_18] : memref<1x256xf32, #tpu.memory_space<vmem>>, vector<1x256xf32>
    %32 = vector.broadcast %31 : vector<1x256xf32> to vector<12x256xf32>
    %33 = arith.addf %30, %32 : vector<12x256xf32>
    %c0_19 = arith.constant 0 : index
    %c0_20 = arith.constant 0 : index
    %34 = vector.load %arg7[%c0_19, %c0_20] : memref<12x256xf32, #tpu.memory_space<vmem>>, vector<12x256xf32>
    tpu.vector_store %arg7[%c0_19, %c0_20], %33 {strides = array<i32>} : memref<12x256xf32, #tpu.memory_space<vmem>>, vector<12x256xf32>,
    return
  }
}

module attributes {stable_mosaic.version = 11 : i64} {
  func.func @_gru_seq_kernel(%arg0: memref<3x4x256xf32, #tpu.memory_space<vmem>>, %arg1: memref<2x32x128xbf16, #tpu.memory_space<vmem>>, %arg2: memref<2x1x128xf32, #tpu.memory_space<vmem>>, %arg3: memref<3x4x64xf32, #tpu.memory_space<vmem>>) attributes {dimension_semantics = [], scalar_prefetch = 0 : i64, scratch_operands = 0 : i64, tpu.core_type = #tpu.core_type<tc>} {
    %c0 = arith.constant 0 : index
    %c0_0 = arith.constant 0 : index
    %c0_1 = arith.constant 0 : index
    %0 = vector.load %arg1[%c0, %c0_0, %c0_1] : memref<2x32x128xbf16, #tpu.memory_space<vmem>>, vector<1x32x128xbf16>
    %1 = vector.shape_cast %0 : vector<1x32x128xbf16> to vector<32x128xbf16>
    %c0_2 = arith.constant 0 : index
    %c0_3 = arith.constant 0 : index
    %c0_4 = arith.constant 0 : index
    %2 = vector.load %arg2[%c0_2, %c0_3, %c0_4] : memref<2x1x128xf32, #tpu.memory_space<vmem>>, vector<1x1x128xf32>
    %3 = vector.shape_cast %2 : vector<1x1x128xf32> to vector<1x128xf32>
    %c1 = arith.constant 1 : index
    %c0_5 = arith.constant 0 : index
    %c0_6 = arith.constant 0 : index
    %4 = vector.load %arg1[%c1, %c0_5, %c0_6] : memref<2x32x128xbf16, #tpu.memory_space<vmem>>, vector<1x32x128xbf16>
    %5 = vector.shape_cast %4 : vector<1x32x128xbf16> to vector<32x128xbf16>
    %c1_7 = arith.constant 1 : index
    %c0_8 = arith.constant 0 : index
    %c0_9 = arith.constant 0 : index
    %6 = vector.load %arg2[%c1_7, %c0_8, %c0_9] : memref<2x1x128xf32, #tpu.memory_space<vmem>>, vector<1x1x128xf32>
    %7 = vector.shape_cast %6 : vector<1x1x128xf32> to vector<1x128xf32>
    %cst = arith.constant 0.000000e+00 : f32
    %8 = vector.broadcast %cst : f32 to vector<4x32xf32>
    %c0_i32 = arith.constant 0 : i32
    %9 = arith.index_cast %c0_i32 : i32 to index
    %c0_10 = arith.constant 0 : index
    %c0_11 = arith.constant 0 : index
    %10 = vector.load %arg0[%9, %c0_10, %c0_11] : memref<3x4x256xf32, #tpu.memory_space<vmem>>, vector<1x4x256xf32>
    %11 = vector.shape_cast %10 : vector<1x4x256xf32> to vector<4x256xf32>
    %12 = vector.extract_strided_slice %11 {offsets = [0, 0], sizes = [4, 128], strides = [1, 1]} : vector<4x256xf32> to vector<4x128xf32>
    %13 = arith.truncf %8 : vector<4x32xf32> to vector<4x32xbf16>
    %cst_12 = arith.constant dense<0.000000e+00> : vector<4x128xf32>
    %14 = tpu.matmul %13, %1, %cst_12 {dimension_numbers = #tpu.dot_dimension_numbers<[1], [0], [0], [1], [0, 0, 1, 1], [], []>} : vector<4x32xbf16>, vector<32x128xbf16>, vector<4x128xf32> -> vector<4x128xf32>
    %15 = vector.broadcast %3 : vector<1x128xf32> to vector<4x128xf32>
    %16 = arith.addf %14, %15 : vector<4x128xf32>
    %17 = vector.extract_strided_slice %12 {offsets = [0, 0], sizes = [4, 32], strides = [1, 1]} : vector<4x128xf32> to vector<4x32xf32>
    %18 = vector.extract_strided_slice %16 {offsets = [0, 0], sizes = [4, 32], strides = [1, 1]} : vector<4x128xf32> to vector<4x32xf32>
    %19 = arith.addf %17, %18 : vector<4x32xf32>
    %20 = arith.negf %19 : vector<4x32xf32>
    %21 = math.exp %20 : vector<4x32xf32>
    %cst_13 = arith.constant 1.000000e+00 : f32
    %22 = vector.broadcast %cst_13 : f32 to vector<4x32xf32>
    %23 = arith.addf %22, %21 : vector<4x32xf32>
    %24 = arith.divf %22, %23 : vector<4x32xf32>
    %25 = vector.extract_strided_slice %12 {offsets = [0, 32], sizes = [4, 32], strides = [1, 1]} : vector<4x128xf32> to vector<4x32xf32>
    %26 = vector.extract_strided_slice %16 {offsets = [0, 32], sizes = [4, 32], strides = [1, 1]} : vector<4x128xf32> to vector<4x32xf32>
    %27 = arith.addf %25, %26 : vector<4x32xf32>
    %28 = arith.negf %27 : vector<4x32xf32>
    %29 = math.exp %28 : vector<4x32xf32>
    %cst_14 = arith.constant 1.000000e+00 : f32
    %30 = vector.broadcast %cst_14 : f32 to vector<4x32xf32>
    %31 = arith.addf %30, %29 : vector<4x32xf32>
    %32 = arith.divf %30, %31 : vector<4x32xf32>
    %33 = vector.extract_strided_slice %12 {offsets = [0, 64], sizes = [4, 32], strides = [1, 1]} : vector<4x128xf32> to vector<4x32xf32>
    %34 = vector.extract_strided_slice %16 {offsets = [0, 64], sizes = [4, 32], strides = [1, 1]} : vector<4x128xf32> to vector<4x32xf32>
    %35 = arith.mulf %24, %34 : vector<4x32xf32>
    %36 = arith.addf %33, %35 : vector<4x32xf32>
    %37 = math.tanh %36 : vector<4x32xf32>
    %cst_15 = arith.constant 1.000000e+00 : f32
    %38 = vector.broadcast %cst_15 : f32 to vector<4x32xf32>
    %39 = arith.subf %38, %32 : vector<4x32xf32>
    %40 = arith.mulf %39, %37 : vector<4x32xf32>
    %41 = arith.mulf %32, %8 : vector<4x32xf32>
    %42 = arith.addf %40, %41 : vector<4x32xf32>
    %43 = arith.index_cast %c0_i32 : i32 to index
    %c0_16 = arith.constant 0 : index
    %c0_17 = arith.constant 0 : index
    %44 = vector.load %arg3[%43, %c0_16, %c0_17] : memref<3x4x64xf32, #tpu.memory_space<vmem>>, vector<1x4x32xf32>
    %45 = vector.shape_cast %44 : vector<1x4x32xf32> to vector<4x32xf32>
    %46 = vector.shape_cast %42 : vector<4x32xf32> to vector<1x4x32xf32>
    tpu.vector_store %arg3[%43, %c0_16, %c0_17], %46 {strides = array<i32>} : memref<3x4x64xf32, #tpu.memory_space<vmem>>, vector<1x4x32xf32>,
    %c2_i32 = arith.constant 2 : i32
    %47 = arith.subi %c2_i32, %c0_i32 : i32
    %48 = arith.index_cast %47 : i32 to index
    %c0_18 = arith.constant 0 : index
    %c0_19 = arith.constant 0 : index
    %49 = vector.load %arg0[%48, %c0_18, %c0_19] : memref<3x4x256xf32, #tpu.memory_space<vmem>>, vector<1x4x256xf32>
    %50 = vector.shape_cast %49 : vector<1x4x256xf32> to vector<4x256xf32>
    %51 = vector.extract_strided_slice %50 {offsets = [0, 128], sizes = [4, 128], strides = [1, 1]} : vector<4x256xf32> to vector<4x128xf32>
    %52 = arith.truncf %8 : vector<4x32xf32> to vector<4x32xbf16>
    %cst_20 = arith.constant dense<0.000000e+00> : vector<4x128xf32>
    %53 = tpu.matmul %52, %5, %cst_20 {dimension_numbers = #tpu.dot_dimension_numbers<[1], [0], [0], [1], [0, 0, 1, 1], [], []>} : vector<4x32xbf16>, vector<32x128xbf16>, vector<4x128xf32> -> vector<4x128xf32>
    %54 = vector.broadcast %7 : vector<1x128xf32> to vector<4x128xf32>
    %55 = arith.addf %53, %54 : vector<4x128xf32>
    %56 = vector.extract_strided_slice %51 {offsets = [0, 0], sizes = [4, 32], strides = [1, 1]} : vector<4x128xf32> to vector<4x32xf32>
    %57 = vector.extract_strided_slice %55 {offsets = [0, 0], sizes = [4, 32], strides = [1, 1]} : vector<4x128xf32> to vector<4x32xf32>
    %58 = arith.addf %56, %57 : vector<4x32xf32>
    %59 = arith.negf %58 : vector<4x32xf32>
    %60 = math.exp %59 : vector<4x32xf32>
    %cst_21 = arith.constant 1.000000e+00 : f32
    %61 = vector.broadcast %cst_21 : f32 to vector<4x32xf32>
    %62 = arith.addf %61, %60 : vector<4x32xf32>
    %63 = arith.divf %61, %62 : vector<4x32xf32>
    %64 = vector.extract_strided_slice %51 {offsets = [0, 32], sizes = [4, 32], strides = [1, 1]} : vector<4x128xf32> to vector<4x32xf32>
    %65 = vector.extract_strided_slice %55 {offsets = [0, 32], sizes = [4, 32], strides = [1, 1]} : vector<4x128xf32> to vector<4x32xf32>
    %66 = arith.addf %64, %65 : vector<4x32xf32>
    %67 = arith.negf %66 : vector<4x32xf32>
    %68 = math.exp %67 : vector<4x32xf32>
    %cst_22 = arith.constant 1.000000e+00 : f32
    %69 = vector.broadcast %cst_22 : f32 to vector<4x32xf32>
    %70 = arith.addf %69, %68 : vector<4x32xf32>
    %71 = arith.divf %69, %70 : vector<4x32xf32>
    %72 = vector.extract_strided_slice %51 {offsets = [0, 64], sizes = [4, 32], strides = [1, 1]} : vector<4x128xf32> to vector<4x32xf32>
    %73 = vector.extract_strided_slice %55 {offsets = [0, 64], sizes = [4, 32], strides = [1, 1]} : vector<4x128xf32> to vector<4x32xf32>
    %74 = arith.mulf %63, %73 : vector<4x32xf32>
    %75 = arith.addf %72, %74 : vector<4x32xf32>
    %76 = math.tanh %75 : vector<4x32xf32>
    %cst_23 = arith.constant 1.000000e+00 : f32
    %77 = vector.broadcast %cst_23 : f32 to vector<4x32xf32>
    %78 = arith.subf %77, %71 : vector<4x32xf32>
    %79 = arith.mulf %78, %76 : vector<4x32xf32>
    %80 = arith.mulf %71, %8 : vector<4x32xf32>
    %81 = arith.addf %79, %80 : vector<4x32xf32>
    %82 = arith.index_cast %47 : i32 to index
    %c0_24 = arith.constant 0 : index
    %c32 = arith.constant 32 : index
    %83 = vector.load %arg3[%82, %c0_24, %c32] : memref<3x4x64xf32, #tpu.memory_space<vmem>>, vector<1x4x32xf32>
    %84 = vector.shape_cast %83 : vector<1x4x32xf32> to vector<4x32xf32>
    %85 = vector.shape_cast %81 : vector<4x32xf32> to vector<1x4x32xf32>
    tpu.vector_store %arg3[%82, %c0_24, %c32], %85 {strides = array<i32>} : memref<3x4x64xf32, #tpu.memory_space<vmem>>, vector<1x4x32xf32>,
    %c1_i32 = arith.constant 1 : i32
    %86 = arith.index_cast %c1_i32 : i32 to index
    %c0_25 = arith.constant 0 : index
    %c0_26 = arith.constant 0 : index
    %87 = vector.load %arg0[%86, %c0_25, %c0_26] : memref<3x4x256xf32, #tpu.memory_space<vmem>>, vector<1x4x256xf32>
    %88 = vector.shape_cast %87 : vector<1x4x256xf32> to vector<4x256xf32>
    %89 = vector.extract_strided_slice %88 {offsets = [0, 0], sizes = [4, 128], strides = [1, 1]} : vector<4x256xf32> to vector<4x128xf32>
    %90 = arith.truncf %42 : vector<4x32xf32> to vector<4x32xbf16>
    %cst_27 = arith.constant dense<0.000000e+00> : vector<4x128xf32>
    %91 = tpu.matmul %90, %1, %cst_27 {dimension_numbers = #tpu.dot_dimension_numbers<[1], [0], [0], [1], [0, 0, 1, 1], [], []>} : vector<4x32xbf16>, vector<32x128xbf16>, vector<4x128xf32> -> vector<4x128xf32>
    %92 = vector.broadcast %3 : vector<1x128xf32> to vector<4x128xf32>
    %93 = arith.addf %91, %92 : vector<4x128xf32>
    %94 = vector.extract_strided_slice %89 {offsets = [0, 0], sizes = [4, 32], strides = [1, 1]} : vector<4x128xf32> to vector<4x32xf32>
    %95 = vector.extract_strided_slice %93 {offsets = [0, 0], sizes = [4, 32], strides = [1, 1]} : vector<4x128xf32> to vector<4x32xf32>
    %96 = arith.addf %94, %95 : vector<4x32xf32>
    %97 = arith.negf %96 : vector<4x32xf32>
    %98 = math.exp %97 : vector<4x32xf32>
    %cst_28 = arith.constant 1.000000e+00 : f32
    %99 = vector.broadcast %cst_28 : f32 to vector<4x32xf32>
    %100 = arith.addf %99, %98 : vector<4x32xf32>
    %101 = arith.divf %99, %100 : vector<4x32xf32>
    %102 = vector.extract_strided_slice %89 {offsets = [0, 32], sizes = [4, 32], strides = [1, 1]} : vector<4x128xf32> to vector<4x32xf32>
    %103 = vector.extract_strided_slice %93 {offsets = [0, 32], sizes = [4, 32], strides = [1, 1]} : vector<4x128xf32> to vector<4x32xf32>
    %104 = arith.addf %102, %103 : vector<4x32xf32>
    %105 = arith.negf %104 : vector<4x32xf32>
    %106 = math.exp %105 : vector<4x32xf32>
    %cst_29 = arith.constant 1.000000e+00 : f32
    %107 = vector.broadcast %cst_29 : f32 to vector<4x32xf32>
    %108 = arith.addf %107, %106 : vector<4x32xf32>
    %109 = arith.divf %107, %108 : vector<4x32xf32>
    %110 = vector.extract_strided_slice %89 {offsets = [0, 64], sizes = [4, 32], strides = [1, 1]} : vector<4x128xf32> to vector<4x32xf32>
    %111 = vector.extract_strided_slice %93 {offsets = [0, 64], sizes = [4, 32], strides = [1, 1]} : vector<4x128xf32> to vector<4x32xf32>
    %112 = arith.mulf %101, %111 : vector<4x32xf32>
    %113 = arith.addf %110, %112 : vector<4x32xf32>
    %114 = math.tanh %113 : vector<4x32xf32>
    %cst_30 = arith.constant 1.000000e+00 : f32
    %115 = vector.broadcast %cst_30 : f32 to vector<4x32xf32>
    %116 = arith.subf %115, %109 : vector<4x32xf32>
    %117 = arith.mulf %116, %114 : vector<4x32xf32>
    %118 = arith.mulf %109, %42 : vector<4x32xf32>
    %119 = arith.addf %117, %118 : vector<4x32xf32>
    %120 = arith.index_cast %c1_i32 : i32 to index
    %c0_31 = arith.constant 0 : index
    %c0_32 = arith.constant 0 : index
    %121 = vector.load %arg3[%120, %c0_31, %c0_32] : memref<3x4x64xf32, #tpu.memory_space<vmem>>, vector<1x4x32xf32>
    %122 = vector.shape_cast %121 : vector<1x4x32xf32> to vector<4x32xf32>
    %123 = vector.shape_cast %119 : vector<4x32xf32> to vector<1x4x32xf32>
    tpu.vector_store %arg3[%120, %c0_31, %c0_32], %123 {strides = array<i32>} : memref<3x4x64xf32, #tpu.memory_space<vmem>>, vector<1x4x32xf32>,
    %c2_i32_33 = arith.constant 2 : i32
    %124 = arith.subi %c2_i32_33, %c1_i32 : i32
    %125 = arith.index_cast %124 : i32 to index
    %c0_34 = arith.constant 0 : index
    %c0_35 = arith.constant 0 : index
    %126 = vector.load %arg0[%125, %c0_34, %c0_35] : memref<3x4x256xf32, #tpu.memory_space<vmem>>, vector<1x4x256xf32>
    %127 = vector.shape_cast %126 : vector<1x4x256xf32> to vector<4x256xf32>
    %128 = vector.extract_strided_slice %127 {offsets = [0, 128], sizes = [4, 128], strides = [1, 1]} : vector<4x256xf32> to vector<4x128xf32>
    %129 = arith.truncf %81 : vector<4x32xf32> to vector<4x32xbf16>
    %cst_36 = arith.constant dense<0.000000e+00> : vector<4x128xf32>
    %130 = tpu.matmul %129, %5, %cst_36 {dimension_numbers = #tpu.dot_dimension_numbers<[1], [0], [0], [1], [0, 0, 1, 1], [], []>} : vector<4x32xbf16>, vector<32x128xbf16>, vector<4x128xf32> -> vector<4x128xf32>
    %131 = vector.broadcast %7 : vector<1x128xf32> to vector<4x128xf32>
    %132 = arith.addf %130, %131 : vector<4x128xf32>
    %133 = vector.extract_strided_slice %128 {offsets = [0, 0], sizes = [4, 32], strides = [1, 1]} : vector<4x128xf32> to vector<4x32xf32>
    %134 = vector.extract_strided_slice %132 {offsets = [0, 0], sizes = [4, 32], strides = [1, 1]} : vector<4x128xf32> to vector<4x32xf32>
    %135 = arith.addf %133, %134 : vector<4x32xf32>
    %136 = arith.negf %135 : vector<4x32xf32>
    %137 = math.exp %136 : vector<4x32xf32>
    %cst_37 = arith.constant 1.000000e+00 : f32
    %138 = vector.broadcast %cst_37 : f32 to vector<4x32xf32>
    %139 = arith.addf %138, %137 : vector<4x32xf32>
    %140 = arith.divf %138, %139 : vector<4x32xf32>
    %141 = vector.extract_strided_slice %128 {offsets = [0, 32], sizes = [4, 32], strides = [1, 1]} : vector<4x128xf32> to vector<4x32xf32>
    %142 = vector.extract_strided_slice %132 {offsets = [0, 32], sizes = [4, 32], strides = [1, 1]} : vector<4x128xf32> to vector<4x32xf32>
    %143 = arith.addf %141, %142 : vector<4x32xf32>
    %144 = arith.negf %143 : vector<4x32xf32>
    %145 = math.exp %144 : vector<4x32xf32>
    %cst_38 = arith.constant 1.000000e+00 : f32
    %146 = vector.broadcast %cst_38 : f32 to vector<4x32xf32>
    %147 = arith.addf %146, %145 : vector<4x32xf32>
    %148 = arith.divf %146, %147 : vector<4x32xf32>
    %149 = vector.extract_strided_slice %128 {offsets = [0, 64], sizes = [4, 32], strides = [1, 1]} : vector<4x128xf32> to vector<4x32xf32>
    %150 = vector.extract_strided_slice %132 {offsets = [0, 64], sizes = [4, 32], strides = [1, 1]} : vector<4x128xf32> to vector<4x32xf32>
    %151 = arith.mulf %140, %150 : vector<4x32xf32>
    %152 = arith.addf %149, %151 : vector<4x32xf32>
    %153 = math.tanh %152 : vector<4x32xf32>
    %cst_39 = arith.constant 1.000000e+00 : f32
    %154 = vector.broadcast %cst_39 : f32 to vector<4x32xf32>
    %155 = arith.subf %154, %148 : vector<4x32xf32>
    %156 = arith.mulf %155, %153 : vector<4x32xf32>
    %157 = arith.mulf %148, %81 : vector<4x32xf32>
    %158 = arith.addf %156, %157 : vector<4x32xf32>
    %159 = arith.index_cast %124 : i32 to index
    %c0_40 = arith.constant 0 : index
    %c32_41 = arith.constant 32 : index
    %160 = vector.load %arg3[%159, %c0_40, %c32_41] : memref<3x4x64xf32, #tpu.memory_space<vmem>>, vector<1x4x32xf32>
    %161 = vector.shape_cast %160 : vector<1x4x32xf32> to vector<4x32xf32>
    %162 = vector.shape_cast %158 : vector<4x32xf32> to vector<1x4x32xf32>
    tpu.vector_store %arg3[%159, %c0_40, %c32_41], %162 {strides = array<i32>} : memref<3x4x64xf32, #tpu.memory_space<vmem>>, vector<1x4x32xf32>,
    %c2_i32_42 = arith.constant 2 : i32
    %163 = arith.index_cast %c2_i32_42 : i32 to index
    %c0_43 = arith.constant 0 : index
    %c0_44 = arith.constant 0 : index
    %164 = vector.load %arg0[%163, %c0_43, %c0_44] : memref<3x4x256xf32, #tpu.memory_space<vmem>>, vector<1x4x256xf32>
    %165 = vector.shape_cast %164 : vector<1x4x256xf32> to vector<4x256xf32>
    %166 = vector.extract_strided_slice %165 {offsets = [0, 0], sizes = [4, 128], strides = [1, 1]} : vector<4x256xf32> to vector<4x128xf32>
    %167 = arith.truncf %119 : vector<4x32xf32> to vector<4x32xbf16>
    %cst_45 = arith.constant dense<0.000000e+00> : vector<4x128xf32>
    %168 = tpu.matmul %167, %1, %cst_45 {dimension_numbers = #tpu.dot_dimension_numbers<[1], [0], [0], [1], [0, 0, 1, 1], [], []>} : vector<4x32xbf16>, vector<32x128xbf16>, vector<4x128xf32> -> vector<4x128xf32>
    %169 = vector.broadcast %3 : vector<1x128xf32> to vector<4x128xf32>
    %170 = arith.addf %168, %169 : vector<4x128xf32>
    %171 = vector.extract_strided_slice %166 {offsets = [0, 0], sizes = [4, 32], strides = [1, 1]} : vector<4x128xf32> to vector<4x32xf32>
    %172 = vector.extract_strided_slice %170 {offsets = [0, 0], sizes = [4, 32], strides = [1, 1]} : vector<4x128xf32> to vector<4x32xf32>
    %173 = arith.addf %171, %172 : vector<4x32xf32>
    %174 = arith.negf %173 : vector<4x32xf32>
    %175 = math.exp %174 : vector<4x32xf32>
    %cst_46 = arith.constant 1.000000e+00 : f32
    %176 = vector.broadcast %cst_46 : f32 to vector<4x32xf32>
    %177 = arith.addf %176, %175 : vector<4x32xf32>
    %178 = arith.divf %176, %177 : vector<4x32xf32>
    %179 = vector.extract_strided_slice %166 {offsets = [0, 32], sizes = [4, 32], strides = [1, 1]} : vector<4x128xf32> to vector<4x32xf32>
    %180 = vector.extract_strided_slice %170 {offsets = [0, 32], sizes = [4, 32], strides = [1, 1]} : vector<4x128xf32> to vector<4x32xf32>
    %181 = arith.addf %179, %180 : vector<4x32xf32>
    %182 = arith.negf %181 : vector<4x32xf32>
    %183 = math.exp %182 : vector<4x32xf32>
    %cst_47 = arith.constant 1.000000e+00 : f32
    %184 = vector.broadcast %cst_47 : f32 to vector<4x32xf32>
    %185 = arith.addf %184, %183 : vector<4x32xf32>
    %186 = arith.divf %184, %185 : vector<4x32xf32>
    %187 = vector.extract_strided_slice %166 {offsets = [0, 64], sizes = [4, 32], strides = [1, 1]} : vector<4x128xf32> to vector<4x32xf32>
    %188 = vector.extract_strided_slice %170 {offsets = [0, 64], sizes = [4, 32], strides = [1, 1]} : vector<4x128xf32> to vector<4x32xf32>
    %189 = arith.mulf %178, %188 : vector<4x32xf32>
    %190 = arith.addf %187, %189 : vector<4x32xf32>
    %191 = math.tanh %190 : vector<4x32xf32>
    %cst_48 = arith.constant 1.000000e+00 : f32
    %192 = vector.broadcast %cst_48 : f32 to vector<4x32xf32>
    %193 = arith.subf %192, %186 : vector<4x32xf32>
    %194 = arith.mulf %193, %191 : vector<4x32xf32>
    %195 = arith.mulf %186, %119 : vector<4x32xf32>
    %196 = arith.addf %194, %195 : vector<4x32xf32>
    %197 = arith.index_cast %c2_i32_42 : i32 to index
    %c0_49 = arith.constant 0 : index
    %c0_50 = arith.constant 0 : index
    %198 = vector.load %arg3[%197, %c0_49, %c0_50] : memref<3x4x64xf32, #tpu.memory_space<vmem>>, vector<1x4x32xf32>
    %199 = vector.shape_cast %198 : vector<1x4x32xf32> to vector<4x32xf32>
    %200 = vector.shape_cast %196 : vector<4x32xf32> to vector<1x4x32xf32>
    tpu.vector_store %arg3[%197, %c0_49, %c0_50], %200 {strides = array<i32>} : memref<3x4x64xf32, #tpu.memory_space<vmem>>, vector<1x4x32xf32>,
    %c2_i32_51 = arith.constant 2 : i32
    %201 = arith.subi %c2_i32_51, %c2_i32_42 : i32
    %202 = arith.index_cast %201 : i32 to index
    %c0_52 = arith.constant 0 : index
    %c0_53 = arith.constant 0 : index
    %203 = vector.load %arg0[%202, %c0_52, %c0_53] : memref<3x4x256xf32, #tpu.memory_space<vmem>>, vector<1x4x256xf32>
    %204 = vector.shape_cast %203 : vector<1x4x256xf32> to vector<4x256xf32>
    %205 = vector.extract_strided_slice %204 {offsets = [0, 128], sizes = [4, 128], strides = [1, 1]} : vector<4x256xf32> to vector<4x128xf32>
    %206 = arith.truncf %158 : vector<4x32xf32> to vector<4x32xbf16>
    %cst_54 = arith.constant dense<0.000000e+00> : vector<4x128xf32>
    %207 = tpu.matmul %206, %5, %cst_54 {dimension_numbers = #tpu.dot_dimension_numbers<[1], [0], [0], [1], [0, 0, 1, 1], [], []>} : vector<4x32xbf16>, vector<32x128xbf16>, vector<4x128xf32> -> vector<4x128xf32>
    %208 = vector.broadcast %7 : vector<1x128xf32> to vector<4x128xf32>
    %209 = arith.addf %207, %208 : vector<4x128xf32>
    %210 = vector.extract_strided_slice %205 {offsets = [0, 0], sizes = [4, 32], strides = [1, 1]} : vector<4x128xf32> to vector<4x32xf32>
    %211 = vector.extract_strided_slice %209 {offsets = [0, 0], sizes = [4, 32], strides = [1, 1]} : vector<4x128xf32> to vector<4x32xf32>
    %212 = arith.addf %210, %211 : vector<4x32xf32>
    %213 = arith.negf %212 : vector<4x32xf32>
    %214 = math.exp %213 : vector<4x32xf32>
    %cst_55 = arith.constant 1.000000e+00 : f32
    %215 = vector.broadcast %cst_55 : f32 to vector<4x32xf32>
    %216 = arith.addf %215, %214 : vector<4x32xf32>
    %217 = arith.divf %215, %216 : vector<4x32xf32>
    %218 = vector.extract_strided_slice %205 {offsets = [0, 32], sizes = [4, 32], strides = [1, 1]} : vector<4x128xf32> to vector<4x32xf32>
    %219 = vector.extract_strided_slice %209 {offsets = [0, 32], sizes = [4, 32], strides = [1, 1]} : vector<4x128xf32> to vector<4x32xf32>
    %220 = arith.addf %218, %219 : vector<4x32xf32>
    %221 = arith.negf %220 : vector<4x32xf32>
    %222 = math.exp %221 : vector<4x32xf32>
    %cst_56 = arith.constant 1.000000e+00 : f32
    %223 = vector.broadcast %cst_56 : f32 to vector<4x32xf32>
    %224 = arith.addf %223, %222 : vector<4x32xf32>
    %225 = arith.divf %223, %224 : vector<4x32xf32>
    %226 = vector.extract_strided_slice %205 {offsets = [0, 64], sizes = [4, 32], strides = [1, 1]} : vector<4x128xf32> to vector<4x32xf32>
    %227 = vector.extract_strided_slice %209 {offsets = [0, 64], sizes = [4, 32], strides = [1, 1]} : vector<4x128xf32> to vector<4x32xf32>
    %228 = arith.mulf %217, %227 : vector<4x32xf32>
    %229 = arith.addf %226, %228 : vector<4x32xf32>
    %230 = math.tanh %229 : vector<4x32xf32>
    %cst_57 = arith.constant 1.000000e+00 : f32
    %231 = vector.broadcast %cst_57 : f32 to vector<4x32xf32>
    %232 = arith.subf %231, %225 : vector<4x32xf32>
    %233 = arith.mulf %232, %230 : vector<4x32xf32>
    %234 = arith.mulf %225, %158 : vector<4x32xf32>
    %235 = arith.addf %233, %234 : vector<4x32xf32>
    %236 = arith.index_cast %201 : i32 to index
    %c0_58 = arith.constant 0 : index
    %c32_59 = arith.constant 32 : index
    %237 = vector.load %arg3[%236, %c0_58, %c32_59] : memref<3x4x64xf32, #tpu.memory_space<vmem>>, vector<1x4x32xf32>
    %238 = vector.shape_cast %237 : vector<1x4x32xf32> to vector<4x32xf32>
    %239 = vector.shape_cast %235 : vector<4x32xf32> to vector<1x4x32xf32>
    tpu.vector_store %arg3[%236, %c0_58, %c32_59], %239 {strides = array<i32>} : memref<3x4x64xf32, #tpu.memory_space<vmem>>, vector<1x4x32xf32>,
    %c3_i32 = arith.constant 3 : i32
    return
  }
}

module attributes {stable_mosaic.version = 11 : i64} {
  func.func @_ln_linear_kernel(%arg0: memref<12x64xf32, #tpu.memory_space<vmem>>, %arg1: memref<1x64xf32, #tpu.memory_space<vmem>>, %arg2: memref<1x64xf32, #tpu.memory_space<vmem>>, %arg3: memref<64x128xbf16, #tpu.memory_space<vmem>>, %arg4: memref<1x128xf32, #tpu.memory_space<vmem>>, %arg5: memref<12x128xf32, #tpu.memory_space<vmem>>) attributes {dimension_semantics = [], scalar_prefetch = 0 : i64, scratch_operands = 0 : i64, tpu.core_type = #tpu.core_type<tc>} {
    %c0 = arith.constant 0 : index
    %c0_0 = arith.constant 0 : index
    %0 = vector.load %arg0[%c0, %c0_0] : memref<12x64xf32, #tpu.memory_space<vmem>>, vector<12x64xf32>
    %cst = arith.constant dense<0.000000e+00> : vector<12xf32>
    %1 = vector.multi_reduction <add>, %0, %cst [1] : vector<12x64xf32> to vector<12xf32>
    %2 = vector.shape_cast %1 : vector<12xf32> to vector<12x1xf32>
    %cst_1 = arith.constant 6.400000e+01 : f32
    %3 = vector.broadcast %cst_1 : f32 to vector<12x1xf32>
    %4 = arith.divf %2, %3 : vector<12x1xf32>
    %5 = vector.broadcast %4 : vector<12x1xf32> to vector<12x64xf32>
    %6 = arith.subf %0, %5 : vector<12x64xf32>
    %7 = arith.mulf %6, %6 : vector<12x64xf32>
    %cst_2 = arith.constant dense<0.000000e+00> : vector<12xf32>
    %8 = vector.multi_reduction <add>, %7, %cst_2 [1] : vector<12x64xf32> to vector<12xf32>
    %9 = vector.shape_cast %8 : vector<12xf32> to vector<12x1xf32>
    %cst_3 = arith.constant 6.400000e+01 : f32
    %10 = vector.broadcast %cst_3 : f32 to vector<12x1xf32>
    %11 = arith.divf %9, %10 : vector<12x1xf32>
    %cst_4 = arith.constant 9.99999974E-6 : f32
    %12 = vector.broadcast %cst_4 : f32 to vector<12x1xf32>
    %13 = arith.addf %11, %12 : vector<12x1xf32>
    %14 = math.rsqrt %13 : vector<12x1xf32>
    %15 = vector.broadcast %14 : vector<12x1xf32> to vector<12x64xf32>
    %16 = arith.mulf %6, %15 : vector<12x64xf32>
    %c0_5 = arith.constant 0 : index
    %c0_6 = arith.constant 0 : index
    %17 = vector.load %arg1[%c0_5, %c0_6] : memref<1x64xf32, #tpu.memory_space<vmem>>, vector<1x64xf32>
    %18 = vector.broadcast %17 : vector<1x64xf32> to vector<12x64xf32>
    %19 = arith.mulf %16, %18 : vector<12x64xf32>
    %c0_7 = arith.constant 0 : index
    %c0_8 = arith.constant 0 : index
    %20 = vector.load %arg2[%c0_7, %c0_8] : memref<1x64xf32, #tpu.memory_space<vmem>>, vector<1x64xf32>
    %21 = vector.broadcast %20 : vector<1x64xf32> to vector<12x64xf32>
    %22 = arith.addf %19, %21 : vector<12x64xf32>
    %23 = arith.truncf %22 : vector<12x64xf32> to vector<12x64xbf16>
    %c0_9 = arith.constant 0 : index
    %c0_10 = arith.constant 0 : index
    %24 = vector.load %arg3[%c0_9, %c0_10] : memref<64x128xbf16, #tpu.memory_space<vmem>>, vector<64x128xbf16>
    %cst_11 = arith.constant dense<0.000000e+00> : vector<12x128xf32>
    %25 = tpu.matmul %23, %24, %cst_11 {dimension_numbers = #tpu.dot_dimension_numbers<[1], [0], [0], [1], [0, 0, 1, 1], [], []>} : vector<12x64xbf16>, vector<64x128xbf16>, vector<12x128xf32> -> vector<12x128xf32>
    %c0_12 = arith.constant 0 : index
    %c0_13 = arith.constant 0 : index
    %26 = vector.load %arg4[%c0_12, %c0_13] : memref<1x128xf32, #tpu.memory_space<vmem>>, vector<1x128xf32>
    %27 = vector.broadcast %26 : vector<1x128xf32> to vector<12x128xf32>
    %28 = arith.addf %25, %27 : vector<12x128xf32>
    %c0_14 = arith.constant 0 : index
    %c0_15 = arith.constant 0 : index
    %29 = vector.load %arg5[%c0_14, %c0_15] : memref<12x128xf32, #tpu.memory_space<vmem>>, vector<12x128xf32>
    tpu.vector_store %arg5[%c0_14, %c0_15], %28 {strides = array<i32>} : memref<12x128xf32, #tpu.memory_space<vmem>>, vector<12x128xf32>,
    return
  }
}

</mosaic_0001>

<llo_original>
// kernel: sequence_taggle_forward.7
$region0: #{sequence_taggle_forward.7}
  #allocation0 [shape = 'u32[]', space=smem, size = 0x4, offset = 0x4, fixed_abs, tag = 'smem constant byte address 0x4 - core index']
  #allocation1 [shape = 'u32[144,128]{1,0:T(1,128)}', space=vmem, size = 0x12000, scoped, tag = 'internal scratch']
  %s0 = inlined_call_operand.vmem [shape: f32[96,32], index: 0, kind: input, shape index: {}]
  %s1 = inlined_call_operand.vmem [shape: bf16[32,256], index: 1, kind: input, shape index: {}]
  %s2 = inlined_call_operand.vmem [shape: f32[1,256], index: 2, kind: input, shape index: {}]
  %s3 = inlined_call_operand.vmem [shape: f32[96,256], index: 3, kind: output, shape index: {}]
  %s4 = sld [smem:[#allocation0]]
  $region22: #{sequence_taggle_forward.7} parent=0
    _
  %s6 = ssub.s32 1, %s4
  %s7 = scalar_select 0, %s6, %s4
  // Predicated region
  $region2: #{sequence_taggle_forward.7} parent=0 // pred_check
    _
  $region3: #{sequence_taggle_forward.7} parent=0 // pred_check_branch
    %9 = sbr.rel (0) target = $region5
  $region4: #{sequence_taggle_forward.7} parent=0 // pred_region
    _
  $region5: #{sequence_taggle_forward.7} parent=0 // pred_fallthru
    _
  // Predicated region
  $region6: #{sequence_taggle_forward.7} parent=0 // pred_check
    _
  $region7: #{sequence_taggle_forward.7} parent=0 // pred_check_branch
    %11 = sbr.rel (0) target = $region9
  $region8: #{sequence_taggle_forward.7} parent=0 // pred_region
    _
  $region9: #{sequence_taggle_forward.7} parent=0 // pred_fallthru
    _
  // Predicated region
  $region10: #{sequence_taggle_forward.7} parent=0 // pred_check
    _
  $region11: #{sequence_taggle_forward.7} parent=0 // pred_check_branch
    %13 = sbr.rel (0) target = $region13
  $region12: #{sequence_taggle_forward.7} parent=0 // pred_region
    _
  $region13: #{sequence_taggle_forward.7} parent=0 // pred_fallthru
    _
  %v15 = vld [vmem:[%s0] sm:$0xff]
  %v16 = vld [vmem:[%s0 + $0x8] sm:$0xff]
  %v17 = vld [vmem:[%s0 + $0x10] sm:$0xff]
  %v18 = vld [vmem:[%s0 + $0x18] sm:$0xff]
  %v19 = vld [vmem:[%s0 + $0x20] sm:$0xff]
  %v20 = vld [vmem:[%s0 + $0x28] sm:$0xff]
  %v21 = vld [vmem:[%s0 + $0x30] sm:$0xff]
  %v22 = vld [vmem:[%s0 + $0x38] sm:$0xff]
  %v23 = vld [vmem:[%s0 + $0x40] sm:$0xff]
  %v24 = vld [vmem:[%s0 + $0x48] sm:$0xff]
  %v25 = vld [vmem:[%s0 + $0x50] sm:$0xff]
  %v26 = vld [vmem:[%s0 + $0x58] sm:$0xff]
  %v27 = vpack.c.bf16 %v16, %v15
  %v28 = vpack.c.bf16 %v18, %v17
  %v29 = vpack.c.bf16 %v20, %v19
  %v30 = vpack.c.bf16 %v22, %v21
  %v31 = vpack.c.bf16 %v24, %v23
  %v32 = vpack.c.bf16 %v26, %v25
  %v33 = vld [vmem:[%s1] sm:$0xff]
  %v34 = vld [vmem:[%s1 + $0x8] sm:$0xff]
  %v35 = vld [vmem:[%s1 + $0x10] sm:$0xff]
  %v36 = vld [vmem:[%s1 + $0x18] sm:$0xff]
  %v37 = vld [vmem:[%s2] sm:$0x3]
  %v39 = vlaneseq
  %v40 = vshrl.u32 %v39, 7
  %v41 = vsub.s32 0, %v40
  %v42 = vrot.slane %v37, %v41
  %v43 = vlaneseq
  %v44 = vshrl.u32 %v43, 7
  %v45 = vsub.s32 1, %v44
  %v46 = vrot.slane %v37, %v45
  %v53 = vunpack.c.l.b16 %v33
  %v54 = vunpack.c.h.b16 %v33
  %v55 = vunpack.c.l.b16 %v34
  %v56 = vunpack.c.h.b16 %v34
  %v57 = vunpack.c.l.b16 %v35
  %v58 = vunpack.c.h.b16 %v35
  %v59 = vunpack.c.l.b16 %v36
  %v60 = vunpack.c.h.b16 %v36
  %v61 = vpack.c.b16 %v55, %v53
  %v62 = vpack.c.b16 %v56, %v54
  %v63 = vpack.c.b16 %v59, %v57
  %v64 = vpack.c.b16 %v60, %v58
  %vm69 = vcmask 261120
  %v71 = vsel %vm69, %v27, 0
  %v74 = vsel %vm69, %v28, 0
  %v77 = vsel %vm69, %v29, 0
  %v80 = vsel %vm69, %v30, 0
  %v83 = vsel %vm69, %v31, 0
  %v86 = vsel %vm69, %v32, 0
  %88 = vmatprep.subr.bf16.mxu0 0
  %89 = vmatpush1.bf16.msra.mxu0 0
  %90 = vmatprep.subr.bf16.mxu0 0
  %91 = vmatpush1.bf16.msra.mxu0 0
  %92 = vmatprep.subr.bf16.mxu0 0
  %93 = vmatpush1.bf16.msra.mxu0 0
  %94 = vmatprep.subr.bf16.mxu0 0
  %95 = vmatpush1.bf16.msra.mxu0 0
  %96 = vmatprep.subr.bf16.mxu0 0
  %97 = vmatpush1.bf16.msra.mxu0 0
  %98 = vmatprep.subr.bf16.mxu0 0
  %99 = vmatpush1.bf16.msra.mxu0 0
  %100 = vmatprep.subr.bf16.mxu0 %v64
  %101 = vmatpush1.bf16.msra.mxu0 %v63
  %102 = vmatprep.subr.bf16.mxu0 %v62
  %103 = vmatpush1.bf16.msra.mxu0 %v61
  %104 = vmatprep.subr.bf16.mxu0 0
  %105 = vmatpush2.bf16.msra.mxu0 0
  %106 = vmatprep.subr.bf16.mxu0 0
  %107 = vmatpush2.bf16.msra.mxu0 0
  %108 = vmatprep.subr.bf16.mxu0 0
  %109 = vmatpush2.bf16.msra.mxu0 0
  %110 = vmatprep.subr.bf16.mxu0 0
  %111 = vmatpush2.bf16.msra.mxu0 0
  %112 = vmatprep.subr.bf16.mxu0 0
  %113 = vmatpush2.bf16.msra.mxu0 0
  %114 = vmatprep.subr.bf16.mxu0 0
  %115 = vmatpush2.bf16.msra.mxu0 0
  %116 = vmatprep.subr.bf16.mxu0 0
  %117 = vmatpush2.bf16.msra.mxu0 0
  %118 = vmatprep.subr.bf16.mxu0 0
  %119 = vmatpush2.bf16.msra.mxu0 0
  %120 = vmatprep.mubr.bf16.mxu0 0
  %121 = vmatmul.mubr.bf16.gmra.mxu0 %v71
  %v122 = vpop.f32.mrf.mxu0
  %v123 = vadd.f32 %v42, %v122
  %v124 = vpop.f32.mrf.mxu0
  %v125 = vadd.f32 %v46, %v124
  %v126 = vpop.f32.mrf.mxu0
  %v127 = vadd.f32 %v42, %v126
  %v128 = vpop.f32.mrf.mxu0
  %v129 = vadd.f32 %v46, %v128
  %130 = vmatprep.mubr.bf16.mxu0 0
  %131 = vmatmul.mubr.bf16.gmra.mxu0 %v74
  %v132 = vpop.f32.mrf.mxu0
  %v133 = vadd.f32 %v42, %v132
  %v134 = vpop.f32.mrf.mxu0
  %v135 = vadd.f32 %v46, %v134
  %v136 = vpop.f32.mrf.mxu0
  %v137 = vadd.f32 %v42, %v136
  %v138 = vpop.f32.mrf.mxu0
  %v139 = vadd.f32 %v46, %v138
  %140 = vmatprep.mubr.bf16.mxu0 0
  %141 = vmatmul.mubr.bf16.gmra.mxu0 %v77
  %v142 = vpop.f32.mrf.mxu0
  %v143 = vadd.f32 %v42, %v142
  %v144 = vpop.f32.mrf.mxu0
  %v145 = vadd.f32 %v46, %v144
  %v146 = vpop.f32.mrf.mxu0
  %v147 = vadd.f32 %v42, %v146
  %v148 = vpop.f32.mrf.mxu0
  %v149 = vadd.f32 %v46, %v148
  %150 = vmatprep.mubr.bf16.mxu0 0
  %151 = vmatmul.mubr.bf16.gmra.mxu0 %v80
  %v152 = vpop.f32.mrf.mxu0
  %v153 = vadd.f32 %v42, %v152
  %v154 = vpop.f32.mrf.mxu0
  %v155 = vadd.f32 %v46, %v154
  %v156 = vpop.f32.mrf.mxu0
  %v157 = vadd.f32 %v42, %v156
  %v158 = vpop.f32.mrf.mxu0
  %v159 = vadd.f32 %v46, %v158
  %160 = vmatprep.mubr.bf16.mxu0 0
  %161 = vmatmul.mubr.bf16.gmra.mxu0 %v83
  %v162 = vpop.f32.mrf.mxu0
  %v163 = vadd.f32 %v42, %v162
  %v164 = vpop.f32.mrf.mxu0
  %v165 = vadd.f32 %v46, %v164
  %v166 = vpop.f32.mrf.mxu0
  %v167 = vadd.f32 %v42, %v166
  %v168 = vpop.f32.mrf.mxu0
  %v169 = vadd.f32 %v46, %v168
  %170 = vmatprep.mubr.bf16.mxu0 0
  %171 = vmatmul.mubr.bf16.gmra.mxu0 %v86
  %v172 = vpop.f32.mrf.mxu0
  %v173 = vadd.f32 %v42, %v172
  %v174 = vpop.f32.mrf.mxu0
  %v175 = vadd.f32 %v46, %v174
  %v176 = vpop.f32.mrf.mxu0
  %v177 = vadd.f32 %v42, %v176
  %v178 = vpop.f32.mrf.mxu0
  %v179 = vadd.f32 %v46, %v178
  %180 = vdwg.mxu0
  %181 = vst [vmem:[%s3] sm:$0xff] %v123
  %182 = vst [vmem:[%s3 + $0x8] sm:$0xff] %v125
  %183 = vst [vmem:[%s3 + $0x10] sm:$0xff] %v127
  %184 = vst [vmem:[%s3 + $0x18] sm:$0xff] %v129
  %185 = vst [vmem:[%s3 + $0x20] sm:$0xff] %v133
  %186 = vst [vmem:[%s3 + $0x28] sm:$0xff] %v135
  %187 = vst [vmem:[%s3 + $0x30] sm:$0xff] %v137
  %188 = vst [vmem:[%s3 + $0x38] sm:$0xff] %v139
  %189 = vst [vmem:[%s3 + $0x40] sm:$0xff] %v143
  %190 = vst [vmem:[%s3 + $0x48] sm:$0xff] %v145
  %191 = vst [vmem:[%s3 + $0x50] sm:$0xff] %v147
  %192 = vst [vmem:[%s3 + $0x58] sm:$0xff] %v149
  %193 = vst [vmem:[%s3 + $0x60] sm:$0xff] %v153
  %194 = vst [vmem:[%s3 + $0x68] sm:$0xff] %v155
  %195 = vst [vmem:[%s3 + $0x70] sm:$0xff] %v157
  %196 = vst [vmem:[%s3 + $0x78] sm:$0xff] %v159
  %197 = vst [vmem:[%s3 + $0x80] sm:$0xff] %v163
  %198 = vst [vmem:[%s3 + $0x88] sm:$0xff] %v165
  %199 = vst [vmem:[%s3 + $0x90] sm:$0xff] %v167
  %200 = vst [vmem:[%s3 + $0x98] sm:$0xff] %v169
  %201 = vst [vmem:[%s3 + $0xa0] sm:$0xff] %v173
  %202 = vst [vmem:[%s3 + $0xa8] sm:$0xff] %v175
  %203 = vst [vmem:[%s3 + $0xb0] sm:$0xff] %v177
  %204 = vst [vmem:[%s3 + $0xb8] sm:$0xff] %v179
  // Predicated region
  $region14: #{sequence_taggle_forward.7} parent=0 // pred_check
    _
  $region15: #{sequence_taggle_forward.7} parent=0 // pred_check_branch
    %206 = sbr.rel (0) target = $region17
  $region16: #{sequence_taggle_forward.7} parent=0 // pred_region
    _
  $region17: #{sequence_taggle_forward.7} parent=0 // pred_fallthru
    _
  // Predicated region
  $region18: #{sequence_taggle_forward.7} parent=0 // pred_check
    _
  $region19: #{sequence_taggle_forward.7} parent=0 // pred_check_branch
    %208 = sbr.rel (0) target = $region21
  $region20: #{sequence_taggle_forward.7} parent=0 // pred_region
    _
  $region21: #{sequence_taggle_forward.7} parent=0 // pred_fallthru
    _

// kernel: sequence_taggle_forward.9
$region0: #{sequence_taggle_forward.9}
  #allocation0 [shape = 'u32[]', space=smem, size = 0x4, offset = 0x4, fixed_abs, tag = 'smem constant byte address 0x4 - core index']
  #allocation1 [shape = 'u32[144,128]{1,0:T(1,128)}', space=vmem, size = 0x12000, scoped, tag = 'internal scratch']
  %s0 = inlined_call_operand.vmem [shape: f32[12,64], index: 0, kind: input, shape index: {}]
  %s1 = inlined_call_operand.vmem [shape: f32[1,64], index: 1, kind: input, shape index: {}]
  %s2 = inlined_call_operand.vmem [shape: f32[1,64], index: 2, kind: input, shape index: {}]
  %s3 = inlined_call_operand.vmem [shape: bf16[64,32], index: 3, kind: input, shape index: {}]
  %s4 = inlined_call_operand.vmem [shape: f32[1,32], index: 4, kind: input, shape index: {}]
  %s5 = inlined_call_operand.vmem [shape: bf16[32,128], index: 5, kind: input, shape index: {}]
  %s6 = inlined_call_operand.vmem [shape: f32[1,128], index: 6, kind: input, shape index: {}]
  %s7 = inlined_call_operand.vmem [shape: f32[12,32], index: 7, kind: output, shape index: {0}]
  %s8 = inlined_call_operand.vmem [shape: f32[12,128], index: 8, kind: output, shape index: {1}]
  %9 = xla_tuple %s7, %s8
  %s10 = sld [smem:[#allocation0]]
  $region46: #{sequence_taggle_forward.9} parent=0
    _
  %s12 = ssub.s32 1, %s10
  %s13 = scalar_select 0, %s12, %s10
  // Predicated region
  $region2: #{sequence_taggle_forward.9} parent=0 // pred_check
    _
  $region3: #{sequence_taggle_forward.9} parent=0 // pred_check_branch
    %15 = sbr.rel (0) target = $region5
  $region4: #{sequence_taggle_forward.9} parent=0 // pred_region
    _
  $region5: #{sequence_taggle_forward.9} parent=0 // pred_fallthru
    _
  // Predicated region
  $region6: #{sequence_taggle_forward.9} parent=0 // pred_check
    _
  $region7: #{sequence_taggle_forward.9} parent=0 // pred_check_branch
    %17 = sbr.rel (0) target = $region9
  $region8: #{sequence_taggle_forward.9} parent=0 // pred_region
    _
  $region9: #{sequence_taggle_forward.9} parent=0 // pred_fallthru
    _
  // Predicated region
  $region10: #{sequence_taggle_forward.9} parent=0 // pred_check
    _
  $region11: #{sequence_taggle_forward.9} parent=0 // pred_check_branch
    %19 = sbr.rel (0) target = $region13
  $region12: #{sequence_taggle_forward.9} parent=0 // pred_region
    _
  $region13: #{sequence_taggle_forward.9} parent=0 // pred_fallthru
    _
  // Predicated region
  $region14: #{sequence_taggle_forward.9} parent=0 // pred_check
    _
  $region15: #{sequence_taggle_forward.9} parent=0 // pred_check_branch
    %21 = sbr.rel (0) target = $region17
  $region16: #{sequence_taggle_forward.9} parent=0 // pred_region
    _
  $region17: #{sequence_taggle_forward.9} parent=0 // pred_fallthru
    _
  // Predicated region
  $region18: #{sequence_taggle_forward.9} parent=0 // pred_check
    _
  $region19: #{sequence_taggle_forward.9} parent=0 // pred_check_branch
    %23 = sbr.rel (0) target = $region21
  $region20: #{sequence_taggle_forward.9} parent=0 // pred_region
    _
  $region21: #{sequence_taggle_forward.9} parent=0 // pred_fallthru
    _
  // Predicated region
  $region22: #{sequence_taggle_forward.9} parent=0 // pred_check
    _
  $region23: #{sequence_taggle_forward.9} parent=0 // pred_check_branch
    %25 = sbr.rel (0) target = $region25
  $region24: #{sequence_taggle_forward.9} parent=0 // pred_region
    _
  $region25: #{sequence_taggle_forward.9} parent=0 // pred_fallthru
    _
  // Predicated region
  $region26: #{sequence_taggle_forward.9} parent=0 // pred_check
    _
  $region27: #{sequence_taggle_forward.9} parent=0 // pred_check_branch
    %27 = sbr.rel (0) target = $region29
  $region28: #{sequence_taggle_forward.9} parent=0 // pred_region
    _
  $region29: #{sequence_taggle_forward.9} parent=0 // pred_fallthru
    _
  %v29 = vld [vmem:[%s0] sm:$0xff]
  %v30 = vld [vmem:[%s0 + $0x8] sm:$0xf]
  %vm31 = vcmask 523264
  %v32 = vsel %vm31, %v29, 0.0
  %33 = vadd.xlane.f32.xlu0 %v32
  %v34 = vpop.xlane.xlu0 %33
  %vm35 = vcmask 519168
  %v36 = vsel %vm35, %v30, 0.0
  %37 = vadd.xlane.f32.xlu0 %v36
  %v38 = vpop.xlane.xlu0 %37
  %v39 = vrcp.pop 64.0
  %v40 = vmul.f32 %v34, %v39
  %v41 = vmul.f32 %v38, %v39
  %v42 = vsub.f32 %v29, %v40
  %v43 = vsub.f32 %v30, %v41
  %v44 = vmul.f32 %v42, %v42
  %v45 = vmul.f32 %v43, %v43
  %v46 = vsel %vm31, %v44, 0.0
  %47 = vadd.xlane.f32.xlu0 %v46
  %v48 = vpop.xlane.xlu0 %47
  %v49 = vsel %vm35, %v45, 0.0
  %50 = vadd.xlane.f32.xlu0 %v49
  %v51 = vpop.xlane.xlu0 %50
  %v52 = vmul.f32 %v48, %v39
  %v53 = vmul.f32 %v51, %v39
  %v54 = vadd.f32 %v52, 1e-05
  %v55 = vadd.f32 %v53, 1e-05
  %v56 = vrsqrt.pop %v54
  %v57 = vrsqrt.pop %v55
  %v58 = vmul.f32 %v42, %v56
  %v59 = vmul.f32 %v43, %v57
  %v60 = vld [vmem:[%s1] sm:$0x1]
  %v62 = vlaneseq
  %v63 = vshrl.u32 %v62, 7
  %v64 = vsub.s32 0, %v63
  %v65 = vrot.slane %v60, %v64
  %v67 = vmul.f32 %v58, %v65
  %v68 = vmul.f32 %v59, %v65
  %v69 = vld [vmem:[%s2] sm:$0x1]
  %v71 = vlaneseq
  %v72 = vshrl.u32 %v71, 7
  %v73 = vsub.s32 0, %v72
  %v74 = vrot.slane %v69, %v73
  %v76 = vadd.f32 %v67, %v74
  %v77 = vadd.f32 %v68, %v74
  %v78 = vpack.c.bf16 %v77, %v76
  %v79 = vld [vmem:[%s3] sm:$0xf]
  %v80 = vld [vmem:[%s3 + $0x4] sm:$0xf]
  %v81 = vld [vmem:[%s3 + $0x8] sm:$0xf]
  %v82 = vld [vmem:[%s3 + $0xc] sm:$0xf]
  %v83 = vld [vmem:[%s3 + $0x10] sm:$0xf]
  %v84 = vld [vmem:[%s3 + $0x14] sm:$0xf]
  %v85 = vld [vmem:[%s3 + $0x18] sm:$0xf]
  %v86 = vld [vmem:[%s3 + $0x1c] sm:$0xf]
  %v87 = vld [vmem:[%s4] sm:$0x1]
  %v89 = vlaneseq
  %v90 = vshrl.u32 %v89, 7
  %v91 = vsub.s32 0, %v90
  %v92 = vrot.slane %v87, %v91
  %v102 = vunpack.c.l.b16 %v79
  %v103 = vunpack.c.l.b16 %v80
  %v104 = vunpack.c.l.b16 %v81
  %v105 = vunpack.c.l.b16 %v82
  %v106 = vunpack.c.l.b16 %v83
  %v107 = vunpack.c.l.b16 %v84
  %v108 = vunpack.c.l.b16 %v85
  %v109 = vunpack.c.l.b16 %v86
  %v110 = vpack.c.b16 %v103, %v102
  %v111 = vpack.c.b16 %v105, %v104
  %v112 = vpack.c.b16 %v107, %v106
  %v113 = vpack.c.b16 %v109, %v108
  %v119 = vsel %vm31, %v78, 0
  %121 = vmatprep.subr.bf16.mxu0 0
  %122 = vmatpush1.bf16.msra.mxu0 0
  %123 = vmatprep.subr.bf16.mxu0 0
  %124 = vmatpush1.bf16.msra.mxu0 0
  %125 = vmatprep.subr.bf16.mxu0 0
  %126 = vmatpush1.bf16.msra.mxu0 0
  %127 = vmatprep.subr.bf16.mxu0 0
  %128 = vmatpush1.bf16.msra.mxu0 0
  %129 = vmatprep.subr.bf16.mxu0 0
  %130 = vmatpush1.bf16.msra.mxu0 %v113
  %131 = vmatprep.subr.bf16.mxu0 0
  %132 = vmatpush1.bf16.msra.mxu0 %v112
  %133 = vmatprep.subr.bf16.mxu0 0
  %134 = vmatpush1.bf16.msra.mxu0 %v111
  %135 = vmatprep.subr.bf16.mxu0 0
  %136 = vmatpush1.bf16.msra.mxu0 %v110
  %137 = vmatprep.subr.bf16.mxu0 0
  %138 = vmatpush2.bf16.msra.mxu0 0
  %139 = vmatprep.subr.bf16.mxu0 0
  %140 = vmatpush2.bf16.msra.mxu0 0
  %141 = vmatprep.subr.bf16.mxu0 0
  %142 = vmatpush2.bf16.msra.mxu0 0
  %143 = vmatprep.subr.bf16.mxu0 0
  %144 = vmatpush2.bf16.msra.mxu0 0
  %145 = vmatprep.subr.bf16.mxu0 0
  %146 = vmatpush2.bf16.msra.mxu0 0
  %147 = vmatprep.subr.bf16.mxu0 0
  %148 = vmatpush2.bf16.msra.mxu0 0
  %149 = vmatprep.subr.bf16.mxu0 0
  %150 = vmatpush2.bf16.msra.mxu0 0
  %151 = vmatprep.subr.bf16.mxu0 0
  %152 = vmatpush2.bf16.msra.mxu0 0
  %153 = vmatprep.mubr.bf16.mxu0 0
  %154 = vmatmul.mubr.bf16.gmra.mxu0 %v119
  %v155 = vpop.f32.mrf.mxu0
  %v156 = vadd.f32 %v92, %v155
  %v157 = vpop.f32.mrf.mxu0
  %v158 = vpop.f32.mrf.mxu0
  %v159 = vadd.f32 %v92, %v158
  %v160 = vpop.f32.mrf.mxu0
  %161 = vdwg.mxu0
  %v162 = vtanh.pop %v156
  %v163 = vtanh.pop %v159
  %vm164 = vcmask 261120
  %165 = vst.msk [vmem:[%s7] sm:$0xff] %vm164, %v162
  %vm166 = vcmask 257024
  %167 = vst.msk [vmem:[%s7 + $0x8] sm:$0xf] %vm166, %v163
  %v168 = vpack.c.bf16 %v163, %v162
  %v169 = vld [vmem:[%s5] sm:$0xf]
  %v170 = vld [vmem:[%s5 + $0x4] sm:$0xf]
  %v171 = vld [vmem:[%s5 + $0x8] sm:$0xf]
  %v172 = vld [vmem:[%s5 + $0xc] sm:$0xf]
  %v173 = vld [vmem:[%s6] sm:$0x1]
  %v175 = vlaneseq
  %v176 = vshrl.u32 %v175, 7
  %v177 = vsub.s32 0, %v176
  %v178 = vrot.slane %v173, %v177
  %v184 = vunpack.c.l.b16 %v169
  %v185 = vunpack.c.l.b16 %v170
  %v186 = vunpack.c.l.b16 %v171
  %v187 = vunpack.c.l.b16 %v172
  %v188 = vpack.c.b16 %v185, %v184
  %v189 = vpack.c.b16 %v187, %v186
  %v193 = vsel %vm164, %v168, 0
  %195 = vmatprep.subr.bf16.mxu0 0
  %196 = vmatpush1.bf16.msra.mxu0 0
  %197 = vmatprep.subr.bf16.mxu0 0
  %198 = vmatpush1.bf16.msra.mxu0 0
  %199 = vmatprep.subr.bf16.mxu0 0
  %200 = vmatpush1.bf16.msra.mxu0 0
  %201 = vmatprep.subr.bf16.mxu0 0
  %202 = vmatpush1.bf16.msra.mxu0 0
  %203 = vmatprep.subr.bf16.mxu0 0
  %204 = vmatpush1.bf16.msra.mxu0 0
  %205 = vmatprep.subr.bf16.mxu0 0
  %206 = vmatpush1.bf16.msra.mxu0 0
  %207 = vmatprep.subr.bf16.mxu0 0
  %208 = vmatpush1.bf16.msra.mxu0 %v189
  %209 = vmatprep.subr.bf16.mxu0 0
  %210 = vmatpush1.bf16.msra.mxu0 %v188
  %211 = vmatprep.subr.bf16.mxu0 0
  %212 = vmatpush2.bf16.msra.mxu0 0
  %213 = vmatprep.subr.bf16.mxu0 0
  %214 = vmatpush2.bf16.msra.mxu0 0
  %215 = vmatprep.subr.bf16.mxu0 0
  %216 = vmatpush2.bf16.msra.mxu0 0
  %217 = vmatprep.subr.bf16.mxu0 0
  %218 = vmatpush2.bf16.msra.mxu0 0
  %219 = vmatprep.subr.bf16.mxu0 0
  %220 = vmatpush2.bf16.msra.mxu0 0
  %221 = vmatprep.subr.bf16.mxu0 0
  %222 = vmatpush2.bf16.msra.mxu0 0
  %223 = vmatprep.subr.bf16.mxu0 0
  %224 = vmatpush2.bf16.msra.mxu0 0
  %225 = vmatprep.subr.bf16.mxu0 0
  %226 = vmatpush2.bf16.msra.mxu0 0
  %227 = vmatprep.mubr.bf16.mxu0 0
  %228 = vmatmul.mubr.bf16.gmra.mxu0 %v193
  %v229 = vpop.f32.mrf.mxu0
  %v230 = vadd.f32 %v178, %v229
  %v231 = vpop.f32.mrf.mxu0
  %v232 = vpop.f32.mrf.mxu0
  %v233 = vadd.f32 %v178, %v232
  %v234 = vpop.f32.mrf.mxu0
  %235 = vdwg.mxu0
  %236 = vst [vmem:[%s8] sm:$0xff] %v230
  %237 = vst [vmem:[%s8 + $0x8] sm:$0xf] %v233
  // Predicated region
  $region30: #{sequence_taggle_forward.9} parent=0 // pred_check
    _
  $region31: #{sequence_taggle_forward.9} parent=0 // pred_check_branch
    %239 = sbr.rel (0) target = $region33
  $region32: #{sequence_taggle_forward.9} parent=0 // pred_region
    _
  $region33: #{sequence_taggle_forward.9} parent=0 // pred_fallthru
    _
  // Predicated region
  $region34: #{sequence_taggle_forward.9} parent=0 // pred_check
    _
  $region35: #{sequence_taggle_forward.9} parent=0 // pred_check_branch
    %241 = sbr.rel (0) target = $region37
  $region36: #{sequence_taggle_forward.9} parent=0 // pred_region
    _
  $region37: #{sequence_taggle_forward.9} parent=0 // pred_fallthru
    _
  // Predicated region
  $region38: #{sequence_taggle_forward.9} parent=0 // pred_check
    _
  $region39: #{sequence_taggle_forward.9} parent=0 // pred_check_branch
    %243 = sbr.rel (0) target = $region41
  $region40: #{sequence_taggle_forward.9} parent=0 // pred_region
    _
  $region41: #{sequence_taggle_forward.9} parent=0 // pred_fallthru
    _
  // Predicated region
  $region42: #{sequence_taggle_forward.9} parent=0 // pred_check
    _
  $region43: #{sequence_taggle_forward.9} parent=0 // pred_check_branch
    %245 = sbr.rel (0) target = $region45
  $region44: #{sequence_taggle_forward.9} parent=0 // pred_region
    _
  $region45: #{sequence_taggle_forward.9} parent=0 // pred_fallthru
    _

// kernel: sequence_taggle_forward.10
$region0: #{sequence_taggle_forward.10}
  #allocation0 [shape = 'u32[]', space=smem, size = 0x4, offset = 0x4, fixed_abs, tag = 'smem constant byte address 0x4 - core index']
  #allocation1 [shape = 'u32[144,128]{1,0:T(1,128)}', space=vmem, size = 0x12000, scoped, tag = 'internal scratch']
  %s0 = inlined_call_operand.vmem [shape: f32[3,4,128], index: 0, kind: input, shape index: {}]
  %s1 = inlined_call_operand.vmem [shape: bf16[1,32,128], index: 1, kind: input, shape index: {}]
  %s2 = inlined_call_operand.vmem [shape: f32[1,1,128], index: 2, kind: input, shape index: {}]
  %s3 = inlined_call_operand.vmem [shape: f32[3,4,32], index: 3, kind: output, shape index: {}]
  %s4 = sld [smem:[#allocation0]]
  $region22: #{sequence_taggle_forward.10} parent=0
    _
  %s6 = ssub.s32 1, %s4
  %s7 = scalar_select 0, %s6, %s4
  // Predicated region
  $region2: #{sequence_taggle_forward.10} parent=0 // pred_check
    _
  $region3: #{sequence_taggle_forward.10} parent=0 // pred_check_branch
    %9 = sbr.rel (0) target = $region5
  $region4: #{sequence_taggle_forward.10} parent=0 // pred_region
    _
  $region5: #{sequence_taggle_forward.10} parent=0 // pred_fallthru
    _
  // Predicated region
  $region6: #{sequence_taggle_forward.10} parent=0 // pred_check
    _
  $region7: #{sequence_taggle_forward.10} parent=0 // pred_check_branch
    %11 = sbr.rel (0) target = $region9
  $region8: #{sequence_taggle_forward.10} parent=0 // pred_region
    _
  $region9: #{sequence_taggle_forward.10} parent=0 // pred_fallthru
    _
  // Predicated region
  $region10: #{sequence_taggle_forward.10} parent=0 // pred_check
    _
  $region11: #{sequence_taggle_forward.10} parent=0 // pred_check_branch
    %13 = sbr.rel (0) target = $region13
  $region12: #{sequence_taggle_forward.10} parent=0 // pred_region
    _
  $region13: #{sequence_taggle_forward.10} parent=0 // pred_fallthru
    _
  %v15 = vld [vmem:[%s1] sm:$0xf]
  %v16 = vld [vmem:[%s1 + $0x4] sm:$0xf]
  %v17 = vld [vmem:[%s1 + $0x8] sm:$0xf]
  %v18 = vld [vmem:[%s1 + $0xc] sm:$0xf]
  %v19 = vld [vmem:[%s2] sm:$0x1]
  %v20 = vld [vmem:[%s0] sm:$0xf]
  %v22 = vlaneseq
  %v23 = vshrl.u32 %v22, 7
  %v24 = vsub.s32 0, %v23
  %v25 = vrot.slane %v19, %v24
  %v31 = vunpack.c.l.b16 %v15
  %v32 = vunpack.c.l.b16 %v16
  %v33 = vunpack.c.l.b16 %v17
  %v34 = vunpack.c.l.b16 %v18
  %v35 = vpack.c.b16 %v32, %v31
  %v36 = vpack.c.b16 %v34, %v33
  %vm39 = vcmask 261120
  %v41 = vsel %vm39, 0, 0
  %43 = vmatprep.subr.bf16.mxu0 0
  %44 = vmatpush1.bf16.msra.mxu0 0
  %45 = vmatprep.subr.bf16.mxu0 0
  %46 = vmatpush1.bf16.msra.mxu0 0
  %47 = vmatprep.subr.bf16.mxu0 0
  %48 = vmatpush1.bf16.msra.mxu0 0
  %49 = vmatprep.subr.bf16.mxu0 0
  %50 = vmatpush1.bf16.msra.mxu0 0
  %51 = vmatprep.subr.bf16.mxu0 0
  %52 = vmatpush1.bf16.msra.mxu0 0
  %53 = vmatprep.subr.bf16.mxu0 0
  %54 = vmatpush1.bf16.msra.mxu0 0
  %55 = vmatprep.subr.bf16.mxu0 0
  %56 = vmatpush1.bf16.msra.mxu0 %v36
  %57 = vmatprep.subr.bf16.mxu0 0
  %58 = vmatpush1.bf16.msra.mxu0 %v35
  %59 = vmatprep.subr.bf16.mxu0 0
  %60 = vmatpush2.bf16.msra.mxu0 0
  %61 = vmatprep.subr.bf16.mxu0 0
  %62 = vmatpush2.bf16.msra.mxu0 0
  %63 = vmatprep.subr.bf16.mxu0 0
  %64 = vmatpush2.bf16.msra.mxu0 0
  %65 = vmatprep.subr.bf16.mxu0 0
  %66 = vmatpush2.bf16.msra.mxu0 0
  %67 = vmatprep.subr.bf16.mxu0 0
  %68 = vmatpush2.bf16.msra.mxu0 0
  %69 = vmatprep.subr.bf16.mxu0 0
  %70 = vmatpush2.bf16.msra.mxu0 0
  %71 = vmatprep.subr.bf16.mxu0 0
  %72 = vmatpush2.bf16.msra.mxu0 0
  %73 = vmatprep.subr.bf16.mxu0 0
  %74 = vmatpush2.bf16.msra.mxu0 0
  %75 = vmatprep.mubr.bf16.mxu0 0
  %76 = vmatmul.mubr.bf16.gmra.mxu0 %v41
  %v77 = vpop.f32.mrf.mxu0
  %v78 = vadd.f32 %v25, %v77
  %v79 = vpop.f32.mrf.mxu0
  %v80 = vpop.f32.mrf.mxu0
  %v81 = vpop.f32.mrf.mxu0
  %82 = vdwg.mxu0
  %v83 = vadd.f32 %v20, %v78
  %v84 = vxor.u32 %v83, 2147483648
  %v85 = vmul.f32 %v84, 1.442695
  %v86 = vpow.pop %v85
  %v87 = vadd.f32 %v86, 1.0
  %v88 = vrcp.pop %v87
  %v89 = vmul.f32 1.0, %v88
  %91 = vrot.lane.b32.xlu0 %v78, 64
  %v92 = vpop.permute.xlu0 %91
  %v94 = vmul.f32 %v89, %v92
  %96 = vrot.lane.b32.xlu0 %v94, 64
  %v97 = vpop.permute.xlu0 %96
  %v99 = vadd.f32 %v20, %v97
  %v100 = vtanh.pop %v99
  %v101 = vsub.f32 1.0, %v89
  %103 = vrot.lane.b32.xlu0 %v100, 96
  %v104 = vpop.permute.xlu0 %103
  %v106 = vmul.f32 %v101, %v104
  %v107 = vmul.f32 %v89, 0.0
  %v108 = vadd.f32 %v106, %v107
  %110 = vrot.lane.b32.xlu0 %v108, 96
  %v111 = vpop.permute.xlu0 %110
  %vm113 = vcmask 257024
  %114 = vst.msk [vmem:[%s3] sm:$0xf] %vm113, %v111
  %s115 = scalar_lea.vmem %s0, 4
  %v116 = vld [vmem:[%s115] sm:$0xf]
  %v117 = vpack.c.bf16 %v108, %v108
  %119 = vrot.lane.b32.xlu0 %v117, 96
  %v120 = vpop.permute.xlu0 %119
  %v122 = vsel %vm39, %v120, 0
  %124 = vmatprep.subr.bf16.mxu0 0
  %125 = vmatpush1.bf16.msra.mxu0 0
  %126 = vmatprep.subr.bf16.mxu0 0
  %127 = vmatpush1.bf16.msra.mxu0 0
  %128 = vmatprep.subr.bf16.mxu0 0
  %129 = vmatpush1.bf16.msra.mxu0 0
  %130 = vmatprep.subr.bf16.mxu0 0
  %131 = vmatpush1.bf16.msra.mxu0 0
  %132 = vmatprep.subr.bf16.mxu0 0
  %133 = vmatpush1.bf16.msra.mxu0 0
  %134 = vmatprep.subr.bf16.mxu0 0
  %135 = vmatpush1.bf16.msra.mxu0 0
  %136 = vmatprep.subr.bf16.mxu0 0
  %137 = vmatpush1.bf16.msra.mxu0 %v36
  %138 = vmatprep.subr.bf16.mxu0 0
  %139 = vmatpush1.bf16.msra.mxu0 %v35
  %140 = vmatprep.subr.bf16.mxu0 0
  %141 = vmatpush2.bf16.msra.mxu0 0
  %142 = vmatprep.subr.bf16.mxu0 0
  %143 = vmatpush2.bf16.msra.mxu0 0
  %144 = vmatprep.subr.bf16.mxu0 0
  %145 = vmatpush2.bf16.msra.mxu0 0
  %146 = vmatprep.subr.bf16.mxu0 0
  %147 = vmatpush2.bf16.msra.mxu0 0
  %148 = vmatprep.subr.bf16.mxu0 0
  %149 = vmatpush2.bf16.msra.mxu0 0
  %150 = vmatprep.subr.bf16.mxu0 0
  %151 = vmatpush2.bf16.msra.mxu0 0
  %152 = vmatprep.subr.bf16.mxu0 0
  %153 = vmatpush2.bf16.msra.mxu0 0
  %154 = vmatprep.subr.bf16.mxu0 0
  %155 = vmatpush2.bf16.msra.mxu0 0
  %156 = vmatprep.mubr.bf16.mxu0 0
  %157 = vmatmul.mubr.bf16.gmra.mxu0 %v122
  %v158 = vpop.f32.mrf.mxu0
  %v159 = vadd.f32 %v25, %v158
  %v160 = vpop.f32.mrf.mxu0
  %v161 = vpop.f32.mrf.mxu0
  %v162 = vpop.f32.mrf.mxu0
  %163 = vdwg.mxu0
  %v164 = vadd.f32 %v116, %v159
  %v165 = vxor.u32 %v164, 2147483648
  %v166 = vmul.f32 %v165, 1.442695
  %v167 = vpow.pop %v166
  %v168 = vadd.f32 %v167, 1.0
  %v169 = vrcp.pop %v168
  %v170 = vmul.f32 1.0, %v169
  %172 = vrot.lane.b32.xlu0 %v159, 64
  %v173 = vpop.permute.xlu0 %172
  %v175 = vmul.f32 %v170, %v173
  %177 = vrot.lane.b32.xlu0 %v175, 64
  %v178 = vpop.permute.xlu0 %177
  %v180 = vadd.f32 %v116, %v178
  %v181 = vtanh.pop %v180
  %v182 = vsub.f32 1.0, %v170
  %184 = vrot.lane.b32.xlu0 %v181, 96
  %v185 = vpop.permute.xlu0 %184
  %v187 = vmul.f32 %v182, %v185
  %v188 = vmul.f32 %v170, %v108
  %v189 = vadd.f32 %v187, %v188
  %191 = vrot.lane.b32.xlu0 %v189, 96
  %v192 = vpop.permute.xlu0 %191
  %s194 = scalar_lea.vmem %s3, 4
  %195 = vst.msk [vmem:[%s194] sm:$0xf] %vm113, %v192
  %s196 = scalar_lea.vmem %s0, 8
  %v197 = vld [vmem:[%s196] sm:$0xf]
  %v198 = vpack.c.bf16 %v189, %v189
  %200 = vrot.lane.b32.xlu0 %v198, 96
  %v201 = vpop.permute.xlu0 %200
  %v203 = vsel %vm39, %v201, 0
  %205 = vmatprep.subr.bf16.mxu0 0
  %206 = vmatpush1.bf16.msra.mxu0 0
  %207 = vmatprep.subr.bf16.mxu0 0
  %208 = vmatpush1.bf16.msra.mxu0 0
  %209 = vmatprep.subr.bf16.mxu0 0
  %210 = vmatpush1.bf16.msra.mxu0 0
  %211 = vmatprep.subr.bf16.mxu0 0
  %212 = vmatpush1.bf16.msra.mxu0 0
  %213 = vmatprep.subr.bf16.mxu0 0
  %214 = vmatpush1.bf16.msra.mxu0 0
  %215 = vmatprep.subr.bf16.mxu0 0
  %216 = vmatpush1.bf16.msra.mxu0 0
  %217 = vmatprep.subr.bf16.mxu0 0
  %218 = vmatpush1.bf16.msra.mxu0 %v36
  %219 = vmatprep.subr.bf16.mxu0 0
  %220 = vmatpush1.bf16.msra.mxu0 %v35
  %221 = vmatprep.subr.bf16.mxu0 0
  %222 = vmatpush2.bf16.msra.mxu0 0
  %223 = vmatprep.subr.bf16.mxu0 0
  %224 = vmatpush2.bf16.msra.mxu0 0
  %225 = vmatprep.subr.bf16.mxu0 0
  %226 = vmatpush2.bf16.msra.mxu0 0
  %227 = vmatprep.subr.bf16.mxu0 0
  %228 = vmatpush2.bf16.msra.mxu0 0
  %229 = vmatprep.subr.bf16.mxu0 0
  %230 = vmatpush2.bf16.msra.mxu0 0
  %231 = vmatprep.subr.bf16.mxu0 0
  %232 = vmatpush2.bf16.msra.mxu0 0
  %233 = vmatprep.subr.bf16.mxu0 0
  %234 = vmatpush2.bf16.msra.mxu0 0
  %235 = vmatprep.subr.bf16.mxu0 0
  %236 = vmatpush2.bf16.msra.mxu0 0
  %237 = vmatprep.mubr.bf16.mxu0 0
  %238 = vmatmul.mubr.bf16.gmra.mxu0 %v203
  %v239 = vpop.f32.mrf.mxu0
  %v240 = vadd.f32 %v25, %v239
  %v241 = vpop.f32.mrf.mxu0
  %v242 = vpop.f32.mrf.mxu0
  %v243 = vpop.f32.mrf.mxu0
  %244 = vdwg.mxu0
  %v245 = vadd.f32 %v197, %v240
  %v246 = vxor.u32 %v245, 2147483648
  %v247 = vmul.f32 %v246, 1.442695
  %v248 = vpow.pop %v247
  %v249 = vadd.f32 %v248, 1.0
  %v250 = vrcp.pop %v249
  %v251 = vmul.f32 1.0, %v250
  %253 = vrot.lane.b32.xlu0 %v240, 64
  %v254 = vpop.permute.xlu0 %253
  %v256 = vmul.f32 %v251, %v254
  %258 = vrot.lane.b32.xlu0 %v256, 64
  %v259 = vpop.permute.xlu0 %258
  %v261 = vadd.f32 %v197, %v259
  %v262 = vtanh.pop %v261
  %v263 = vsub.f32 1.0, %v251
  %265 = vrot.lane.b32.xlu0 %v262, 96
  %v266 = vpop.permute.xlu0 %265
  %v268 = vmul.f32 %v263, %v266
  %v269 = vmul.f32 %v251, %v189
  %v270 = vadd.f32 %v268, %v269
  %272 = vrot.lane.b32.xlu0 %v270, 96
  %v273 = vpop.permute.xlu0 %272
  %s275 = scalar_lea.vmem %s3, 8
  %276 = vst.msk [vmem:[%s275] sm:$0xf] %vm113, %v273
  // Predicated region
  $region14: #{sequence_taggle_forward.10} parent=0 // pred_check
    _
  $region15: #{sequence_taggle_forward.10} parent=0 // pred_check_branch
    %278 = sbr.rel (0) target = $region17
  $region16: #{sequence_taggle_forward.10} parent=0 // pred_region
    _
  $region17: #{sequence_taggle_forward.10} parent=0 // pred_fallthru
    _
  // Predicated region
  $region18: #{sequence_taggle_forward.10} parent=0 // pred_check
    _
  $region19: #{sequence_taggle_forward.10} parent=0 // pred_check_branch
    %280 = sbr.rel (0) target = $region21
  $region20: #{sequence_taggle_forward.10} parent=0 // pred_region
    _
  $region21: #{sequence_taggle_forward.10} parent=0 // pred_fallthru
    _

// kernel: sequence_taggle_forward.8
$region0: #{sequence_taggle_forward.8}
  #allocation0 [shape = 'u32[]', space=smem, size = 0x4, offset = 0x4, fixed_abs, tag = 'smem constant byte address 0x4 - core index']
  #allocation1 [shape = 'u32[144,128]{1,0:T(1,128)}', space=vmem, size = 0x12000, scoped, tag = 'internal scratch']
  %s0 = inlined_call_operand.vmem [shape: f32[8,12,256], index: 0, kind: input, shape index: {}]
  %s1 = inlined_call_operand.vmem [shape: bf16[2,32,128], index: 1, kind: input, shape index: {}]
  %s2 = inlined_call_operand.vmem [shape: f32[2,1,128], index: 2, kind: input, shape index: {}]
  %s3 = inlined_call_operand.vmem [shape: f32[12,64], index: 3, kind: output, shape index: {}]
  %s4 = sld [smem:[#allocation0]]
  $region22: #{sequence_taggle_forward.8} parent=0
    _
  %s6 = ssub.s32 1, %s4
  %s7 = scalar_select 0, %s6, %s4
  // Predicated region
  $region2: #{sequence_taggle_forward.8} parent=0 // pred_check
    _
  $region3: #{sequence_taggle_forward.8} parent=0 // pred_check_branch
    %9 = sbr.rel (0) target = $region5
  $region4: #{sequence_taggle_forward.8} parent=0 // pred_region
    _
  $region5: #{sequence_taggle_forward.8} parent=0 // pred_fallthru
    _
  // Predicated region
  $region6: #{sequence_taggle_forward.8} parent=0 // pred_check
    _
  $region7: #{sequence_taggle_forward.8} parent=0 // pred_check_branch
    %11 = sbr.rel (0) target = $region9
  $region8: #{sequence_taggle_forward.8} parent=0 // pred_region
    _
  $region9: #{sequence_taggle_forward.8} parent=0 // pred_fallthru
    _
  // Predicated region
  $region10: #{sequence_taggle_forward.8} parent=0 // pred_check
    _
  $region11: #{sequence_taggle_forward.8} parent=0 // pred_check_branch
    %13 = sbr.rel (0) target = $region13
  $region12: #{sequence_taggle_forward.8} parent=0 // pred_region
    _
  $region13: #{sequence_taggle_forward.8} parent=0 // pred_fallthru
    _
  %v15 = vld [vmem:[%s1] sm:$0xf]
  %v16 = vld [vmem:[%s1 + $0x4] sm:$0xf]
  %v17 = vld [vmem:[%s1 + $0x8] sm:$0xf]
  %v18 = vld [vmem:[%s1 + $0xc] sm:$0xf]
  %v19 = vld [vmem:[%s2] sm:$0x1]
  %v20 = vld [vmem:[%s0] sm:$0xff]
  %v21 = vld [vmem:[%s0 + $0x10] sm:$0xf]
  %v23 = vlaneseq
  %v24 = vshrl.u32 %v23, 7
  %v25 = vsub.s32 0, %v24
  %v26 = vrot.slane %v19, %v25
  %v32 = vunpack.c.l.b16 %v15
  %v33 = vunpack.c.l.b16 %v16
  %v34 = vunpack.c.l.b16 %v17
  %v35 = vunpack.c.l.b16 %v18
  %v36 = vpack.c.b16 %v33, %v32
  %v37 = vpack.c.b16 %v35, %v34
  %vm40 = vcmask 261120
  %v42 = vsel %vm40, 0, 0
  %44 = vmatprep.subr.bf16.mxu0 0
  %45 = vmatpush1.bf16.msra.mxu0 0
  %46 = vmatprep.subr.bf16.mxu0 0
  %47 = vmatpush1.bf16.msra.mxu0 0
  %48 = vmatprep.subr.bf16.mxu0 0
  %49 = vmatpush1.bf16.msra.mxu0 0
  %50 = vmatprep.subr.bf16.mxu0 0
  %51 = vmatpush1.bf16.msra.mxu0 0
  %52 = vmatprep.subr.bf16.mxu0 0
  %53 = vmatpush1.bf16.msra.mxu0 0
  %54 = vmatprep.subr.bf16.mxu0 0
  %55 = vmatpush1.bf16.msra.mxu0 0
  %56 = vmatprep.subr.bf16.mxu0 0
  %57 = vmatpush1.bf16.msra.mxu0 %v37
  %58 = vmatprep.subr.bf16.mxu0 0
  %59 = vmatpush1.bf16.msra.mxu0 %v36
  %60 = vmatprep.subr.bf16.mxu0 0
  %61 = vmatpush2.bf16.msra.mxu0 0
  %62 = vmatprep.subr.bf16.mxu0 0
  %63 = vmatpush2.bf16.msra.mxu0 0
  %64 = vmatprep.subr.bf16.mxu0 0
  %65 = vmatpush2.bf16.msra.mxu0 0
  %66 = vmatprep.subr.bf16.mxu0 0
  %67 = vmatpush2.bf16.msra.mxu0 0
  %68 = vmatprep.subr.bf16.mxu0 0
  %69 = vmatpush2.bf16.msra.mxu0 0
  %70 = vmatprep.subr.bf16.mxu0 0
  %71 = vmatpush2.bf16.msra.mxu0 0
  %72 = vmatprep.subr.bf16.mxu0 0
  %73 = vmatpush2.bf16.msra.mxu0 0
  %74 = vmatprep.subr.bf16.mxu0 0
  %75 = vmatpush2.bf16.msra.mxu0 0
  %76 = vmatprep.mubr.bf16.mxu0 0
  %77 = vmatmul.mubr.bf16.gmra.mxu0 %v42
  %v78 = vpop.f32.mrf.mxu0
  %v79 = vadd.f32 %v26, %v78
  %v80 = vpop.f32.mrf.mxu0
  %v81 = vpop.f32.mrf.mxu0
  %v82 = vadd.f32 %v26, %v81
  %v83 = vpop.f32.mrf.mxu0
  %84 = vdwg.mxu0
  %v85 = vadd.f32 %v20, %v79
  %v86 = vadd.f32 %v21, %v82
  %v87 = vxor.u32 %v85, 2147483648
  %v88 = vxor.u32 %v86, 2147483648
  %v89 = vmul.f32 %v87, 1.442695
  %v90 = vpow.pop %v89
  %v91 = vmul.f32 %v88, 1.442695
  %v92 = vpow.pop %v91
  %v93 = vadd.f32 %v90, 1.0
  %v94 = vadd.f32 %v92, 1.0
  %v95 = vrcp.pop %v93
  %v96 = vmul.f32 1.0, %v95
  %v97 = vrcp.pop %v94
  %v98 = vmul.f32 1.0, %v97
  %101 = vrot.lane.b32.xlu0 %v79, 64
  %v102 = vpop.permute.xlu0 %101
  %103 = vrot.lane.b32.xlu0 %v82, 64
  %v104 = vpop.permute.xlu0 %103
  %v107 = vmul.f32 %v96, %v102
  %v108 = vmul.f32 %v98, %v104
  %111 = vrot.lane.b32.xlu0 %v107, 64
  %v112 = vpop.permute.xlu0 %111
  %113 = vrot.lane.b32.xlu0 %v108, 64
  %v114 = vpop.permute.xlu0 %113
  %v117 = vadd.f32 %v20, %v112
  %v118 = vadd.f32 %v21, %v114
  %v119 = vtanh.pop %v117
  %v120 = vtanh.pop %v118
  %v121 = vsub.f32 1.0, %v96
  %v122 = vsub.f32 1.0, %v98
  %125 = vrot.lane.b32.xlu0 %v119, 96
  %v126 = vpop.permute.xlu0 %125
  %127 = vrot.lane.b32.xlu0 %v120, 96
  %v128 = vpop.permute.xlu0 %127
  %v131 = vmul.f32 %v121, %v126
  %v132 = vmul.f32 %v122, %v128
  %v133 = vmul.f32 %v96, 0.0
  %v134 = vmul.f32 %v98, 0.0
  %v135 = vadd.f32 %v131, %v133
  %v136 = vadd.f32 %v132, %v134
  %s137 = scalar_lea.vmem %s0, 32
  %v138 = vld [vmem:[%s137] sm:$0xff]
  %v139 = vld [vmem:[%s137 + $0x10] sm:$0xf]
  %v140 = vpack.c.bf16 %v136, %v135
  %142 = vrot.lane.b32.xlu0 %v140, 96
  %v143 = vpop.permute.xlu0 %142
  %v145 = vsel %vm40, %v143, 0
  %147 = vmatprep.subr.bf16.mxu0 0
  %148 = vmatpush1.bf16.msra.mxu0 0
  %149 = vmatprep.subr.bf16.mxu0 0
  %150 = vmatpush1.bf16.msra.mxu0 0
  %151 = vmatprep.subr.bf16.mxu0 0
  %152 = vmatpush1.bf16.msra.mxu0 0
  %153 = vmatprep.subr.bf16.mxu0 0
  %154 = vmatpush1.bf16.msra.mxu0 0
  %155 = vmatprep.subr.bf16.mxu0 0
  %156 = vmatpush1.bf16.msra.mxu0 0
  %157 = vmatprep.subr.bf16.mxu0 0
  %158 = vmatpush1.bf16.msra.mxu0 0
  %159 = vmatprep.subr.bf16.mxu0 0
  %160 = vmatpush1.bf16.msra.mxu0 %v37
  %161 = vmatprep.subr.bf16.mxu0 0
  %162 = vmatpush1.bf16.msra.mxu0 %v36
  %163 = vmatprep.subr.bf16.mxu0 0
  %164 = vmatpush2.bf16.msra.mxu0 0
  %165 = vmatprep.subr.bf16.mxu0 0
  %166 = vmatpush2.bf16.msra.mxu0 0
  %167 = vmatprep.subr.bf16.mxu0 0
  %168 = vmatpush2.bf16.msra.mxu0 0
  %169 = vmatprep.subr.bf16.mxu0 0
  %170 = vmatpush2.bf16.msra.mxu0 0
  %171 = vmatprep.subr.bf16.mxu0 0
  %172 = vmatpush2.bf16.msra.mxu0 0
  %173 = vmatprep.subr.bf16.mxu0 0
  %174 = vmatpush2.bf16.msra.mxu0 0
  %175 = vmatprep.subr.bf16.mxu0 0
  %176 = vmatpush2.bf16.msra.mxu0 0
  %177 = vmatprep.subr.bf16.mxu0 0
  %178 = vmatpush2.bf16.msra.mxu0 0
  %179 = vmatprep.mubr.bf16.mxu0 0
  %180 = vmatmul.mubr.bf16.gmra.mxu0 %v145
  %v181 = vpop.f32.mrf.mxu0
  %v182 = vadd.f32 %v26, %v181
  %v183 = vpop.f32.mrf.mxu0
  %v184 = vpop.f32.mrf.mxu0
  %v185 = vadd.f32 %v26, %v184
  %v186 = vpop.f32.mrf.mxu0
  %187 = vdwg.mxu0
  %v188 = vadd.f32 %v138, %v182
  %v189 = vadd.f32 %v139, %v185
  %v190 = vxor.u32 %v188, 2147483648
  %v191 = vxor.u32 %v189, 2147483648
  %v192 = vmul.f32 %v190, 1.442695
  %v193 = vpow.pop %v192
  %v194 = vmul.f32 %v191, 1.442695
  %v195 = vpow.pop %v194
  %v196 = vadd.f32 %v193, 1.0
  %v197 = vadd.f32 %v195, 1.0
  %v198 = vrcp.pop %v196
  %v199 = vmul.f32 1.0, %v198
  %v200 = vrcp.pop %v197
  %v201 = vmul.f32 1.0, %v200
  %204 = vrot.lane.b32.xlu0 %v182, 64
  %v205 = vpop.permute.xlu0 %204
  %206 = vrot.lane.b32.xlu0 %v185, 64
  %v207 = vpop.permute.xlu0 %206
  %v210 = vmul.f32 %v199, %v205
  %v211 = vmul.f32 %v201, %v207
  %214 = vrot.lane.b32.xlu0 %v210, 64
  %v215 = vpop.permute.xlu0 %214
  %216 = vrot.lane.b32.xlu0 %v211, 64
  %v217 = vpop.permute.xlu0 %216
  %v220 = vadd.f32 %v138, %v215
  %v221 = vadd.f32 %v139, %v217
  %v222 = vtanh.pop %v220
  %v223 = vtanh.pop %v221
  %v224 = vsub.f32 1.0, %v199
  %v225 = vsub.f32 1.0, %v201
  %228 = vrot.lane.b32.xlu0 %v222, 96
  %v229 = vpop.permute.xlu0 %228
  %230 = vrot.lane.b32.xlu0 %v223, 96
  %v231 = vpop.permute.xlu0 %230
  %v234 = vmul.f32 %v224, %v229
  %v235 = vmul.f32 %v225, %v231
  %v236 = vmul.f32 %v199, %v135
  %v237 = vmul.f32 %v201, %v136
  %v238 = vadd.f32 %v234, %v236
  %v239 = vadd.f32 %v235, %v237
  %s240 = scalar_lea.vmem %s0, 64
  %v241 = vld [vmem:[%s240] sm:$0xff]
  %v242 = vld [vmem:[%s240 + $0x10] sm:$0xf]
  %v243 = vpack.c.bf16 %v239, %v238
  %245 = vrot.lane.b32.xlu0 %v243, 96
  %v246 = vpop.permute.xlu0 %245
  %v248 = vsel %vm40, %v246, 0
  %250 = vmatprep.subr.bf16.mxu0 0
  %251 = vmatpush1.bf16.msra.mxu0 0
  %252 = vmatprep.subr.bf16.mxu0 0
  %253 = vmatpush1.bf16.msra.mxu0 0
  %254 = vmatprep.subr.bf16.mxu0 0
  %255 = vmatpush1.bf16.msra.mxu0 0
  %256 = vmatprep.subr.bf16.mxu0 0
  %257 = vmatpush1.bf16.msra.mxu0 0
  %258 = vmatprep.subr.bf16.mxu0 0
  %259 = vmatpush1.bf16.msra.mxu0 0
  %260 = vmatprep.subr.bf16.mxu0 0
  %261 = vmatpush1.bf16.msra.mxu0 0
  %262 = vmatprep.subr.bf16.mxu0 0
  %263 = vmatpush1.bf16.msra.mxu0 %v37
  %264 = vmatprep.subr.bf16.mxu0 0
  %265 = vmatpush1.bf16.msra.mxu0 %v36
  %266 = vmatprep.subr.bf16.mxu0 0
  %267 = vmatpush2.bf16.msra.mxu0 0
  %268 = vmatprep.subr.bf16.mxu0 0
  %269 = vmatpush2.bf16.msra.mxu0 0
  %270 = vmatprep.subr.bf16.mxu0 0
  %271 = vmatpush2.bf16.msra.mxu0 0
  %272 = vmatprep.subr.bf16.mxu0 0
  %273 = vmatpush2.bf16.msra.mxu0 0
  %274 = vmatprep.subr.bf16.mxu0 0
  %275 = vmatpush2.bf16.msra.mxu0 0
  %276 = vmatprep.subr.bf16.mxu0 0
  %277 = vmatpush2.bf16.msra.mxu0 0
  %278 = vmatprep.subr.bf16.mxu0 0
  %279 = vmatpush2.bf16.msra.mxu0 0
  %280 = vmatprep.subr.bf16.mxu0 0
  %281 = vmatpush2.bf16.msra.mxu0 0
  %282 = vmatprep.mubr.bf16.mxu0 0
  %283 = vmatmul.mubr.bf16.gmra.mxu0 %v248
  %v284 = vpop.f32.mrf.mxu0
  %v285 = vadd.f32 %v26, %v284
  %v286 = vpop.f32.mrf.mxu0
  %v287 = vpop.f32.mrf.mxu0
  %v288 = vadd.f32 %v26, %v287
  %v289 = vpop.f32.mrf.mxu0
  %290 = vdwg.mxu0
  %v291 = vadd.f32 %v241, %v285
  %v292 = vadd.f32 %v242, %v288
  %v293 = vxor.u32 %v291, 2147483648
  %v294 = vxor.u32 %v292, 2147483648
  %v295 = vmul.f32 %v293, 1.442695
  %v296 = vpow.pop %v295
  %v297 = vmul.f32 %v294, 1.442695
  %v298 = vpow.pop %v297
  %v299 = vadd.f32 %v296, 1.0
  %v300 = vadd.f32 %v298, 1.0
  %v301 = vrcp.pop %v299
  %v302 = vmul.f32 1.0, %v301
  %v303 = vrcp.pop %v300
  %v304 = vmul.f32 1.0, %v303
  %307 = vrot.lane.b32.xlu0 %v285, 64
  %v308 = vpop.permute.xlu0 %307
  %309 = vrot.lane.b32.xlu0 %v288, 64
  %v310 = vpop.permute.xlu0 %309
  %v313 = vmul.f32 %v302, %v308
  %v314 = vmul.f32 %v304, %v310
  %317 = vrot.lane.b32.xlu0 %v313, 64
  %v318 = vpop.permute.xlu0 %317
  %319 = vrot.lane.b32.xlu0 %v314, 64
  %v320 = vpop.permute.xlu0 %319
  %v323 = vadd.f32 %v241, %v318
  %v324 = vadd.f32 %v242, %v320
  %v325 = vtanh.pop %v323
  %v326 = vtanh.pop %v324
  %v327 = vsub.f32 1.0, %v302
  %v328 = vsub.f32 1.0, %v304
  %331 = vrot.lane.b32.xlu0 %v325, 96
  %v332 = vpop.permute.xlu0 %331
  %333 = vrot.lane.b32.xlu0 %v326, 96
  %v334 = vpop.permute.xlu0 %333
  %v337 = vmul.f32 %v327, %v332
  %v338 = vmul.f32 %v328, %v334
  %v339 = vmul.f32 %v302, %v238
  %v340 = vmul.f32 %v304, %v239
  %v341 = vadd.f32 %v337, %v339
  %v342 = vadd.f32 %v338, %v340
  %s343 = scalar_lea.vmem %s0, 96
  %v344 = vld [vmem:[%s343] sm:$0xff]
  %v345 = vld [vmem:[%s343 + $0x10] sm:$0xf]
  %v346 = vpack.c.bf16 %v342, %v341
  %348 = vrot.lane.b32.xlu0 %v346, 96
  %v349 = vpop.permute.xlu0 %348
  %v351 = vsel %vm40, %v349, 0
  %353 = vmatprep.subr.bf16.mxu0 0
  %354 = vmatpush1.bf16.msra.mxu0 0
  %355 = vmatprep.subr.bf16.mxu0 0
  %356 = vmatpush1.bf16.msra.mxu0 0
  %357 = vmatprep.subr.bf16.mxu0 0
  %358 = vmatpush1.bf16.msra.mxu0 0
  %359 = vmatprep.subr.bf16.mxu0 0
  %360 = vmatpush1.bf16.msra.mxu0 0
  %361 = vmatprep.subr.bf16.mxu0 0
  %362 = vmatpush1.bf16.msra.mxu0 0
  %363 = vmatprep.subr.bf16.mxu0 0
  %364 = vmatpush1.bf16.msra.mxu0 0
  %365 = vmatprep.subr.bf16.mxu0 0
  %366 = vmatpush1.bf16.msra.mxu0 %v37
  %367 = vmatprep.subr.bf16.mxu0 0
  %368 = vmatpush1.bf16.msra.mxu0 %v36
  %369 = vmatprep.subr.bf16.mxu0 0
  %370 = vmatpush2.bf16.msra.mxu0 0
  %371 = vmatprep.subr.bf16.mxu0 0
  %372 = vmatpush2.bf16.msra.mxu0 0
  %373 = vmatprep.subr.bf16.mxu0 0
  %374 = vmatpush2.bf16.msra.mxu0 0
  %375 = vmatprep.subr.bf16.mxu0 0
  %376 = vmatpush2.bf16.msra.mxu0 0
  %377 = vmatprep.subr.bf16.mxu0 0
  %378 = vmatpush2.bf16.msra.mxu0 0
  %379 = vmatprep.subr.bf16.mxu0 0
  %380 = vmatpush2.bf16.msra.mxu0 0
  %381 = vmatprep.subr.bf16.mxu0 0
  %382 = vmatpush2.bf16.msra.mxu0 0
  %383 = vmatprep.subr.bf16.mxu0 0
  %384 = vmatpush2.bf16.msra.mxu0 0
  %385 = vmatprep.mubr.bf16.mxu0 0
  %386 = vmatmul.mubr.bf16.gmra.mxu0 %v351
  %v387 = vpop.f32.mrf.mxu0
  %v388 = vadd.f32 %v26, %v387
  %v389 = vpop.f32.mrf.mxu0
  %v390 = vpop.f32.mrf.mxu0
  %v391 = vadd.f32 %v26, %v390
  %v392 = vpop.f32.mrf.mxu0
  %393 = vdwg.mxu0
  %v394 = vadd.f32 %v344, %v388
  %v395 = vadd.f32 %v345, %v391
  %v396 = vxor.u32 %v394, 2147483648
  %v397 = vxor.u32 %v395, 2147483648
  %v398 = vmul.f32 %v396, 1.442695
  %v399 = vpow.pop %v398
  %v400 = vmul.f32 %v397, 1.442695
  %v401 = vpow.pop %v400
  %v402 = vadd.f32 %v399, 1.0
  %v403 = vadd.f32 %v401, 1.0
  %v404 = vrcp.pop %v402
  %v405 = vmul.f32 1.0, %v404
  %v406 = vrcp.pop %v403
  %v407 = vmul.f32 1.0, %v406
  %410 = vrot.lane.b32.xlu0 %v388, 64
  %v411 = vpop.permute.xlu0 %410
  %412 = vrot.lane.b32.xlu0 %v391, 64
  %v413 = vpop.permute.xlu0 %412
  %v416 = vmul.f32 %v405, %v411
  %v417 = vmul.f32 %v407, %v413
  %420 = vrot.lane.b32.xlu0 %v416, 64
  %v421 = vpop.permute.xlu0 %420
  %422 = vrot.lane.b32.xlu0 %v417, 64
  %v423 = vpop.permute.xlu0 %422
  %v426 = vadd.f32 %v344, %v421
  %v427 = vadd.f32 %v345, %v423
  %v428 = vtanh.pop %v426
  %v429 = vtanh.pop %v427
  %v430 = vsub.f32 1.0, %v405
  %v431 = vsub.f32 1.0, %v407
  %434 = vrot.lane.b32.xlu0 %v428, 96
  %v435 = vpop.permute.xlu0 %434
  %436 = vrot.lane.b32.xlu0 %v429, 96
  %v437 = vpop.permute.xlu0 %436
  %v440 = vmul.f32 %v430, %v435
  %v441 = vmul.f32 %v431, %v437
  %v442 = vmul.f32 %v405, %v341
  %v443 = vmul.f32 %v407, %v342
  %v444 = vadd.f32 %v440, %v442
  %v445 = vadd.f32 %v441, %v443
  %s446 = scalar_lea.vmem %s0, 128
  %v447 = vld [vmem:[%s446] sm:$0xff]
  %v448 = vld [vmem:[%s446 + $0x10] sm:$0xf]
  %v449 = vpack.c.bf16 %v445, %v444
  %451 = vrot.lane.b32.xlu0 %v449, 96
  %v452 = vpop.permute.xlu0 %451
  %v454 = vsel %vm40, %v452, 0
  %456 = vmatprep.subr.bf16.mxu0 0
  %457 = vmatpush1.bf16.msra.mxu0 0
  %458 = vmatprep.subr.bf16.mxu0 0
  %459 = vmatpush1.bf16.msra.mxu0 0
  %460 = vmatprep.subr.bf16.mxu0 0
  %461 = vmatpush1.bf16.msra.mxu0 0
  %462 = vmatprep.subr.bf16.mxu0 0
  %463 = vmatpush1.bf16.msra.mxu0 0
  %464 = vmatprep.subr.bf16.mxu0 0
  %465 = vmatpush1.bf16.msra.mxu0 0
  %466 = vmatprep.subr.bf16.mxu0 0
  %467 = vmatpush1.bf16.msra.mxu0 0
  %468 = vmatprep.subr.bf16.mxu0 0
  %469 = vmatpush1.bf16.msra.mxu0 %v37
  %470 = vmatprep.subr.bf16.mxu0 0
  %471 = vmatpush1.bf16.msra.mxu0 %v36
  %472 = vmatprep.subr.bf16.mxu0 0
  %473 = vmatpush2.bf16.msra.mxu0 0
  %474 = vmatprep.subr.bf16.mxu0 0
  %475 = vmatpush2.bf16.msra.mxu0 0
  %476 = vmatprep.subr.bf16.mxu0 0
  %477 = vmatpush2.bf16.msra.mxu0 0
  %478 = vmatprep.subr.bf16.mxu0 0
  %479 = vmatpush2.bf16.msra.mxu0 0
  %480 = vmatprep.subr.bf16.mxu0 0
  %481 = vmatpush2.bf16.msra.mxu0 0
  %482 = vmatprep.subr.bf16.mxu0 0
  %483 = vmatpush2.bf16.msra.mxu0 0
  %484 = vmatprep.subr.bf16.mxu0 0
  %485 = vmatpush2.bf16.msra.mxu0 0
  %486 = vmatprep.subr.bf16.mxu0 0
  %487 = vmatpush2.bf16.msra.mxu0 0
  %488 = vmatprep.mubr.bf16.mxu0 0
  %489 = vmatmul.mubr.bf16.gmra.mxu0 %v454
  %v490 = vpop.f32.mrf.mxu0
  %v491 = vadd.f32 %v26, %v490
  %v492 = vpop.f32.mrf.mxu0
  %v493 = vpop.f32.mrf.mxu0
  %v494 = vadd.f32 %v26, %v493
  %v495 = vpop.f32.mrf.mxu0
  %496 = vdwg.mxu0
  %v497 = vadd.f32 %v447, %v491
  %v498 = vadd.f32 %v448, %v494
  %v499 = vxor.u32 %v497, 2147483648
  %v500 = vxor.u32 %v498, 2147483648
  %v501 = vmul.f32 %v499, 1.442695
  %v502 = vpow.pop %v501
  %v503 = vmul.f32 %v500, 1.442695
  %v504 = vpow.pop %v503
  %v505 = vadd.f32 %v502, 1.0
  %v506 = vadd.f32 %v504, 1.0
  %v507 = vrcp.pop %v505
  %v508 = vmul.f32 1.0, %v507
  %v509 = vrcp.pop %v506
  %v510 = vmul.f32 1.0, %v509
  %513 = vrot.lane.b32.xlu0 %v491, 64
  %v514 = vpop.permute.xlu0 %513
  %515 = vrot.lane.b32.xlu0 %v494, 64
  %v516 = vpop.permute.xlu0 %515
  %v519 = vmul.f32 %v508, %v514
  %v520 = vmul.f32 %v510, %v516
  %523 = vrot.lane.b32.xlu0 %v519, 64
  %v524 = vpop.permute.xlu0 %523
  %525 = vrot.lane.b32.xlu0 %v520, 64
  %v526 = vpop.permute.xlu0 %525
  %v529 = vadd.f32 %v447, %v524
  %v530 = vadd.f32 %v448, %v526
  %v531 = vtanh.pop %v529
  %v532 = vtanh.pop %v530
  %v533 = vsub.f32 1.0, %v508
  %v534 = vsub.f32 1.0, %v510
  %537 = vrot.lane.b32.xlu0 %v531, 96
  %v538 = vpop.permute.xlu0 %537
  %539 = vrot.lane.b32.xlu0 %v532, 96
  %v540 = vpop.permute.xlu0 %539
  %v543 = vmul.f32 %v533, %v538
  %v544 = vmul.f32 %v534, %v540
  %v545 = vmul.f32 %v508, %v444
  %v546 = vmul.f32 %v510, %v445
  %v547 = vadd.f32 %v543, %v545
  %v548 = vadd.f32 %v544, %v546
  %s549 = scalar_lea.vmem %s0, 160
  %v550 = vld [vmem:[%s549] sm:$0xff]
  %v551 = vld [vmem:[%s549 + $0x10] sm:$0xf]
  %v552 = vpack.c.bf16 %v548, %v547
  %554 = vrot.lane.b32.xlu0 %v552, 96
  %v555 = vpop.permute.xlu0 %554
  %v557 = vsel %vm40, %v555, 0
  %559 = vmatprep.subr.bf16.mxu0 0
  %560 = vmatpush1.bf16.msra.mxu0 0
  %561 = vmatprep.subr.bf16.mxu0 0
  %562 = vmatpush1.bf16.msra.mxu0 0
  %563 = vmatprep.subr.bf16.mxu0 0
  %564 = vmatpush1.bf16.msra.mxu0 0
  %565 = vmatprep.subr.bf16.mxu0 0
  %566 = vmatpush1.bf16.msra.mxu0 0
  %567 = vmatprep.subr.bf16.mxu0 0
  %568 = vmatpush1.bf16.msra.mxu0 0
  %569 = vmatprep.subr.bf16.mxu0 0
  %570 = vmatpush1.bf16.msra.mxu0 0
  %571 = vmatprep.subr.bf16.mxu0 0
  %572 = vmatpush1.bf16.msra.mxu0 %v37
  %573 = vmatprep.subr.bf16.mxu0 0
  %574 = vmatpush1.bf16.msra.mxu0 %v36
  %575 = vmatprep.subr.bf16.mxu0 0
  %576 = vmatpush2.bf16.msra.mxu0 0
  %577 = vmatprep.subr.bf16.mxu0 0
  %578 = vmatpush2.bf16.msra.mxu0 0
  %579 = vmatprep.subr.bf16.mxu0 0
  %580 = vmatpush2.bf16.msra.mxu0 0
  %581 = vmatprep.subr.bf16.mxu0 0
  %582 = vmatpush2.bf16.msra.mxu0 0
  %583 = vmatprep.subr.bf16.mxu0 0
  %584 = vmatpush2.bf16.msra.mxu0 0
  %585 = vmatprep.subr.bf16.mxu0 0
  %586 = vmatpush2.bf16.msra.mxu0 0
  %587 = vmatprep.subr.bf16.mxu0 0
  %588 = vmatpush2.bf16.msra.mxu0 0
  %589 = vmatprep.subr.bf16.mxu0 0
  %590 = vmatpush2.bf16.msra.mxu0 0
  %591 = vmatprep.mubr.bf16.mxu0 0
  %592 = vmatmul.mubr.bf16.gmra.mxu0 %v557
  %v593 = vpop.f32.mrf.mxu0
  %v594 = vadd.f32 %v26, %v593
  %v595 = vpop.f32.mrf.mxu0
  %v596 = vpop.f32.mrf.mxu0
  %v597 = vadd.f32 %v26, %v596
  %v598 = vpop.f32.mrf.mxu0
  %599 = vdwg.mxu0
  %v600 = vadd.f32 %v550, %v594
  %v601 = vadd.f32 %v551, %v597
  %v602 = vxor.u32 %v600, 2147483648
  %v603 = vxor.u32 %v601, 2147483648
  %v604 = vmul.f32 %v602, 1.442695
  %v605 = vpow.pop %v604
  %v606 = vmul.f32 %v603, 1.442695
  %v607 = vpow.pop %v606
  %v608 = vadd.f32 %v605, 1.0
  %v609 = vadd.f32 %v607, 1.0
  %v610 = vrcp.pop %v608
  %v611 = vmul.f32 1.0, %v610
  %v612 = vrcp.pop %v609
  %v613 = vmul.f32 1.0, %v612
  %616 = vrot.lane.b32.xlu0 %v594, 64
  %v617 = vpop.permute.xlu0 %616
  %618 = vrot.lane.b32.xlu0 %v597, 64
  %v619 = vpop.permute.xlu0 %618
  %v622 = vmul.f32 %v611, %v617
  %v623 = vmul.f32 %v613, %v619
  %626 = vrot.lane.b32.xlu0 %v622, 64
  %v627 = vpop.permute.xlu0 %626
  %628 = vrot.lane.b32.xlu0 %v623, 64
  %v629 = vpop.permute.xlu0 %628
  %v632 = vadd.f32 %v550, %v627
  %v633 = vadd.f32 %v551, %v629
  %v634 = vtanh.pop %v632
  %v635 = vtanh.pop %v633
  %v636 = vsub.f32 1.0, %v611
  %v637 = vsub.f32 1.0, %v613
  %640 = vrot.lane.b32.xlu0 %v634, 96
  %v641 = vpop.permute.xlu0 %640
  %642 = vrot.lane.b32.xlu0 %v635, 96
  %v643 = vpop.permute.xlu0 %642
  %v646 = vmul.f32 %v636, %v641
  %v647 = vmul.f32 %v637, %v643
  %v648 = vmul.f32 %v611, %v547
  %v649 = vmul.f32 %v613, %v548
  %v650 = vadd.f32 %v646, %v648
  %v651 = vadd.f32 %v647, %v649
  %s652 = scalar_lea.vmem %s0, 192
  %v653 = vld [vmem:[%s652] sm:$0xff]
  %v654 = vld [vmem:[%s652 + $0x10] sm:$0xf]
  %v655 = vpack.c.bf16 %v651, %v650
  %657 = vrot.lane.b32.xlu0 %v655, 96
  %v658 = vpop.permute.xlu0 %657
  %v660 = vsel %vm40, %v658, 0
  %662 = vmatprep.subr.bf16.mxu0 0
  %663 = vmatpush1.bf16.msra.mxu0 0
  %664 = vmatprep.subr.bf16.mxu0 0
  %665 = vmatpush1.bf16.msra.mxu0 0
  %666 = vmatprep.subr.bf16.mxu0 0
  %667 = vmatpush1.bf16.msra.mxu0 0
  %668 = vmatprep.subr.bf16.mxu0 0
  %669 = vmatpush1.bf16.msra.mxu0 0
  %670 = vmatprep.subr.bf16.mxu0 0
  %671 = vmatpush1.bf16.msra.mxu0 0
  %672 = vmatprep.subr.bf16.mxu0 0
  %673 = vmatpush1.bf16.msra.mxu0 0
  %674 = vmatprep.subr.bf16.mxu0 0
  %675 = vmatpush1.bf16.msra.mxu0 %v37
  %676 = vmatprep.subr.bf16.mxu0 0
  %677 = vmatpush1.bf16.msra.mxu0 %v36
  %678 = vmatprep.subr.bf16.mxu0 0
  %679 = vmatpush2.bf16.msra.mxu0 0
  %680 = vmatprep.subr.bf16.mxu0 0
  %681 = vmatpush2.bf16.msra.mxu0 0
  %682 = vmatprep.subr.bf16.mxu0 0
  %683 = vmatpush2.bf16.msra.mxu0 0
  %684 = vmatprep.subr.bf16.mxu0 0
  %685 = vmatpush2.bf16.msra.mxu0 0
  %686 = vmatprep.subr.bf16.mxu0 0
  %687 = vmatpush2.bf16.msra.mxu0 0
  %688 = vmatprep.subr.bf16.mxu0 0
  %689 = vmatpush2.bf16.msra.mxu0 0
  %690 = vmatprep.subr.bf16.mxu0 0
  %691 = vmatpush2.bf16.msra.mxu0 0
  %692 = vmatprep.subr.bf16.mxu0 0
  %693 = vmatpush2.bf16.msra.mxu0 0
  %694 = vmatprep.mubr.bf16.mxu0 0
  %695 = vmatmul.mubr.bf16.gmra.mxu0 %v660
  %v696 = vpop.f32.mrf.mxu0
  %v697 = vadd.f32 %v26, %v696
  %v698 = vpop.f32.mrf.mxu0
  %v699 = vpop.f32.mrf.mxu0
  %v700 = vadd.f32 %v26, %v699
  %v701 = vpop.f32.mrf.mxu0
  %702 = vdwg.mxu0
  %v703 = vadd.f32 %v653, %v697
  %v704 = vadd.f32 %v654, %v700
  %v705 = vxor.u32 %v703, 2147483648
  %v706 = vxor.u32 %v704, 2147483648
  %v707 = vmul.f32 %v705, 1.442695
  %v708 = vpow.pop %v707
  %v709 = vmul.f32 %v706, 1.442695
  %v710 = vpow.pop %v709
  %v711 = vadd.f32 %v708, 1.0
  %v712 = vadd.f32 %v710, 1.0
  %v713 = vrcp.pop %v711
  %v714 = vmul.f32 1.0, %v713
  %v715 = vrcp.pop %v712
  %v716 = vmul.f32 1.0, %v715
  %719 = vrot.lane.b32.xlu0 %v697, 64
  %v720 = vpop.permute.xlu0 %719
  %721 = vrot.lane.b32.xlu0 %v700, 64
  %v722 = vpop.permute.xlu0 %721
  %v725 = vmul.f32 %v714, %v720
  %v726 = vmul.f32 %v716, %v722
  %729 = vrot.lane.b32.xlu0 %v725, 64
  %v730 = vpop.permute.xlu0 %729
  %731 = vrot.lane.b32.xlu0 %v726, 64
  %v732 = vpop.permute.xlu0 %731
  %v735 = vadd.f32 %v653, %v730
  %v736 = vadd.f32 %v654, %v732
  %v737 = vtanh.pop %v735
  %v738 = vtanh.pop %v736
  %v739 = vsub.f32 1.0, %v714
  %v740 = vsub.f32 1.0, %v716
  %743 = vrot.lane.b32.xlu0 %v737, 96
  %v744 = vpop.permute.xlu0 %743
  %745 = vrot.lane.b32.xlu0 %v738, 96
  %v746 = vpop.permute.xlu0 %745
  %v749 = vmul.f32 %v739, %v744
  %v750 = vmul.f32 %v740, %v746
  %v751 = vmul.f32 %v714, %v650
  %v752 = vmul.f32 %v716, %v651
  %v753 = vadd.f32 %v749, %v751
  %v754 = vadd.f32 %v750, %v752
  %s755 = scalar_lea.vmem %s0, 224
  %v756 = vld [vmem:[%s755] sm:$0xff]
  %v757 = vld [vmem:[%s755 + $0x8] sm:$0xff]
  %v758 = vld [vmem:[%s755 + $0x10] sm:$0xf]
  %v759 = vld [vmem:[%s755 + $0x18] sm:$0xf]
  %v760 = vpack.c.bf16 %v754, %v753
  %762 = vrot.lane.b32.xlu0 %v760, 96
  %v763 = vpop.permute.xlu0 %762
  %v765 = vsel %vm40, %v763, 0
  %767 = vmatprep.subr.bf16.mxu0 0
  %768 = vmatpush1.bf16.msra.mxu0 0
  %769 = vmatprep.subr.bf16.mxu0 0
  %770 = vmatpush1.bf16.msra.mxu0 0
  %771 = vmatprep.subr.bf16.mxu0 0
  %772 = vmatpush1.bf16.msra.mxu0 0
  %773 = vmatprep.subr.bf16.mxu0 0
  %774 = vmatpush1.bf16.msra.mxu0 0
  %775 = vmatprep.subr.bf16.mxu0 0
  %776 = vmatpush1.bf16.msra.mxu0 0
  %777 = vmatprep.subr.bf16.mxu0 0
  %778 = vmatpush1.bf16.msra.mxu0 0
  %779 = vmatprep.subr.bf16.mxu0 0
  %780 = vmatpush1.bf16.msra.mxu0 %v37
  %781 = vmatprep.subr.bf16.mxu0 0
  %782 = vmatpush1.bf16.msra.mxu0 %v36
  %783 = vmatprep.subr.bf16.mxu0 0
  %784 = vmatpush2.bf16.msra.mxu0 0
  %785 = vmatprep.subr.bf16.mxu0 0
  %786 = vmatpush2.bf16.msra.mxu0 0
  %787 = vmatprep.subr.bf16.mxu0 0
  %788 = vmatpush2.bf16.msra.mxu0 0
  %789 = vmatprep.subr.bf16.mxu0 0
  %790 = vmatpush2.bf16.msra.mxu0 0
  %791 = vmatprep.subr.bf16.mxu0 0
  %792 = vmatpush2.bf16.msra.mxu0 0
  %793 = vmatprep.subr.bf16.mxu0 0
  %794 = vmatpush2.bf16.msra.mxu0 0
  %795 = vmatprep.subr.bf16.mxu0 0
  %796 = vmatpush2.bf16.msra.mxu0 0
  %797 = vmatprep.subr.bf16.mxu0 0
  %798 = vmatpush2.bf16.msra.mxu0 0
  %799 = vmatprep.mubr.bf16.mxu0 0
  %800 = vmatmul.mubr.bf16.gmra.mxu0 %v765
  %v801 = vpop.f32.mrf.mxu0
  %v802 = vadd.f32 %v26, %v801
  %v803 = vpop.f32.mrf.mxu0
  %v804 = vpop.f32.mrf.mxu0
  %v805 = vadd.f32 %v26, %v804
  %v806 = vpop.f32.mrf.mxu0
  %807 = vdwg.mxu0
  %v808 = vadd.f32 %v756, %v802
  %v809 = vadd.f32 %v758, %v805
  %v810 = vxor.u32 %v808, 2147483648
  %v811 = vxor.u32 %v809, 2147483648
  %v812 = vmul.f32 %v810, 1.442695
  %v813 = vpow.pop %v812
  %v814 = vmul.f32 %v811, 1.442695
  %v815 = vpow.pop %v814
  %v816 = vadd.f32 %v813, 1.0
  %v817 = vadd.f32 %v815, 1.0
  %v818 = vrcp.pop %v816
  %v819 = vmul.f32 1.0, %v818
  %v820 = vrcp.pop %v817
  %v821 = vmul.f32 1.0, %v820
  %824 = vrot.lane.b32.xlu0 %v802, 64
  %v825 = vpop.permute.xlu0 %824
  %826 = vrot.lane.b32.xlu0 %v805, 64
  %v827 = vpop.permute.xlu0 %826
  %v830 = vmul.f32 %v819, %v825
  %v831 = vmul.f32 %v821, %v827
  %834 = vrot.lane.b32.xlu0 %v830, 64
  %v835 = vpop.permute.xlu0 %834
  %836 = vrot.lane.b32.xlu0 %v831, 64
  %v837 = vpop.permute.xlu0 %836
  %v840 = vadd.f32 %v756, %v835
  %v841 = vadd.f32 %v758, %v837
  %v842 = vtanh.pop %v840
  %v843 = vtanh.pop %v841
  %v844 = vsub.f32 1.0, %v819
  %v845 = vsub.f32 1.0, %v821
  %848 = vrot.lane.b32.xlu0 %v842, 96
  %v849 = vpop.permute.xlu0 %848
  %850 = vrot.lane.b32.xlu0 %v843, 96
  %v851 = vpop.permute.xlu0 %850
  %v854 = vmul.f32 %v844, %v849
  %v855 = vmul.f32 %v845, %v851
  %v856 = vmul.f32 %v819, %v753
  %v857 = vmul.f32 %v821, %v754
  %v858 = vadd.f32 %v854, %v856
  %v859 = vadd.f32 %v855, %v857
  %s860 = scalar_lea.vmem %s2, 1
  %v861 = vld [vmem:[%s860] sm:$0x1]
  %v863 = vlaneseq
  %v864 = vshrl.u32 %v863, 7
  %v865 = vsub.s32 0, %v864
  %v866 = vrot.slane %v861, %v865
  %v868 = vadd.f32 %v757, %v866
  %v869 = vadd.f32 %v759, %v866
  %v870 = vxor.u32 %v868, 2147483648
  %v871 = vxor.u32 %v869, 2147483648
  %v872 = vmul.f32 %v870, 1.442695
  %v873 = vpow.pop %v872
  %v874 = vmul.f32 %v871, 1.442695
  %v875 = vpow.pop %v874
  %v876 = vadd.f32 %v873, 1.0
  %v877 = vadd.f32 %v875, 1.0
  %v878 = vrcp.pop %v876
  %v879 = vmul.f32 1.0, %v878
  %v880 = vrcp.pop %v877
  %v881 = vmul.f32 1.0, %v880
  %882 = vrot.lane.b32.xlu0 %v866, 64
  %v883 = vpop.permute.xlu0 %882
  %v885 = vmul.f32 %v879, %v883
  %v886 = vmul.f32 %v881, %v883
  %889 = vrot.lane.b32.xlu0 %v885, 64
  %v890 = vpop.permute.xlu0 %889
  %891 = vrot.lane.b32.xlu0 %v886, 64
  %v892 = vpop.permute.xlu0 %891
  %v895 = vadd.f32 %v757, %v890
  %v896 = vadd.f32 %v759, %v892
  %v897 = vtanh.pop %v895
  %v898 = vtanh.pop %v896
  %v899 = vsub.f32 1.0, %v879
  %v900 = vsub.f32 1.0, %v881
  %903 = vrot.lane.b32.xlu0 %v897, 96
  %v904 = vpop.permute.xlu0 %903
  %905 = vrot.lane.b32.xlu0 %v898, 96
  %v906 = vpop.permute.xlu0 %905
  %v909 = vmul.f32 %v899, %v904
  %v910 = vmul.f32 %v900, %v906
  %913 = vrot.lane.b32.xlu0 %v858, 96
  %v914 = vpop.permute.xlu0 %913
  %915 = vrot.lane.b32.xlu0 %v859, 96
  %v916 = vpop.permute.xlu0 %915
  %v919 = vsel %vm40, %v914, %v909
  %v920 = vsel %vm40, %v916, %v910
  %vm921 = vcmask 523264
  %922 = vst.msk [vmem:[%s3] sm:$0xff] %vm921, %v919
  %vm923 = vcmask 519168
  %924 = vst.msk [vmem:[%s3 + $0x8] sm:$0xf] %vm923, %v920
  // Predicated region
  $region14: #{sequence_taggle_forward.8} parent=0 // pred_check
    _
  $region15: #{sequence_taggle_forward.8} parent=0 // pred_check_branch
    %926 = sbr.rel (0) target = $region17
  $region16: #{sequence_taggle_forward.8} parent=0 // pred_region
    _
  $region17: #{sequence_taggle_forward.8} parent=0 // pred_fallthru
    _
  // Predicated region
  $region18: #{sequence_taggle_forward.8} parent=0 // pred_check
    _
  $region19: #{sequence_taggle_forward.8} parent=0 // pred_check_branch
    %928 = sbr.rel (0) target = $region21
  $region20: #{sequence_taggle_forward.8} parent=0 // pred_region
    _
  $region21: #{sequence_taggle_forward.8} parent=0 // pred_fallthru
    _

// kernel: sequence_taggle_forward.11
$region0: #{sequence_taggle_forward.11}
  #allocation0 [shape = 'u32[]', space=smem, size = 0x4, offset = 0x4, fixed_abs, tag = 'smem constant byte address 0x4 - core index']
  #allocation1 [shape = 'u32[144,128]{1,0:T(1,128)}', space=vmem, size = 0x12000, scoped, tag = 'internal scratch']
  %s0 = inlined_call_operand.vmem [shape: f32[12,32], index: 0, kind: input, shape index: {}]
  %s1 = inlined_call_operand.vmem [shape: f32[12,32], index: 1, kind: input, shape index: {}]
  %s2 = inlined_call_operand.vmem [shape: f32[1,32], index: 2, kind: input, shape index: {}]
  %s3 = inlined_call_operand.vmem [shape: f32[1,32], index: 3, kind: input, shape index: {}]
  %s4 = inlined_call_operand.vmem [shape: bf16[32,256], index: 4, kind: input, shape index: {}]
  %s5 = inlined_call_operand.vmem [shape: bf16[32,256], index: 5, kind: input, shape index: {}]
  %s6 = inlined_call_operand.vmem [shape: f32[1,256], index: 6, kind: input, shape index: {}]
  %s7 = inlined_call_operand.vmem [shape: f32[12,256], index: 7, kind: output, shape index: {}]
  %s8 = sld [smem:[#allocation0]]
  $region38: #{sequence_taggle_forward.11} parent=0
    _
  %s10 = ssub.s32 1, %s8
  %s11 = scalar_select 0, %s10, %s8
  // Predicated region
  $region2: #{sequence_taggle_forward.11} parent=0 // pred_check
    _
  $region3: #{sequence_taggle_forward.11} parent=0 // pred_check_branch
    %13 = sbr.rel (0) target = $region5
  $region4: #{sequence_taggle_forward.11} parent=0 // pred_region
    _
  $region5: #{sequence_taggle_forward.11} parent=0 // pred_fallthru
    _
  // Predicated region
  $region6: #{sequence_taggle_forward.11} parent=0 // pred_check
    _
  $region7: #{sequence_taggle_forward.11} parent=0 // pred_check_branch
    %15 = sbr.rel (0) target = $region9
  $region8: #{sequence_taggle_forward.11} parent=0 // pred_region
    _
  $region9: #{sequence_taggle_forward.11} parent=0 // pred_fallthru
    _
  // Predicated region
  $region10: #{sequence_taggle_forward.11} parent=0 // pred_check
    _
  $region11: #{sequence_taggle_forward.11} parent=0 // pred_check_branch
    %17 = sbr.rel (0) target = $region13
  $region12: #{sequence_taggle_forward.11} parent=0 // pred_region
    _
  $region13: #{sequence_taggle_forward.11} parent=0 // pred_fallthru
    _
  // Predicated region
  $region14: #{sequence_taggle_forward.11} parent=0 // pred_check
    _
  $region15: #{sequence_taggle_forward.11} parent=0 // pred_check_branch
    %19 = sbr.rel (0) target = $region17
  $region16: #{sequence_taggle_forward.11} parent=0 // pred_region
    _
  $region17: #{sequence_taggle_forward.11} parent=0 // pred_fallthru
    _
  // Predicated region
  $region18: #{sequence_taggle_forward.11} parent=0 // pred_check
    _
  $region19: #{sequence_taggle_forward.11} parent=0 // pred_check_branch
    %21 = sbr.rel (0) target = $region21
  $region20: #{sequence_taggle_forward.11} parent=0 // pred_region
    _
  $region21: #{sequence_taggle_forward.11} parent=0 // pred_fallthru
    _
  // Predicated region
  $region22: #{sequence_taggle_forward.11} parent=0 // pred_check
    _
  $region23: #{sequence_taggle_forward.11} parent=0 // pred_check_branch
    %23 = sbr.rel (0) target = $region25
  $region24: #{sequence_taggle_forward.11} parent=0 // pred_region
    _
  $region25: #{sequence_taggle_forward.11} parent=0 // pred_fallthru
    _
  // Predicated region
  $region26: #{sequence_taggle_forward.11} parent=0 // pred_check
    _
  $region27: #{sequence_taggle_forward.11} parent=0 // pred_check_branch
    %25 = sbr.rel (0) target = $region29
  $region28: #{sequence_taggle_forward.11} parent=0 // pred_region
    _
  $region29: #{sequence_taggle_forward.11} parent=0 // pred_fallthru
    _
  %v27 = vld [vmem:[%s0] sm:$0xff]
  %v28 = vld [vmem:[%s0 + $0x8] sm:$0xf]
  %vm29 = vcmask 261120
  %v30 = vsel %vm29, %v27, 0.0
  %31 = vadd.xlane.f32.xlu0 %v30
  %v32 = vpop.xlane.xlu0 %31
  %vm33 = vcmask 257024
  %v34 = vsel %vm33, %v28, 0.0
  %35 = vadd.xlane.f32.xlu0 %v34
  %v36 = vpop.xlane.xlu0 %35
  %v37 = vrcp.pop 32.0
  %v38 = vmul.f32 %v32, %v37
  %v39 = vmul.f32 %v36, %v37
  %v40 = vsub.f32 %v27, %v38
  %v41 = vsub.f32 %v28, %v39
  %v42 = vmul.f32 %v40, %v40
  %v43 = vmul.f32 %v41, %v41
  %v44 = vsel %vm29, %v42, 0.0
  %45 = vadd.xlane.f32.xlu0 %v44
  %v46 = vpop.xlane.xlu0 %45
  %v47 = vsel %vm33, %v43, 0.0
  %48 = vadd.xlane.f32.xlu0 %v47
  %v49 = vpop.xlane.xlu0 %48
  %v50 = vmul.f32 %v46, %v37
  %v51 = vmul.f32 %v49, %v37
  %v52 = vadd.f32 %v50, 1e-05
  %v53 = vadd.f32 %v51, 1e-05
  %v54 = vrsqrt.pop %v52
  %v55 = vrsqrt.pop %v53
  %v56 = vmul.f32 %v40, %v54
  %v57 = vmul.f32 %v41, %v55
  %v58 = vld [vmem:[%s2] sm:$0x1]
  %v60 = vlaneseq
  %v61 = vshrl.u32 %v60, 7
  %v62 = vsub.s32 0, %v61
  %v63 = vrot.slane %v58, %v62
  %v65 = vmul.f32 %v56, %v63
  %v66 = vmul.f32 %v57, %v63
  %v67 = vld [vmem:[%s3] sm:$0x1]
  %v69 = vlaneseq
  %v70 = vshrl.u32 %v69, 7
  %v71 = vsub.s32 0, %v70
  %v72 = vrot.slane %v67, %v71
  %v74 = vadd.f32 %v65, %v72
  %v75 = vadd.f32 %v66, %v72
  %v76 = vpack.c.bf16 %v75, %v74
  %v77 = vld [vmem:[%s4] sm:$0xff]
  %v78 = vld [vmem:[%s4 + $0x8] sm:$0xff]
  %v79 = vld [vmem:[%s4 + $0x10] sm:$0xff]
  %v80 = vld [vmem:[%s4 + $0x18] sm:$0xff]
  %v81 = vld [vmem:[%s1] sm:$0xff]
  %v82 = vld [vmem:[%s1 + $0x8] sm:$0xf]
  %v83 = vpack.c.bf16 %v82, %v81
  %v84 = vld [vmem:[%s5] sm:$0xff]
  %v85 = vld [vmem:[%s5 + $0x8] sm:$0xff]
  %v86 = vld [vmem:[%s5 + $0x10] sm:$0xff]
  %v87 = vld [vmem:[%s5 + $0x18] sm:$0xff]
  %v92 = vunpack.c.l.b16 %v84
  %v93 = vunpack.c.h.b16 %v84
  %v94 = vunpack.c.l.b16 %v85
  %v95 = vunpack.c.h.b16 %v85
  %v96 = vunpack.c.l.b16 %v86
  %v97 = vunpack.c.h.b16 %v86
  %v98 = vunpack.c.l.b16 %v87
  %v99 = vunpack.c.h.b16 %v87
  %v100 = vpack.c.b16 %v94, %v92
  %v101 = vpack.c.b16 %v95, %v93
  %v102 = vpack.c.b16 %v98, %v96
  %v103 = vpack.c.b16 %v99, %v97
  %v109 = vsel %vm29, %v83, 0
  %111 = vmatprep.subr.bf16.mxu0 0
  %112 = vmatpush1.bf16.msra.mxu0 0
  %113 = vmatprep.subr.bf16.mxu0 0
  %114 = vmatpush1.bf16.msra.mxu0 0
  %115 = vmatprep.subr.bf16.mxu0 0
  %116 = vmatpush1.bf16.msra.mxu0 0
  %117 = vmatprep.subr.bf16.mxu0 0
  %118 = vmatpush1.bf16.msra.mxu0 0
  %119 = vmatprep.subr.bf16.mxu0 0
  %120 = vmatpush1.bf16.msra.mxu0 0
  %121 = vmatprep.subr.bf16.mxu0 0
  %122 = vmatpush1.bf16.msra.mxu0 0
  %123 = vmatprep.subr.bf16.mxu0 %v103
  %124 = vmatpush1.bf16.msra.mxu0 %v102
  %125 = vmatprep.subr.bf16.mxu0 %v101
  %126 = vmatpush1.bf16.msra.mxu0 %v100
  %127 = vmatprep.subr.bf16.mxu0 0
  %128 = vmatpush2.bf16.msra.mxu0 0
  %129 = vmatprep.subr.bf16.mxu0 0
  %130 = vmatpush2.bf16.msra.mxu0 0
  %131 = vmatprep.subr.bf16.mxu0 0
  %132 = vmatpush2.bf16.msra.mxu0 0
  %133 = vmatprep.subr.bf16.mxu0 0
  %134 = vmatpush2.bf16.msra.mxu0 0
  %135 = vmatprep.subr.bf16.mxu0 0
  %136 = vmatpush2.bf16.msra.mxu0 0
  %137 = vmatprep.subr.bf16.mxu0 0
  %138 = vmatpush2.bf16.msra.mxu0 0
  %139 = vmatprep.subr.bf16.mxu0 0
  %140 = vmatpush2.bf16.msra.mxu0 0
  %141 = vmatprep.subr.bf16.mxu0 0
  %142 = vmatpush2.bf16.msra.mxu0 0
  %143 = vmatprep.mubr.bf16.mxu0 0
  %144 = vmatmul.mubr.bf16.gmra.mxu0 %v109
  %v145 = vpop.f32.mrf.mxu0
  %v146 = vadd.f32 0.0, %v145
  %v147 = vpop.f32.mrf.mxu0
  %v148 = vadd.f32 0.0, %v147
  %v149 = vpop.f32.mrf.mxu0
  %v150 = vadd.f32 0.0, %v149
  %v151 = vpop.f32.mrf.mxu0
  %v152 = vadd.f32 0.0, %v151
  %153 = vdwg.mxu0
  %v158 = vunpack.c.l.b16 %v77
  %v159 = vunpack.c.h.b16 %v77
  %v160 = vunpack.c.l.b16 %v78
  %v161 = vunpack.c.h.b16 %v78
  %v162 = vunpack.c.l.b16 %v79
  %v163 = vunpack.c.h.b16 %v79
  %v164 = vunpack.c.l.b16 %v80
  %v165 = vunpack.c.h.b16 %v80
  %v166 = vpack.c.b16 %v160, %v158
  %v167 = vpack.c.b16 %v161, %v159
  %v168 = vpack.c.b16 %v164, %v162
  %v169 = vpack.c.b16 %v165, %v163
  %v175 = vsel %vm29, %v76, 0
  %177 = vmatprep.subr.bf16.mxu0 0
  %178 = vmatpush1.bf16.msra.mxu0 0
  %179 = vmatprep.subr.bf16.mxu0 0
  %180 = vmatpush1.bf16.msra.mxu0 0
  %181 = vmatprep.subr.bf16.mxu0 0
  %182 = vmatpush1.bf16.msra.mxu0 0
  %183 = vmatprep.subr.bf16.mxu0 0
  %184 = vmatpush1.bf16.msra.mxu0 0
  %185 = vmatprep.subr.bf16.mxu0 0
  %186 = vmatpush1.bf16.msra.mxu0 0
  %187 = vmatprep.subr.bf16.mxu0 0
  %188 = vmatpush1.bf16.msra.mxu0 0
  %189 = vmatprep.subr.bf16.mxu0 %v169
  %190 = vmatpush1.bf16.msra.mxu0 %v168
  %191 = vmatprep.subr.bf16.mxu0 %v167
  %192 = vmatpush1.bf16.msra.mxu0 %v166
  %193 = vmatprep.subr.bf16.mxu0 0
  %194 = vmatpush2.bf16.msra.mxu0 0
  %195 = vmatprep.subr.bf16.mxu0 0
  %196 = vmatpush2.bf16.msra.mxu0 0
  %197 = vmatprep.subr.bf16.mxu0 0
  %198 = vmatpush2.bf16.msra.mxu0 0
  %199 = vmatprep.subr.bf16.mxu0 0
  %200 = vmatpush2.bf16.msra.mxu0 0
  %201 = vmatprep.subr.bf16.mxu0 0
  %202 = vmatpush2.bf16.msra.mxu0 0
  %203 = vmatprep.subr.bf16.mxu0 0
  %204 = vmatpush2.bf16.msra.mxu0 0
  %205 = vmatprep.subr.bf16.mxu0 0
  %206 = vmatpush2.bf16.msra.mxu0 0
  %207 = vmatprep.subr.bf16.mxu0 0
  %208 = vmatpush2.bf16.msra.mxu0 0
  %209 = vmatprep.mubr.bf16.mxu0 0
  %210 = vmatmul.mubr.bf16.gmra.mxu0 %v175
  %v211 = vpop.f32.mrf.mxu0
  %v212 = vadd.f32 %v146, %v211
  %v213 = vpop.f32.mrf.mxu0
  %v214 = vadd.f32 %v148, %v213
  %v215 = vpop.f32.mrf.mxu0
  %v216 = vadd.f32 %v150, %v215
  %v217 = vpop.f32.mrf.mxu0
  %v218 = vadd.f32 %v152, %v217
  %219 = vdwg.mxu0
  %v220 = vld [vmem:[%s6] sm:$0x3]
  %v222 = vlaneseq
  %v223 = vshrl.u32 %v222, 7
  %v224 = vsub.s32 0, %v223
  %v225 = vrot.slane %v220, %v224
  %v226 = vlaneseq
  %v227 = vshrl.u32 %v226, 7
  %v228 = vsub.s32 1, %v227
  %v229 = vrot.slane %v220, %v228
  %v232 = vadd.f32 %v212, %v225
  %v233 = vadd.f32 %v214, %v229
  %v234 = vadd.f32 %v216, %v225
  %v235 = vadd.f32 %v218, %v229
  %236 = vst [vmem:[%s7] sm:$0xff] %v232
  %237 = vst [vmem:[%s7 + $0x8] sm:$0xff] %v233
  %238 = vst [vmem:[%s7 + $0x10] sm:$0xf] %v234
  %239 = vst [vmem:[%s7 + $0x18] sm:$0xf] %v235
  // Predicated region
  $region30: #{sequence_taggle_forward.11} parent=0 // pred_check
    _
  $region31: #{sequence_taggle_forward.11} parent=0 // pred_check_branch
    %241 = sbr.rel (0) target = $region33
  $region32: #{sequence_taggle_forward.11} parent=0 // pred_region
    _
  $region33: #{sequence_taggle_forward.11} parent=0 // pred_fallthru
    _
  // Predicated region
  $region34: #{sequence_taggle_forward.11} parent=0 // pred_check
    _
  $region35: #{sequence_taggle_forward.11} parent=0 // pred_check_branch
    %243 = sbr.rel (0) target = $region37
  $region36: #{sequence_taggle_forward.11} parent=0 // pred_region
    _
  $region37: #{sequence_taggle_forward.11} parent=0 // pred_fallthru
    _

// kernel: sequence_taggle_forward.12
$region0: #{sequence_taggle_forward.12}
  #allocation0 [shape = 'u32[]', space=smem, size = 0x4, offset = 0x4, fixed_abs, tag = 'smem constant byte address 0x4 - core index']
  #allocation1 [shape = 'u32[144,128]{1,0:T(1,128)}', space=vmem, size = 0x12000, scoped, tag = 'internal scratch']
  %s0 = inlined_call_operand.vmem [shape: f32[3,4,256], index: 0, kind: input, shape index: {}]
  %s1 = inlined_call_operand.vmem [shape: bf16[2,32,128], index: 1, kind: input, shape index: {}]
  %s2 = inlined_call_operand.vmem [shape: f32[2,1,128], index: 2, kind: input, shape index: {}]
  %s3 = inlined_call_operand.vmem [shape: f32[3,4,64], index: 3, kind: output, shape index: {}]
  %s4 = sld [smem:[#allocation0]]
  $region22: #{sequence_taggle_forward.12} parent=0
    _
  %s6 = ssub.s32 1, %s4
  %s7 = scalar_select 0, %s6, %s4
  // Predicated region
  $region2: #{sequence_taggle_forward.12} parent=0 // pred_check
    _
  $region3: #{sequence_taggle_forward.12} parent=0 // pred_check_branch
    %9 = sbr.rel (0) target = $region5
  $region4: #{sequence_taggle_forward.12} parent=0 // pred_region
    _
  $region5: #{sequence_taggle_forward.12} parent=0 // pred_fallthru
    _
  // Predicated region
  $region6: #{sequence_taggle_forward.12} parent=0 // pred_check
    _
  $region7: #{sequence_taggle_forward.12} parent=0 // pred_check_branch
    %11 = sbr.rel (0) target = $region9
  $region8: #{sequence_taggle_forward.12} parent=0 // pred_region
    _
  $region9: #{sequence_taggle_forward.12} parent=0 // pred_fallthru
    _
  // Predicated region
  $region10: #{sequence_taggle_forward.12} parent=0 // pred_check
    _
  $region11: #{sequence_taggle_forward.12} parent=0 // pred_check_branch
    %13 = sbr.rel (0) target = $region13
  $region12: #{sequence_taggle_forward.12} parent=0 // pred_region
    _
  $region13: #{sequence_taggle_forward.12} parent=0 // pred_fallthru
    _
  %v15 = vld [vmem:[%s1] sm:$0xf]
  %v16 = vld [vmem:[%s1 + $0x4] sm:$0xf]
  %v17 = vld [vmem:[%s1 + $0x8] sm:$0xf]
  %v18 = vld [vmem:[%s1 + $0xc] sm:$0xf]
  %v19 = vld [vmem:[%s2] sm:$0x1]
  %s20 = scalar_lea.vmem %s1, 16
  %v21 = vld [vmem:[%s20] sm:$0xf]
  %v22 = vld [vmem:[%s20 + $0x4] sm:$0xf]
  %v23 = vld [vmem:[%s20 + $0x8] sm:$0xf]
  %v24 = vld [vmem:[%s20 + $0xc] sm:$0xf]
  %s25 = scalar_lea.vmem %s2, 1
  %v26 = vld [vmem:[%s25] sm:$0x1]
  %v27 = vld [vmem:[%s0] sm:$0xff]
  %v29 = vlaneseq
  %v30 = vshrl.u32 %v29, 7
  %v31 = vsub.s32 0, %v30
  %v32 = vrot.slane %v19, %v31
  %v38 = vunpack.c.l.b16 %v15
  %v39 = vunpack.c.l.b16 %v16
  %v40 = vunpack.c.l.b16 %v17
  %v41 = vunpack.c.l.b16 %v18
  %v42 = vpack.c.b16 %v39, %v38
  %v43 = vpack.c.b16 %v41, %v40
  %vm46 = vcmask 261120
  %v48 = vsel %vm46, 0, 0
  %50 = vmatprep.subr.bf16.mxu0 0
  %51 = vmatpush1.bf16.msra.mxu0 0
  %52 = vmatprep.subr.bf16.mxu0 0
  %53 = vmatpush1.bf16.msra.mxu0 0
  %54 = vmatprep.subr.bf16.mxu0 0
  %55 = vmatpush1.bf16.msra.mxu0 0
  %56 = vmatprep.subr.bf16.mxu0 0
  %57 = vmatpush1.bf16.msra.mxu0 0
  %58 = vmatprep.subr.bf16.mxu0 0
  %59 = vmatpush1.bf16.msra.mxu0 0
  %60 = vmatprep.subr.bf16.mxu0 0
  %61 = vmatpush1.bf16.msra.mxu0 0
  %62 = vmatprep.subr.bf16.mxu0 0
  %63 = vmatpush1.bf16.msra.mxu0 %v43
  %64 = vmatprep.subr.bf16.mxu0 0
  %65 = vmatpush1.bf16.msra.mxu0 %v42
  %66 = vmatprep.subr.bf16.mxu0 0
  %67 = vmatpush2.bf16.msra.mxu0 0
  %68 = vmatprep.subr.bf16.mxu0 0
  %69 = vmatpush2.bf16.msra.mxu0 0
  %70 = vmatprep.subr.bf16.mxu0 0
  %71 = vmatpush2.bf16.msra.mxu0 0
  %72 = vmatprep.subr.bf16.mxu0 0
  %73 = vmatpush2.bf16.msra.mxu0 0
  %74 = vmatprep.subr.bf16.mxu0 0
  %75 = vmatpush2.bf16.msra.mxu0 0
  %76 = vmatprep.subr.bf16.mxu0 0
  %77 = vmatpush2.bf16.msra.mxu0 0
  %78 = vmatprep.subr.bf16.mxu0 0
  %79 = vmatpush2.bf16.msra.mxu0 0
  %80 = vmatprep.subr.bf16.mxu0 0
  %81 = vmatpush2.bf16.msra.mxu0 0
  %82 = vmatprep.mubr.bf16.mxu0 0
  %83 = vmatmul.mubr.bf16.gmra.mxu0 %v48
  %v84 = vpop.f32.mrf.mxu0
  %v85 = vadd.f32 %v32, %v84
  %v86 = vpop.f32.mrf.mxu0
  %v87 = vpop.f32.mrf.mxu0
  %v88 = vpop.f32.mrf.mxu0
  %89 = vdwg.mxu0
  %v90 = vadd.f32 %v27, %v85
  %v91 = vxor.u32 %v90, 2147483648
  %v92 = vmul.f32 %v91, 1.442695
  %v93 = vpow.pop %v92
  %v94 = vadd.f32 %v93, 1.0
  %v95 = vrcp.pop %v94
  %v96 = vmul.f32 1.0, %v95
  %98 = vrot.lane.b32.xlu0 %v85, 64
  %v99 = vpop.permute.xlu0 %98
  %v101 = vmul.f32 %v96, %v99
  %103 = vrot.lane.b32.xlu0 %v101, 64
  %v104 = vpop.permute.xlu0 %103
  %v106 = vadd.f32 %v27, %v104
  %v107 = vtanh.pop %v106
  %v108 = vsub.f32 1.0, %v96
  %110 = vrot.lane.b32.xlu0 %v107, 96
  %v111 = vpop.permute.xlu0 %110
  %v113 = vmul.f32 %v108, %v111
  %v114 = vmul.f32 %v96, 0.0
  %v115 = vadd.f32 %v113, %v114
  %117 = vrot.lane.b32.xlu0 %v115, 96
  %v118 = vpop.permute.xlu0 %117
  %vm120 = vcmask 257024
  %121 = vst.msk [vmem:[%s3] sm:$0xf] %vm120, %v118
  %s122 = scalar_lea.vmem %s0, 16
  %v123 = vld [vmem:[%s122] sm:$0xff]
  %v125 = vlaneseq
  %v126 = vshrl.u32 %v125, 7
  %v127 = vsub.s32 0, %v126
  %v128 = vrot.slane %v26, %v127
  %v134 = vunpack.c.l.b16 %v21
  %v135 = vunpack.c.l.b16 %v22
  %v136 = vunpack.c.l.b16 %v23
  %v137 = vunpack.c.l.b16 %v24
  %v138 = vpack.c.b16 %v135, %v134
  %v139 = vpack.c.b16 %v137, %v136
  %142 = vmatprep.subr.bf16.mxu0 0
  %143 = vmatpush1.bf16.msra.mxu0 0
  %144 = vmatprep.subr.bf16.mxu0 0
  %145 = vmatpush1.bf16.msra.mxu0 0
  %146 = vmatprep.subr.bf16.mxu0 0
  %147 = vmatpush1.bf16.msra.mxu0 0
  %148 = vmatprep.subr.bf16.mxu0 0
  %149 = vmatpush1.bf16.msra.mxu0 0
  %150 = vmatprep.subr.bf16.mxu0 0
  %151 = vmatpush1.bf16.msra.mxu0 0
  %152 = vmatprep.subr.bf16.mxu0 0
  %153 = vmatpush1.bf16.msra.mxu0 0
  %154 = vmatprep.subr.bf16.mxu0 0
  %155 = vmatpush1.bf16.msra.mxu0 %v139
  %156 = vmatprep.subr.bf16.mxu0 0
  %157 = vmatpush1.bf16.msra.mxu0 %v138
  %158 = vmatprep.subr.bf16.mxu0 0
  %159 = vmatpush2.bf16.msra.mxu0 0
  %160 = vmatprep.subr.bf16.mxu0 0
  %161 = vmatpush2.bf16.msra.mxu0 0
  %162 = vmatprep.subr.bf16.mxu0 0
  %163 = vmatpush2.bf16.msra.mxu0 0
  %164 = vmatprep.subr.bf16.mxu0 0
  %165 = vmatpush2.bf16.msra.mxu0 0
  %166 = vmatprep.subr.bf16.mxu0 0
  %167 = vmatpush2.bf16.msra.mxu0 0
  %168 = vmatprep.subr.bf16.mxu0 0
  %169 = vmatpush2.bf16.msra.mxu0 0
  %170 = vmatprep.subr.bf16.mxu0 0
  %171 = vmatpush2.bf16.msra.mxu0 0
  %172 = vmatprep.subr.bf16.mxu0 0
  %173 = vmatpush2.bf16.msra.mxu0 0
  %174 = vmatprep.mubr.bf16.mxu0 0
  %175 = vmatmul.mubr.bf16.gmra.mxu0 %v48
  %v176 = vpop.f32.mrf.mxu0
  %v177 = vadd.f32 %v128, %v176
  %v178 = vpop.f32.mrf.mxu0
  %v179 = vpop.f32.mrf.mxu0
  %v180 = vpop.f32.mrf.mxu0
  %181 = vdwg.mxu0
  %v183 = vrot.slane %v123, 4
  %v185 = vadd.f32 %v183, %v177
  %v186 = vxor.u32 %v185, 2147483648
  %v187 = vmul.f32 %v186, 1.442695
  %v188 = vpow.pop %v187
  %v189 = vadd.f32 %v188, 1.0
  %v190 = vrcp.pop %v189
  %v191 = vmul.f32 1.0, %v190
  %192 = vrot.lane.b32.xlu0 %v123, 96
  %v193 = vpop.permute.xlu0 %192
  %v194 = vrot.slane %v193, 4
  %197 = vrot.lane.b32.xlu0 %v177, 96
  %v198 = vpop.permute.xlu0 %197
  %v200 = vadd.f32 %v194, %v198
  %v201 = vxor.u32 %v200, 2147483648
  %v202 = vmul.f32 %v201, 1.442695
  %v203 = vpow.pop %v202
  %v204 = vadd.f32 %v203, 1.0
  %v205 = vrcp.pop %v204
  %v206 = vmul.f32 1.0, %v205
  %207 = vrot.lane.b32.xlu0 %v177, 64
  %v208 = vpop.permute.xlu0 %207
  %v210 = vmul.f32 %v191, %v208
  %211 = vrot.lane.b32.xlu0 %v123, 64
  %v212 = vpop.permute.xlu0 %211
  %v213 = vrot.slane %v212, 4
  %v215 = vadd.f32 %v213, %v210
  %v216 = vtanh.pop %v215
  %v217 = vsub.f32 1.0, %v206
  %v218 = vmul.f32 %v217, %v216
  %v219 = vmul.f32 %v206, 0.0
  %v220 = vadd.f32 %v218, %v219
  %222 = vrot.lane.b32.xlu0 %v220, 32
  %v223 = vpop.permute.xlu0 %222
  %s225 = scalar_lea.vmem %s3, 8
  %vm226 = vcmask 519424
  %227 = vst.msk [vmem:[%s225] sm:$0xf] %vm226, %v223
  %s228 = scalar_lea.vmem %s0, 8
  %v229 = vld [vmem:[%s228] sm:$0xff]
  %v230 = vpack.c.bf16 %v115, %v115
  %232 = vrot.lane.b32.xlu0 %v230, 96
  %v233 = vpop.permute.xlu0 %232
  %v235 = vsel %vm46, %v233, 0
  %237 = vmatprep.subr.bf16.mxu0 0
  %238 = vmatpush1.bf16.msra.mxu0 0
  %239 = vmatprep.subr.bf16.mxu0 0
  %240 = vmatpush1.bf16.msra.mxu0 0
  %241 = vmatprep.subr.bf16.mxu0 0
  %242 = vmatpush1.bf16.msra.mxu0 0
  %243 = vmatprep.subr.bf16.mxu0 0
  %244 = vmatpush1.bf16.msra.mxu0 0
  %245 = vmatprep.subr.bf16.mxu0 0
  %246 = vmatpush1.bf16.msra.mxu0 0
  %247 = vmatprep.subr.bf16.mxu0 0
  %248 = vmatpush1.bf16.msra.mxu0 0
  %249 = vmatprep.subr.bf16.mxu0 0
  %250 = vmatpush1.bf16.msra.mxu0 %v43
  %251 = vmatprep.subr.bf16.mxu0 0
  %252 = vmatpush1.bf16.msra.mxu0 %v42
  %253 = vmatprep.subr.bf16.mxu0 0
  %254 = vmatpush2.bf16.msra.mxu0 0
  %255 = vmatprep.subr.bf16.mxu0 0
  %256 = vmatpush2.bf16.msra.mxu0 0
  %257 = vmatprep.subr.bf16.mxu0 0
  %258 = vmatpush2.bf16.msra.mxu0 0
  %259 = vmatprep.subr.bf16.mxu0 0
  %260 = vmatpush2.bf16.msra.mxu0 0
  %261 = vmatprep.subr.bf16.mxu0 0
  %262 = vmatpush2.bf16.msra.mxu0 0
  %263 = vmatprep.subr.bf16.mxu0 0
  %264 = vmatpush2.bf16.msra.mxu0 0
  %265 = vmatprep.subr.bf16.mxu0 0
  %266 = vmatpush2.bf16.msra.mxu0 0
  %267 = vmatprep.subr.bf16.mxu0 0
  %268 = vmatpush2.bf16.msra.mxu0 0
  %269 = vmatprep.mubr.bf16.mxu0 0
  %270 = vmatmul.mubr.bf16.gmra.mxu0 %v235
  %v271 = vpop.f32.mrf.mxu0
  %v272 = vadd.f32 %v32, %v271
  %v273 = vpop.f32.mrf.mxu0
  %v274 = vpop.f32.mrf.mxu0
  %v275 = vpop.f32.mrf.mxu0
  %276 = vdwg.mxu0
  %v277 = vadd.f32 %v229, %v272
  %v278 = vxor.u32 %v277, 2147483648
  %v279 = vmul.f32 %v278, 1.442695
  %v280 = vpow.pop %v279
  %v281 = vadd.f32 %v280, 1.0
  %v282 = vrcp.pop %v281
  %v283 = vmul.f32 1.0, %v282
  %285 = vrot.lane.b32.xlu0 %v272, 64
  %v286 = vpop.permute.xlu0 %285
  %v288 = vmul.f32 %v283, %v286
  %290 = vrot.lane.b32.xlu0 %v288, 64
  %v291 = vpop.permute.xlu0 %290
  %v293 = vadd.f32 %v229, %v291
  %v294 = vtanh.pop %v293
  %v295 = vsub.f32 1.0, %v283
  %297 = vrot.lane.b32.xlu0 %v294, 96
  %v298 = vpop.permute.xlu0 %297
  %v300 = vmul.f32 %v295, %v298
  %v301 = vmul.f32 %v283, %v115
  %v302 = vadd.f32 %v300, %v301
  %304 = vrot.lane.b32.xlu0 %v302, 96
  %v305 = vpop.permute.xlu0 %304
  %s307 = scalar_lea.vmem %s3, 4
  %308 = vst.msk [vmem:[%s307] sm:$0xf] %vm120, %v305
  %v309 = vld [vmem:[%s228] sm:$0xff]
  %v310 = vpack.c.bf16 %v220, %v220
  %v312 = vsel %vm46, %v310, 0
  %314 = vmatprep.subr.bf16.mxu0 0
  %315 = vmatpush1.bf16.msra.mxu0 0
  %316 = vmatprep.subr.bf16.mxu0 0
  %317 = vmatpush1.bf16.msra.mxu0 0
  %318 = vmatprep.subr.bf16.mxu0 0
  %319 = vmatpush1.bf16.msra.mxu0 0
  %320 = vmatprep.subr.bf16.mxu0 0
  %321 = vmatpush1.bf16.msra.mxu0 0
  %322 = vmatprep.subr.bf16.mxu0 0
  %323 = vmatpush1.bf16.msra.mxu0 0
  %324 = vmatprep.subr.bf16.mxu0 0
  %325 = vmatpush1.bf16.msra.mxu0 0
  %326 = vmatprep.subr.bf16.mxu0 0
  %327 = vmatpush1.bf16.msra.mxu0 %v139
  %328 = vmatprep.subr.bf16.mxu0 0
  %329 = vmatpush1.bf16.msra.mxu0 %v138
  %330 = vmatprep.subr.bf16.mxu0 0
  %331 = vmatpush2.bf16.msra.mxu0 0
  %332 = vmatprep.subr.bf16.mxu0 0
  %333 = vmatpush2.bf16.msra.mxu0 0
  %334 = vmatprep.subr.bf16.mxu0 0
  %335 = vmatpush2.bf16.msra.mxu0 0
  %336 = vmatprep.subr.bf16.mxu0 0
  %337 = vmatpush2.bf16.msra.mxu0 0
  %338 = vmatprep.subr.bf16.mxu0 0
  %339 = vmatpush2.bf16.msra.mxu0 0
  %340 = vmatprep.subr.bf16.mxu0 0
  %341 = vmatpush2.bf16.msra.mxu0 0
  %342 = vmatprep.subr.bf16.mxu0 0
  %343 = vmatpush2.bf16.msra.mxu0 0
  %344 = vmatprep.subr.bf16.mxu0 0
  %345 = vmatpush2.bf16.msra.mxu0 0
  %346 = vmatprep.mubr.bf16.mxu0 0
  %347 = vmatmul.mubr.bf16.gmra.mxu0 %v312
  %v348 = vpop.f32.mrf.mxu0
  %v349 = vadd.f32 %v128, %v348
  %v350 = vpop.f32.mrf.mxu0
  %v351 = vpop.f32.mrf.mxu0
  %v352 = vpop.f32.mrf.mxu0
  %353 = vdwg.mxu0
  %v355 = vrot.slane %v309, 4
  %v357 = vadd.f32 %v355, %v349
  %v358 = vxor.u32 %v357, 2147483648
  %v359 = vmul.f32 %v358, 1.442695
  %v360 = vpow.pop %v359
  %v361 = vadd.f32 %v360, 1.0
  %v362 = vrcp.pop %v361
  %v363 = vmul.f32 1.0, %v362
  %364 = vrot.lane.b32.xlu0 %v309, 96
  %v365 = vpop.permute.xlu0 %364
  %v366 = vrot.slane %v365, 4
  %369 = vrot.lane.b32.xlu0 %v349, 96
  %v370 = vpop.permute.xlu0 %369
  %v372 = vadd.f32 %v366, %v370
  %v373 = vxor.u32 %v372, 2147483648
  %v374 = vmul.f32 %v373, 1.442695
  %v375 = vpow.pop %v374
  %v376 = vadd.f32 %v375, 1.0
  %v377 = vrcp.pop %v376
  %v378 = vmul.f32 1.0, %v377
  %379 = vrot.lane.b32.xlu0 %v349, 64
  %v380 = vpop.permute.xlu0 %379
  %v382 = vmul.f32 %v363, %v380
  %383 = vrot.lane.b32.xlu0 %v309, 64
  %v384 = vpop.permute.xlu0 %383
  %v385 = vrot.slane %v384, 4
  %v387 = vadd.f32 %v385, %v382
  %v388 = vtanh.pop %v387
  %v389 = vsub.f32 1.0, %v378
  %v390 = vmul.f32 %v389, %v388
  %v391 = vmul.f32 %v378, %v220
  %v392 = vadd.f32 %v390, %v391
  %394 = vrot.lane.b32.xlu0 %v392, 32
  %v395 = vpop.permute.xlu0 %394
  %397 = vst.msk [vmem:[%s307] sm:$0xf] %vm226, %v395
  %v398 = vld [vmem:[%s122] sm:$0xff]
  %v399 = vpack.c.bf16 %v302, %v302
  %401 = vrot.lane.b32.xlu0 %v399, 96
  %v402 = vpop.permute.xlu0 %401
  %v404 = vsel %vm46, %v402, 0
  %406 = vmatprep.subr.bf16.mxu0 0
  %407 = vmatpush1.bf16.msra.mxu0 0
  %408 = vmatprep.subr.bf16.mxu0 0
  %409 = vmatpush1.bf16.msra.mxu0 0
  %410 = vmatprep.subr.bf16.mxu0 0
  %411 = vmatpush1.bf16.msra.mxu0 0
  %412 = vmatprep.subr.bf16.mxu0 0
  %413 = vmatpush1.bf16.msra.mxu0 0
  %414 = vmatprep.subr.bf16.mxu0 0
  %415 = vmatpush1.bf16.msra.mxu0 0
  %416 = vmatprep.subr.bf16.mxu0 0
  %417 = vmatpush1.bf16.msra.mxu0 0
  %418 = vmatprep.subr.bf16.mxu0 0
  %419 = vmatpush1.bf16.msra.mxu0 %v43
  %420 = vmatprep.subr.bf16.mxu0 0
  %421 = vmatpush1.bf16.msra.mxu0 %v42
  %422 = vmatprep.subr.bf16.mxu0 0
  %423 = vmatpush2.bf16.msra.mxu0 0
  %424 = vmatprep.subr.bf16.mxu0 0
  %425 = vmatpush2.bf16.msra.mxu0 0
  %426 = vmatprep.subr.bf16.mxu0 0
  %427 = vmatpush2.bf16.msra.mxu0 0
  %428 = vmatprep.subr.bf16.mxu0 0
  %429 = vmatpush2.bf16.msra.mxu0 0
  %430 = vmatprep.subr.bf16.mxu0 0
  %431 = vmatpush2.bf16.msra.mxu0 0
  %432 = vmatprep.subr.bf16.mxu0 0
  %433 = vmatpush2.bf16.msra.mxu0 0
  %434 = vmatprep.subr.bf16.mxu0 0
  %435 = vmatpush2.bf16.msra.mxu0 0
  %436 = vmatprep.subr.bf16.mxu0 0
  %437 = vmatpush2.bf16.msra.mxu0 0
  %438 = vmatprep.mubr.bf16.mxu0 0
  %439 = vmatmul.mubr.bf16.gmra.mxu0 %v404
  %v440 = vpop.f32.mrf.mxu0
  %v441 = vadd.f32 %v32, %v440
  %v442 = vpop.f32.mrf.mxu0
  %v443 = vpop.f32.mrf.mxu0
  %v444 = vpop.f32.mrf.mxu0
  %445 = vdwg.mxu0
  %v446 = vadd.f32 %v398, %v441
  %v447 = vxor.u32 %v446, 2147483648
  %v448 = vmul.f32 %v447, 1.442695
  %v449 = vpow.pop %v448
  %v450 = vadd.f32 %v449, 1.0
  %v451 = vrcp.pop %v450
  %v452 = vmul.f32 1.0, %v451
  %454 = vrot.lane.b32.xlu0 %v441, 64
  %v455 = vpop.permute.xlu0 %454
  %v457 = vmul.f32 %v452, %v455
  %459 = vrot.lane.b32.xlu0 %v457, 64
  %v460 = vpop.permute.xlu0 %459
  %v462 = vadd.f32 %v398, %v460
  %v463 = vtanh.pop %v462
  %v464 = vsub.f32 1.0, %v452
  %466 = vrot.lane.b32.xlu0 %v463, 96
  %v467 = vpop.permute.xlu0 %466
  %v469 = vmul.f32 %v464, %v467
  %v470 = vmul.f32 %v452, %v302
  %v471 = vadd.f32 %v469, %v470
  %473 = vrot.lane.b32.xlu0 %v471, 96
  %v474 = vpop.permute.xlu0 %473
  %476 = vst.msk [vmem:[%s225] sm:$0xf] %vm120, %v474
  %v477 = vld [vmem:[%s0] sm:$0xff]
  %v478 = vpack.c.bf16 %v392, %v392
  %v480 = vsel %vm46, %v478, 0
  %482 = vmatprep.subr.bf16.mxu0 0
  %483 = vmatpush1.bf16.msra.mxu0 0
  %484 = vmatprep.subr.bf16.mxu0 0
  %485 = vmatpush1.bf16.msra.mxu0 0
  %486 = vmatprep.subr.bf16.mxu0 0
  %487 = vmatpush1.bf16.msra.mxu0 0
  %488 = vmatprep.subr.bf16.mxu0 0
  %489 = vmatpush1.bf16.msra.mxu0 0
  %490 = vmatprep.subr.bf16.mxu0 0
  %491 = vmatpush1.bf16.msra.mxu0 0
  %492 = vmatprep.subr.bf16.mxu0 0
  %493 = vmatpush1.bf16.msra.mxu0 0
  %494 = vmatprep.subr.bf16.mxu0 0
  %495 = vmatpush1.bf16.msra.mxu0 %v139
  %496 = vmatprep.subr.bf16.mxu0 0
  %497 = vmatpush1.bf16.msra.mxu0 %v138
  %498 = vmatprep.subr.bf16.mxu0 0
  %499 = vmatpush2.bf16.msra.mxu0 0
  %500 = vmatprep.subr.bf16.mxu0 0
  %501 = vmatpush2.bf16.msra.mxu0 0
  %502 = vmatprep.subr.bf16.mxu0 0
  %503 = vmatpush2.bf16.msra.mxu0 0
  %504 = vmatprep.subr.bf16.mxu0 0
  %505 = vmatpush2.bf16.msra.mxu0 0
  %506 = vmatprep.subr.bf16.mxu0 0
  %507 = vmatpush2.bf16.msra.mxu0 0
  %508 = vmatprep.subr.bf16.mxu0 0
  %509 = vmatpush2.bf16.msra.mxu0 0
  %510 = vmatprep.subr.bf16.mxu0 0
  %511 = vmatpush2.bf16.msra.mxu0 0
  %512 = vmatprep.subr.bf16.mxu0 0
  %513 = vmatpush2.bf16.msra.mxu0 0
  %514 = vmatprep.mubr.bf16.mxu0 0
  %515 = vmatmul.mubr.bf16.gmra.mxu0 %v480
  %v516 = vpop.f32.mrf.mxu0
  %v517 = vadd.f32 %v128, %v516
  %v518 = vpop.f32.mrf.mxu0
  %v519 = vpop.f32.mrf.mxu0
  %v520 = vpop.f32.mrf.mxu0
  %521 = vdwg.mxu0
  %v523 = vrot.slane %v477, 4
  %v525 = vadd.f32 %v523, %v517
  %v526 = vxor.u32 %v525, 2147483648
  %v527 = vmul.f32 %v526, 1.442695
  %v528 = vpow.pop %v527
  %v529 = vadd.f32 %v528, 1.0
  %v530 = vrcp.pop %v529
  %v531 = vmul.f32 1.0, %v530
  %532 = vrot.lane.b32.xlu0 %v477, 96
  %v533 = vpop.permute.xlu0 %532
  %v534 = vrot.slane %v533, 4
  %537 = vrot.lane.b32.xlu0 %v517, 96
  %v538 = vpop.permute.xlu0 %537
  %v540 = vadd.f32 %v534, %v538
  %v541 = vxor.u32 %v540, 2147483648
  %v542 = vmul.f32 %v541, 1.442695
  %v543 = vpow.pop %v542
  %v544 = vadd.f32 %v543, 1.0
  %v545 = vrcp.pop %v544
  %v546 = vmul.f32 1.0, %v545
  %547 = vrot.lane.b32.xlu0 %v517, 64
  %v548 = vpop.permute.xlu0 %547
  %v550 = vmul.f32 %v531, %v548
  %551 = vrot.lane.b32.xlu0 %v477, 64
  %v552 = vpop.permute.xlu0 %551
  %v553 = vrot.slane %v552, 4
  %v555 = vadd.f32 %v553, %v550
  %v556 = vtanh.pop %v555
  %v557 = vsub.f32 1.0, %v546
  %v558 = vmul.f32 %v557, %v556
  %v559 = vmul.f32 %v546, %v392
  %v560 = vadd.f32 %v558, %v559
  %562 = vrot.lane.b32.xlu0 %v560, 32
  %v563 = vpop.permute.xlu0 %562
  %565 = vst.msk [vmem:[%s3] sm:$0xf] %vm226, %v563
  // Predicated region
  $region14: #{sequence_taggle_forward.12} parent=0 // pred_check
    _
  $region15: #{sequence_taggle_forward.12} parent=0 // pred_check_branch
    %567 = sbr.rel (0) target = $region17
  $region16: #{sequence_taggle_forward.12} parent=0 // pred_region
    _
  $region17: #{sequence_taggle_forward.12} parent=0 // pred_fallthru
    _
  // Predicated region
  $region18: #{sequence_taggle_forward.12} parent=0 // pred_check
    _
  $region19: #{sequence_taggle_forward.12} parent=0 // pred_check_branch
    %569 = sbr.rel (0) target = $region21
  $region20: #{sequence_taggle_forward.12} parent=0 // pred_region
    _
  $region21: #{sequence_taggle_forward.12} parent=0 // pred_fallthru
    _

// kernel: sequence_taggle_forward.13
$region0: #{sequence_taggle_forward.13}
  #allocation0 [shape = 'u32[]', space=smem, size = 0x4, offset = 0x4, fixed_abs, tag = 'smem constant byte address 0x4 - core index']
  #allocation1 [shape = 'u32[144,128]{1,0:T(1,128)}', space=vmem, size = 0x12000, scoped, tag = 'internal scratch']
  %s0 = inlined_call_operand.vmem [shape: f32[12,64], index: 0, kind: input, shape index: {}]
  %s1 = inlined_call_operand.vmem [shape: f32[1,64], index: 1, kind: input, shape index: {}]
  %s2 = inlined_call_operand.vmem [shape: f32[1,64], index: 2, kind: input, shape index: {}]
  %s3 = inlined_call_operand.vmem [shape: bf16[64,128], index: 3, kind: input, shape index: {}]
  %s4 = inlined_call_operand.vmem [shape: f32[1,128], index: 4, kind: input, shape index: {}]
  %s5 = inlined_call_operand.vmem [shape: f32[12,128], index: 5, kind: output, shape index: {}]
  %s6 = sld [smem:[#allocation0]]
  $region30: #{sequence_taggle_forward.13} parent=0
    _
  %s8 = ssub.s32 1, %s6
  %s9 = scalar_select 0, %s8, %s6
  // Predicated region
  $region2: #{sequence_taggle_forward.13} parent=0 // pred_check
    _
  $region3: #{sequence_taggle_forward.13} parent=0 // pred_check_branch
    %11 = sbr.rel (0) target = $region5
  $region4: #{sequence_taggle_forward.13} parent=0 // pred_region
    _
  $region5: #{sequence_taggle_forward.13} parent=0 // pred_fallthru
    _
  // Predicated region
  $region6: #{sequence_taggle_forward.13} parent=0 // pred_check
    _
  $region7: #{sequence_taggle_forward.13} parent=0 // pred_check_branch
    %13 = sbr.rel (0) target = $region9
  $region8: #{sequence_taggle_forward.13} parent=0 // pred_region
    _
  $region9: #{sequence_taggle_forward.13} parent=0 // pred_fallthru
    _
  // Predicated region
  $region10: #{sequence_taggle_forward.13} parent=0 // pred_check
    _
  $region11: #{sequence_taggle_forward.13} parent=0 // pred_check_branch
    %15 = sbr.rel (0) target = $region13
  $region12: #{sequence_taggle_forward.13} parent=0 // pred_region
    _
  $region13: #{sequence_taggle_forward.13} parent=0 // pred_fallthru
    _
  // Predicated region
  $region14: #{sequence_taggle_forward.13} parent=0 // pred_check
    _
  $region15: #{sequence_taggle_forward.13} parent=0 // pred_check_branch
    %17 = sbr.rel (0) target = $region17
  $region16: #{sequence_taggle_forward.13} parent=0 // pred_region
    _
  $region17: #{sequence_taggle_forward.13} parent=0 // pred_fallthru
    _
  // Predicated region
  $region18: #{sequence_taggle_forward.13} parent=0 // pred_check
    _
  $region19: #{sequence_taggle_forward.13} parent=0 // pred_check_branch
    %19 = sbr.rel (0) target = $region21
  $region20: #{sequence_taggle_forward.13} parent=0 // pred_region
    _
  $region21: #{sequence_taggle_forward.13} parent=0 // pred_fallthru
    _
  %v21 = vld [vmem:[%s0] sm:$0xff]
  %v22 = vld [vmem:[%s0 + $0x8] sm:$0xf]
  %vm23 = vcmask 523264
  %v24 = vsel %vm23, %v21, 0.0
  %25 = vadd.xlane.f32.xlu0 %v24
  %v26 = vpop.xlane.xlu0 %25
  %vm27 = vcmask 519168
  %v28 = vsel %vm27, %v22, 0.0
  %29 = vadd.xlane.f32.xlu0 %v28
  %v30 = vpop.xlane.xlu0 %29
  %v31 = vrcp.pop 64.0
  %v32 = vmul.f32 %v26, %v31
  %v33 = vmul.f32 %v30, %v31
  %v34 = vsub.f32 %v21, %v32
  %v35 = vsub.f32 %v22, %v33
  %v36 = vmul.f32 %v34, %v34
  %v37 = vmul.f32 %v35, %v35
  %v38 = vsel %vm23, %v36, 0.0
  %39 = vadd.xlane.f32.xlu0 %v38
  %v40 = vpop.xlane.xlu0 %39
  %v41 = vsel %vm27, %v37, 0.0
  %42 = vadd.xlane.f32.xlu0 %v41
  %v43 = vpop.xlane.xlu0 %42
  %v44 = vmul.f32 %v40, %v31
  %v45 = vmul.f32 %v43, %v31
  %v46 = vadd.f32 %v44, 1e-05
  %v47 = vadd.f32 %v45, 1e-05
  %v48 = vrsqrt.pop %v46
  %v49 = vrsqrt.pop %v47
  %v50 = vmul.f32 %v34, %v48
  %v51 = vmul.f32 %v35, %v49
  %v52 = vld [vmem:[%s1] sm:$0x1]
  %v54 = vlaneseq
  %v55 = vshrl.u32 %v54, 7
  %v56 = vsub.s32 0, %v55
  %v57 = vrot.slane %v52, %v56
  %v59 = vmul.f32 %v50, %v57
  %v60 = vmul.f32 %v51, %v57
  %v61 = vld [vmem:[%s2] sm:$0x1]
  %v63 = vlaneseq
  %v64 = vshrl.u32 %v63, 7
  %v65 = vsub.s32 0, %v64
  %v66 = vrot.slane %v61, %v65
  %v68 = vadd.f32 %v59, %v66
  %v69 = vadd.f32 %v60, %v66
  %v70 = vpack.c.bf16 %v69, %v68
  %v71 = vld [vmem:[%s3] sm:$0xf]
  %v72 = vld [vmem:[%s3 + $0x4] sm:$0xf]
  %v73 = vld [vmem:[%s3 + $0x8] sm:$0xf]
  %v74 = vld [vmem:[%s3 + $0xc] sm:$0xf]
  %v75 = vld [vmem:[%s3 + $0x10] sm:$0xf]
  %v76 = vld [vmem:[%s3 + $0x14] sm:$0xf]
  %v77 = vld [vmem:[%s3 + $0x18] sm:$0xf]
  %v78 = vld [vmem:[%s3 + $0x1c] sm:$0xf]
  %v79 = vld [vmem:[%s4] sm:$0x1]
  %v81 = vlaneseq
  %v82 = vshrl.u32 %v81, 7
  %v83 = vsub.s32 0, %v82
  %v84 = vrot.slane %v79, %v83
  %v94 = vunpack.c.l.b16 %v71
  %v95 = vunpack.c.l.b16 %v72
  %v96 = vunpack.c.l.b16 %v73
  %v97 = vunpack.c.l.b16 %v74
  %v98 = vunpack.c.l.b16 %v75
  %v99 = vunpack.c.l.b16 %v76
  %v100 = vunpack.c.l.b16 %v77
  %v101 = vunpack.c.l.b16 %v78
  %v102 = vpack.c.b16 %v95, %v94
  %v103 = vpack.c.b16 %v97, %v96
  %v104 = vpack.c.b16 %v99, %v98
  %v105 = vpack.c.b16 %v101, %v100
  %v111 = vsel %vm23, %v70, 0
  %113 = vmatprep.subr.bf16.mxu0 0
  %114 = vmatpush1.bf16.msra.mxu0 0
  %115 = vmatprep.subr.bf16.mxu0 0
  %116 = vmatpush1.bf16.msra.mxu0 0
  %117 = vmatprep.subr.bf16.mxu0 0
  %118 = vmatpush1.bf16.msra.mxu0 0
  %119 = vmatprep.subr.bf16.mxu0 0
  %120 = vmatpush1.bf16.msra.mxu0 0
  %121 = vmatprep.subr.bf16.mxu0 0
  %122 = vmatpush1.bf16.msra.mxu0 %v105
  %123 = vmatprep.subr.bf16.mxu0 0
  %124 = vmatpush1.bf16.msra.mxu0 %v104
  %125 = vmatprep.subr.bf16.mxu0 0
  %126 = vmatpush1.bf16.msra.mxu0 %v103
  %127 = vmatprep.subr.bf16.mxu0 0
  %128 = vmatpush1.bf16.msra.mxu0 %v102
  %129 = vmatprep.subr.bf16.mxu0 0
  %130 = vmatpush2.bf16.msra.mxu0 0
  %131 = vmatprep.subr.bf16.mxu0 0
  %132 = vmatpush2.bf16.msra.mxu0 0
  %133 = vmatprep.subr.bf16.mxu0 0
  %134 = vmatpush2.bf16.msra.mxu0 0
  %135 = vmatprep.subr.bf16.mxu0 0
  %136 = vmatpush2.bf16.msra.mxu0 0
  %137 = vmatprep.subr.bf16.mxu0 0
  %138 = vmatpush2.bf16.msra.mxu0 0
  %139 = vmatprep.subr.bf16.mxu0 0
  %140 = vmatpush2.bf16.msra.mxu0 0
  %141 = vmatprep.subr.bf16.mxu0 0
  %142 = vmatpush2.bf16.msra.mxu0 0
  %143 = vmatprep.subr.bf16.mxu0 0
  %144 = vmatpush2.bf16.msra.mxu0 0
  %145 = vmatprep.mubr.bf16.mxu0 0
  %146 = vmatmul.mubr.bf16.gmra.mxu0 %v111
  %v147 = vpop.f32.mrf.mxu0
  %v148 = vadd.f32 %v84, %v147
  %v149 = vpop.f32.mrf.mxu0
  %v150 = vpop.f32.mrf.mxu0
  %v151 = vadd.f32 %v84, %v150
  %v152 = vpop.f32.mrf.mxu0
  %153 = vdwg.mxu0
  %154 = vst [vmem:[%s5] sm:$0xff] %v148
  %155 = vst [vmem:[%s5 + $0x8] sm:$0xf] %v151
  // Predicated region
  $region22: #{sequence_taggle_forward.13} parent=0 // pred_check
    _
  $region23: #{sequence_taggle_forward.13} parent=0 // pred_check_branch
    %157 = sbr.rel (0) target = $region25
  $region24: #{sequence_taggle_forward.13} parent=0 // pred_region
    _
  $region25: #{sequence_taggle_forward.13} parent=0 // pred_fallthru
    _
  // Predicated region
  $region26: #{sequence_taggle_forward.13} parent=0 // pred_check
    _
  $region27: #{sequence_taggle_forward.13} parent=0 // pred_check_branch
    %159 = sbr.rel (0) target = $region29
  $region28: #{sequence_taggle_forward.13} parent=0 // pred_region
    _
  $region29: #{sequence_taggle_forward.13} parent=0 // pred_fallthru
    _

</llo_original>
